<compile_context>
chip_gen: v7x
topology: tpu7x:2x2x1
jax: 0.10.0
libtpu: 0.0.40
codegen_flags: <defaults>
</compile_context>

<pallas_src>
import math
import functools

import jax
import jax.numpy as jnp
import numpy as np
from jax.experimental import pallas as pl
from jax.experimental.pallas import tpu as pltpu


def _decoder_layer_cell_kernel(
    x_ref, tmask_ref, smask_ref,
    kf_ref, vf_ref,
    sa_wq_ref, sa_wk_ref, sa_wv_ref,
    sa_bq_ref, sa_bk_ref, sa_bv_ref,
    sa_wo_ref, sa_bo_ref,
    sr_wq_ref, sr_bq_ref, sr_wo_ref, sr_bo_ref,
    w1_ref, b1_ref, w2_ref, b2_ref,
    ln_g_ref, ln_b_ref,
    o_ref,
    *, headers,
):
    bb, t, d = x_ref.shape                 # batch block, tgt len, d_model
    dk = d // headers
    m = bb * t                             # batch folded into matmul rows
    scale = 1.0 / math.sqrt(dk)
    neg = -65500.0
    bf16 = jnp.bfloat16
    f32 = jnp.float32

    x = x_ref[...].reshape(m, d)           # (M, D) f32 residual stream
    tmask = tmask_ref[...]                 # (Bb, T, T)
    smask = smask_ref[...]                 # (Bb, 1, S)
    s_len = kf_ref.shape[1]

    def layer_norm(v, idx):
        g = ln_g_ref[idx:idx + 1, :]       # (1, D)
        b = ln_b_ref[idx:idx + 1, :]
        mu = jnp.mean(v, axis=-1, keepdims=True)
        var = jnp.mean((v - mu) ** 2, axis=-1, keepdims=True)
        return (v - mu) * jax.lax.rsqrt(var + 1e-5) * g + b

    def softmax(s):
        mx = jnp.max(s, axis=-1, keepdims=True)
        p = jnp.exp(s - mx)
        return p * pl.reciprocal(jnp.sum(p, axis=-1, keepdims=True), approx=True)

    def self_attn(xn):
        xb = xn.astype(bf16)
        acc = jnp.zeros((m, d), f32)
        for h in range(headers):           # static unroll; per-head weights on a leading axis
            q = jnp.dot(xb, sa_wq_ref[h], preferred_element_type=f32) + sa_bq_ref[h]
            k = jnp.dot(xb, sa_wk_ref[h], preferred_element_type=f32) + sa_bk_ref[h]
            v = jnp.dot(xb, sa_wv_ref[h], preferred_element_type=f32) + sa_bv_ref[h]
            q3 = q.reshape(bb, t, dk).astype(bf16)
            k3 = k.reshape(bb, t, dk).astype(bf16)
            v3 = v.reshape(bb, t, dk).astype(bf16)
            s = jnp.einsum('bqd,bkd->bqk', q3, k3,
                           preferred_element_type=f32) * scale           # (Bb,T,T)
            s = jnp.where(tmask == 0, neg, s)
            p = softmax(s)
            o = jnp.einsum('bqk,bkd->bqd', p.astype(bf16), v3,
                           preferred_element_type=f32)                   # (Bb,T,dk)
            # accumulate through the per-head slice of the output projection
            acc = acc + jnp.dot(o.reshape(m, dk).astype(bf16), sa_wo_ref[h],
                                preferred_element_type=f32)
        return acc + sa_bo_ref[...]

    def src_attn(xn):
        xb = xn.astype(bf16)
        acc = jnp.zeros((m, d), f32)
        for h in range(headers):
            q = jnp.dot(xb, sr_wq_ref[h], preferred_element_type=f32) + sr_bq_ref[h]
            kf = kf_ref[h]                  # (S, dk) bf16, shared by all batch elements
            vf = vf_ref[h]
            s2 = jax.lax.dot_general(q.astype(bf16), kf, (((1,), (1,)), ((), ())),
                                     preferred_element_type=f32) * scale  # (M, S)
            s = jnp.where(smask == 0, neg, s2.reshape(bb, t, s_len))
            p = softmax(s).reshape(m, s_len)
            o = jnp.dot(p.astype(bf16), vf, preferred_element_type=f32)   # (M, dk)
            acc = acc + jnp.dot(o.astype(bf16), sr_wo_ref[h],
                                preferred_element_type=f32)
        return acc + sr_bo_ref[...]

    def ffn(xn):
        h1 = jnp.dot(xn.astype(bf16), w1_ref[...], preferred_element_type=f32) + b1_ref[...]
        h1 = jnp.maximum(h1, 0.0)
        return jnp.dot(h1.astype(bf16), w2_ref[...], preferred_element_type=f32) + b2_ref[...]

    # pre-LN sublayers with residual connections (dropout = identity in eval)
    x = x + self_attn(layer_norm(x, 0))
    x = x + src_attn(layer_norm(x, 1))
    x = x + ffn(layer_norm(x, 2))
    o_ref[...] = x.reshape(bb, t, d)


def decoder_layer_cell(x, feature, src_mask, tgt_mask, params, headers):
    B, T, D = x.shape
    dk = D // headers
    bf16 = jnp.bfloat16
    P = params

    # Flatten the feature memory to (S, D): matches MultiHeadAttentionCell's
    # `.view(1, -1, headers, d_k)` (feature batch folded into source length).
    feat_flat = feature.reshape(-1, D).astype(jnp.float32)
    S = feat_flat.shape[0]

    def split_heads_w(w):                  # (D, D) -> (H, D, dk)
        return w.reshape(D, headers, dk).transpose(1, 0, 2)

    def split_heads_b(b):                  # (D,) -> (H, 1, dk)
        return b.reshape(headers, 1, dk)

    sa_wq = split_heads_w(P['self_w'][0]).astype(bf16)
    sa_wk = split_heads_w(P['self_w'][1]).astype(bf16)
    sa_wv = split_heads_w(P['self_w'][2]).astype(bf16)
    sa_bq = split_heads_b(P['self_b'][0])
    sa_bk = split_heads_b(P['self_b'][1])
    sa_bv = split_heads_b(P['self_b'][2])
    sa_wo = P['self_w'][3].reshape(headers, dk, D).astype(bf16)
    sa_bo = P['self_b'][3].reshape(1, D)

    sr_wq = split_heads_w(P['src_w'][0]).astype(bf16)
    sr_bq = split_heads_b(P['src_b'][0])
    sr_wo = P['src_w'][3].reshape(headers, dk, D).astype(bf16)
    sr_bo = P['src_b'][3].reshape(1, D)

    # Source-attention K/V are identical for every batch element: project once
    # here (hoisted out of the kernel's batch grid), in per-head layout.
    kf = (feat_flat @ P['src_w'][1] + P['src_b'][1]).reshape(S, headers, dk)
    vf = (feat_flat @ P['src_w'][2] + P['src_b'][2]).reshape(S, headers, dk)
    kf = kf.transpose(1, 0, 2).astype(bf16)            # (H, S, dk)
    vf = vf.transpose(1, 0, 2).astype(bf16)

    w1 = P['w1'].astype(bf16)
    b1 = P['b1'].reshape(1, -1)
    w2 = P['w2'].astype(bf16)
    b2 = P['b2'].reshape(1, -1)
    ln_g = P['ln_g']
    ln_b = P['ln_b']

    # Batch blocking: fold block_b batch elements into the matmul M dimension
    # (aims for ~128 rows per grid step; keeps B divisible by block_b).
    block_b = 1
    for cand in range(1, B + 1):
        if B % cand == 0 and cand * T <= 128:
            block_b = cand
    grid = (B // block_b,)

    def full(a):
        nd = a.ndim
        return pl.BlockSpec(a.shape, lambda b, _n=nd: (0,) * _n)

    shared = [kf, vf,
              sa_wq, sa_wk, sa_wv, sa_bq, sa_bk, sa_bv, sa_wo, sa_bo,
              sr_wq, sr_bq, sr_wo, sr_bo,
              w1, b1, w2, b2, ln_g, ln_b]

    kernel = functools.partial(_decoder_layer_cell_kernel, headers=headers)

    return pl.pallas_call(
        kernel,
        out_shape=jax.ShapeDtypeStruct((B, T, D), jnp.float32),
        grid=grid,
        in_specs=[
            pl.BlockSpec((block_b, T, D), lambda b: (b, 0, 0)),   # x
            pl.BlockSpec((block_b, T, T), lambda b: (b, 0, 0)),   # tgt_mask
            pl.BlockSpec((block_b, 1, S), lambda b: (b, 0, 0)),   # src_mask
        ] + [full(a) for a in shared],
        out_specs=pl.BlockSpec((block_b, T, D), lambda b: (b, 0, 0)),
        compiler_params=pltpu.CompilerParams(
            dimension_semantics=("parallel",),
            vmem_limit_bytes=64 * 1024 * 1024),
    )(x, tgt_mask, src_mask, *shared)


def init_params(key, d_model, d_ff):
    """Deterministic synthetic parameters.  Linear weights are stored in
    (in_features, out_features) layout so y = x @ W + b."""
    ks = jax.random.split(key, 10)
    s = 0.05

    def nrm(k, shape):
        return jax.random.normal(k, shape, jnp.float32) * s

    return dict(
        self_w=nrm(ks[0], (4, d_model, d_model)),   # q, k, v, out projections
        self_b=nrm(ks[1], (4, d_model)),
        src_w=nrm(ks[2], (4, d_model, d_model)),
        src_b=nrm(ks[3], (4, d_model)),
        w1=nrm(ks[4], (d_model, d_ff)),
        b1=nrm(ks[5], (1, d_ff)),
        w2=nrm(ks[6], (d_ff, d_model)),
        b2=nrm(ks[7], (1, d_model)),
        ln_g=jnp.ones((3, d_model), jnp.float32) + nrm(ks[8], (3, d_model)),
        ln_b=nrm(ks[9], (3, d_model)),
    )


def reference_forward(x, feature, src_mask, tgt_mask, P, headers):
    """Pure-JAX f32 replica of the PyTorch forward (eval mode)."""
    D = x.shape[-1]
    dk = D // headers

    def ln(v, g, b):
        mu = v.mean(-1, keepdims=True)
        var = ((v - mu) ** 2).mean(-1, keepdims=True)
        return (v - mu) / jnp.sqrt(var + 1e-5) * g + b

    def split_heads(t):
        B, L, _ = t.shape
        return t.reshape(B, L, headers, dk).transpose(0, 2, 1, 3)

    def merge_heads(t):
        B, H, L, _ = t.shape
        return t.transpose(0, 2, 1, 3).reshape(B, L, H * dk)

    def attention(q, k, v, mask):
        s = jnp.matmul(q, jnp.swapaxes(k, -1, -2) / math.sqrt(dk))
        s = jnp.where(mask == 0, -65500.0, s)
        return jnp.matmul(jax.nn.softmax(s, axis=-1), v)

    def self_attn(xq, mask):
        q = split_heads(xq @ P['self_w'][0] + P['self_b'][0])
        k = split_heads(xq @ P['self_w'][1] + P['self_b'][1])
        v = split_heads(xq @ P['self_w'][2] + P['self_b'][2])
        return merge_heads(attention(q, k, v, mask)) @ P['self_w'][3] + P['self_b'][3]

    def src_attn(xq, feat, mask):
        q = split_heads(xq @ P['src_w'][0] + P['src_b'][0])
        k = (feat @ P['src_w'][1] + P['src_b'][1]).reshape(1, -1, headers, dk).transpose(0, 2, 1, 3)
        v = (feat @ P['src_w'][2] + P['src_b'][2]).reshape(1, -1, headers, dk).transpose(0, 2, 1, 3)
        return merge_heads(attention(q, k, v, mask)) @ P['src_w'][3] + P['src_b'][3]

    def ffn(v):
        return jnp.maximum(v @ P['w1'] + P['b1'], 0.0) @ P['w2'] + P['b2']

    x = x + self_attn(ln(x, P['ln_g'][0], P['ln_b'][0]), tgt_mask[:, None])
    x = x + src_attn(ln(x, P['ln_g'][1], P['ln_b'][1]), feature, src_mask[:, None])
    x = x + ffn(ln(x, P['ln_g'][2], P['ln_b'][2]))
    return x


if __name__ == "__main__":
    B, T, D, H, Dff = 2, 8, 32, 4, 64     # batch, tgt seq, d_model, heads, d_ff
    Sf = 16                               # source feature length (feature batch = 1)

    key = jax.random.PRNGKey(0)
    kx, kfeat, kp = jax.random.split(key, 3)
    x = jax.random.normal(kx, (B, T, D), jnp.float32)
    feature = jax.random.normal(kfeat, (1, Sf, D), jnp.float32)
    tgt_mask = jnp.broadcast_to(jnp.tril(jnp.ones((T, T), jnp.float32)), (B, T, T))
    src_mask = jnp.ones((B, 1, Sf), jnp.float32)
    params = init_params(kp, D, Dff)

    out = decoder_layer_cell(x, feature, src_mask, tgt_mask, params, H)
    out = jax.block_until_ready(out)

    ref = reference_forward(x, feature, src_mask, tgt_mask, params, H)
    np.testing.assert_allclose(np.asarray(out), np.asarray(ref), atol=2e-2, rtol=2e-2)
    print("KERNEL_OK")
</pallas_src>

<mosaic_0001>
module attributes {stable_mosaic.version = 11 : i64} {
  func.func @_decoder_layer_cell_kernel(%arg0: i32, %arg1: memref<2x8x32xf32, #tpu.memory_space<vmem>>, %arg2: memref<2x8x8xf32, #tpu.memory_space<vmem>>, %arg3: memref<2x1x16xf32, #tpu.memory_space<vmem>>, %arg4: memref<4x16x8xbf16, #tpu.memory_space<vmem>>, %arg5: memref<4x16x8xbf16, #tpu.memory_space<vmem>>, %arg6: memref<4x32x8xbf16, #tpu.memory_space<vmem>>, %arg7: memref<4x32x8xbf16, #tpu.memory_space<vmem>>, %arg8: memref<4x32x8xbf16, #tpu.memory_space<vmem>>, %arg9: memref<4x1x8xf32, #tpu.memory_space<vmem>>, %arg10: memref<4x1x8xf32, #tpu.memory_space<vmem>>, %arg11: memref<4x1x8xf32, #tpu.memory_space<vmem>>, %arg12: memref<4x8x32xbf16, #tpu.memory_space<vmem>>, %arg13: memref<1x32xf32, #tpu.memory_space<vmem>>, %arg14: memref<4x32x8xbf16, #tpu.memory_space<vmem>>, %arg15: memref<4x1x8xf32, #tpu.memory_space<vmem>>, %arg16: memref<4x8x32xbf16, #tpu.memory_space<vmem>>, %arg17: memref<1x32xf32, #tpu.memory_space<vmem>>, %arg18: memref<32x64xbf16, #tpu.memory_space<vmem>>, %arg19: memref<1x64xf32, #tpu.memory_space<vmem>>, %arg20: memref<64x32xbf16, #tpu.memory_space<vmem>>, %arg21: memref<1x32xf32, #tpu.memory_space<vmem>>, %arg22: memref<3x32xf32, #tpu.memory_space<vmem>>, %arg23: memref<3x32xf32, #tpu.memory_space<vmem>>, %arg24: memref<2x8x32xf32, #tpu.memory_space<vmem>>) attributes {dimension_semantics = [#tpu.dimension_semantics<parallel>], iteration_bounds = array<i64: 1>, scalar_prefetch = 0 : i64, scratch_operands = 0 : i64, tpu.core_type = #tpu.core_type<tc>, window_params = [{transform_indices = @transform_0, window_bounds = array<i64: 2, 8, 32>}, {transform_indices = @transform_1, window_bounds = array<i64: 2, 8, 8>}, {transform_indices = @transform_2, window_bounds = array<i64: 2, 1, 16>}, {pipeline_mode = #tpu.pipeline_mode<synchronous>, transform_indices = @transform_3, window_bounds = array<i64: 4, 16, 8>}, {pipeline_mode = #tpu.pipeline_mode<synchronous>, transform_indices = @transform_4, window_bounds = array<i64: 4, 16, 8>}, {pipeline_mode = #tpu.pipeline_mode<synchronous>, transform_indices = @transform_5, window_bounds = array<i64: 4, 32, 8>}, {pipeline_mode = #tpu.pipeline_mode<synchronous>, transform_indices = @transform_6, window_bounds = array<i64: 4, 32, 8>}, {pipeline_mode = #tpu.pipeline_mode<synchronous>, transform_indices = @transform_7, window_bounds = array<i64: 4, 32, 8>}, {pipeline_mode = #tpu.pipeline_mode<synchronous>, transform_indices = @transform_8, window_bounds = array<i64: 4, 1, 8>}, {pipeline_mode = #tpu.pipeline_mode<synchronous>, transform_indices = @transform_9, window_bounds = array<i64: 4, 1, 8>}, {pipeline_mode = #tpu.pipeline_mode<synchronous>, transform_indices = @transform_10, window_bounds = array<i64: 4, 1, 8>}, {pipeline_mode = #tpu.pipeline_mode<synchronous>, transform_indices = @transform_11, window_bounds = array<i64: 4, 8, 32>}, {pipeline_mode = #tpu.pipeline_mode<synchronous>, transform_indices = @transform_12, window_bounds = array<i64: 1, 32>}, {pipeline_mode = #tpu.pipeline_mode<synchronous>, transform_indices = @transform_13, window_bounds = array<i64: 4, 32, 8>}, {pipeline_mode = #tpu.pipeline_mode<synchronous>, transform_indices = @transform_14, window_bounds = array<i64: 4, 1, 8>}, {pipeline_mode = #tpu.pipeline_mode<synchronous>, transform_indices = @transform_15, window_bounds = array<i64: 4, 8, 32>}, {pipeline_mode = #tpu.pipeline_mode<synchronous>, transform_indices = @transform_16, window_bounds = array<i64: 1, 32>}, {pipeline_mode = #tpu.pipeline_mode<synchronous>, transform_indices = @transform_17, window_bounds = array<i64: 32, 64>}, {pipeline_mode = #tpu.pipeline_mode<synchronous>, transform_indices = @transform_18, window_bounds = array<i64: 1, 64>}, {pipeline_mode = #tpu.pipeline_mode<synchronous>, transform_indices = @transform_19, window_bounds = array<i64: 64, 32>}, {pipeline_mode = #tpu.pipeline_mode<synchronous>, transform_indices = @transform_20, window_bounds = array<i64: 1, 32>}, {pipeline_mode = #tpu.pipeline_mode<synchronous>, transform_indices = @transform_21, window_bounds = array<i64: 3, 32>}, {pipeline_mode = #tpu.pipeline_mode<synchronous>, transform_indices = @transform_22, window_bounds = array<i64: 3, 32>}, {transform_indices = @transform_23, window_bounds = array<i64: 2, 8, 32>}]} {
    %c0 = arith.constant 0 : index
    %c0_0 = arith.constant 0 : index
    %c0_1 = arith.constant 0 : index
    %0 = vector.load %arg1[%c0, %c0_0, %c0_1] : memref<2x8x32xf32, #tpu.memory_space<vmem>>, vector<2x8x32xf32>
    %1 = vector.shape_cast %0 : vector<2x8x32xf32> to vector<16x32xf32>
    %c0_2 = arith.constant 0 : index
    %c0_3 = arith.constant 0 : index
    %c0_4 = arith.constant 0 : index
    %2 = vector.load %arg2[%c0_2, %c0_3, %c0_4] : memref<2x8x8xf32, #tpu.memory_space<vmem>>, vector<2x8x8xf32>
    %c0_5 = arith.constant 0 : index
    %c0_6 = arith.constant 0 : index
    %c0_7 = arith.constant 0 : index
    %3 = vector.load %arg3[%c0_5, %c0_6, %c0_7] : memref<2x1x16xf32, #tpu.memory_space<vmem>>, vector<2x1x16xf32>
    %c0_8 = arith.constant 0 : index
    %c0_9 = arith.constant 0 : index
    %4 = vector.load %arg22[%c0_8, %c0_9] : memref<3x32xf32, #tpu.memory_space<vmem>>, vector<1x32xf32>
    %c0_10 = arith.constant 0 : index
    %c0_11 = arith.constant 0 : index
    %5 = vector.load %arg23[%c0_10, %c0_11] : memref<3x32xf32, #tpu.memory_space<vmem>>, vector<1x32xf32>
    %cst = arith.constant dense<0.000000e+00> : vector<16xf32>
    %6 = vector.multi_reduction <add>, %1, %cst [1] : vector<16x32xf32> to vector<16xf32>
    %7 = vector.shape_cast %6 : vector<16xf32> to vector<16x1xf32>
    %cst_12 = arith.constant 3.200000e+01 : f32
    %8 = vector.broadcast %cst_12 : f32 to vector<16x1xf32>
    %9 = arith.divf %7, %8 : vector<16x1xf32>
    %10 = vector.broadcast %9 : vector<16x1xf32> to vector<16x32xf32>
    %11 = arith.subf %1, %10 : vector<16x32xf32>
    %12 = arith.mulf %11, %11 : vector<16x32xf32>
    %cst_13 = arith.constant dense<0.000000e+00> : vector<16xf32>
    %13 = vector.multi_reduction <add>, %12, %cst_13 [1] : vector<16x32xf32> to vector<16xf32>
    %14 = vector.shape_cast %13 : vector<16xf32> to vector<16x1xf32>
    %cst_14 = arith.constant 3.200000e+01 : f32
    %15 = vector.broadcast %cst_14 : f32 to vector<16x1xf32>
    %16 = arith.divf %14, %15 : vector<16x1xf32>
    %17 = vector.broadcast %9 : vector<16x1xf32> to vector<16x32xf32>
    %18 = arith.subf %1, %17 : vector<16x32xf32>
    %cst_15 = arith.constant 9.99999974E-6 : f32
    %19 = vector.broadcast %cst_15 : f32 to vector<16x1xf32>
    %20 = arith.addf %16, %19 : vector<16x1xf32>
    %21 = math.rsqrt %20 : vector<16x1xf32>
    %22 = vector.broadcast %21 : vector<16x1xf32> to vector<16x32xf32>
    %23 = arith.mulf %18, %22 : vector<16x32xf32>
    %24 = vector.broadcast %4 : vector<1x32xf32> to vector<16x32xf32>
    %25 = arith.mulf %23, %24 : vector<16x32xf32>
    %26 = vector.broadcast %5 : vector<1x32xf32> to vector<16x32xf32>
    %27 = arith.addf %25, %26 : vector<16x32xf32>
    %28 = arith.truncf %27 : vector<16x32xf32> to vector<16x32xbf16>
    %cst_16 = arith.constant 0.000000e+00 : f32
    %29 = vector.broadcast %cst_16 : f32 to vector<16x32xf32>
    %c0_17 = arith.constant 0 : index
    %c0_18 = arith.constant 0 : index
    %c0_19 = arith.constant 0 : index
    %30 = vector.load %arg6[%c0_17, %c0_18, %c0_19] : memref<4x32x8xbf16, #tpu.memory_space<vmem>>, vector<1x32x8xbf16>
    %31 = vector.shape_cast %30 : vector<1x32x8xbf16> to vector<32x8xbf16>
    %cst_20 = arith.constant dense<0.000000e+00> : vector<16x8xf32>
    %32 = tpu.matmul %28, %31, %cst_20 {dimension_numbers = #tpu.dot_dimension_numbers<[1], [0], [0], [1], [0, 0, 1, 1], [], []>} : vector<16x32xbf16>, vector<32x8xbf16>, vector<16x8xf32> -> vector<16x8xf32>
    %c0_21 = arith.constant 0 : index
    %c0_22 = arith.constant 0 : index
    %c0_23 = arith.constant 0 : index
    %33 = vector.load %arg9[%c0_21, %c0_22, %c0_23] : memref<4x1x8xf32, #tpu.memory_space<vmem>>, vector<1x1x8xf32>
    %34 = vector.shape_cast %33 : vector<1x1x8xf32> to vector<1x8xf32>
    %35 = vector.broadcast %34 : vector<1x8xf32> to vector<16x8xf32>
    %36 = arith.addf %32, %35 : vector<16x8xf32>
    %c0_24 = arith.constant 0 : index
    %c0_25 = arith.constant 0 : index
    %c0_26 = arith.constant 0 : index
    %37 = vector.load %arg7[%c0_24, %c0_25, %c0_26] : memref<4x32x8xbf16, #tpu.memory_space<vmem>>, vector<1x32x8xbf16>
    %38 = vector.shape_cast %37 : vector<1x32x8xbf16> to vector<32x8xbf16>
    %cst_27 = arith.constant dense<0.000000e+00> : vector<16x8xf32>
    %39 = tpu.matmul %28, %38, %cst_27 {dimension_numbers = #tpu.dot_dimension_numbers<[1], [0], [0], [1], [0, 0, 1, 1], [], []>} : vector<16x32xbf16>, vector<32x8xbf16>, vector<16x8xf32> -> vector<16x8xf32>
    %c0_28 = arith.constant 0 : index
    %c0_29 = arith.constant 0 : index
    %c0_30 = arith.constant 0 : index
    %40 = vector.load %arg10[%c0_28, %c0_29, %c0_30] : memref<4x1x8xf32, #tpu.memory_space<vmem>>, vector<1x1x8xf32>
    %41 = vector.shape_cast %40 : vector<1x1x8xf32> to vector<1x8xf32>
    %42 = vector.broadcast %41 : vector<1x8xf32> to vector<16x8xf32>
    %43 = arith.addf %39, %42 : vector<16x8xf32>
    %c0_31 = arith.constant 0 : index
    %c0_32 = arith.constant 0 : index
    %c0_33 = arith.constant 0 : index
    %44 = vector.load %arg8[%c0_31, %c0_32, %c0_33] : memref<4x32x8xbf16, #tpu.memory_space<vmem>>, vector<1x32x8xbf16>
    %45 = vector.shape_cast %44 : vector<1x32x8xbf16> to vector<32x8xbf16>
    %cst_34 = arith.constant dense<0.000000e+00> : vector<16x8xf32>
    %46 = tpu.matmul %28, %45, %cst_34 {dimension_numbers = #tpu.dot_dimension_numbers<[1], [0], [0], [1], [0, 0, 1, 1], [], []>} : vector<16x32xbf16>, vector<32x8xbf16>, vector<16x8xf32> -> vector<16x8xf32>
    %c0_35 = arith.constant 0 : index
    %c0_36 = arith.constant 0 : index
    %c0_37 = arith.constant 0 : index
    %47 = vector.load %arg11[%c0_35, %c0_36, %c0_37] : memref<4x1x8xf32, #tpu.memory_space<vmem>>, vector<1x1x8xf32>
    %48 = vector.shape_cast %47 : vector<1x1x8xf32> to vector<1x8xf32>
    %49 = vector.broadcast %48 : vector<1x8xf32> to vector<16x8xf32>
    %50 = arith.addf %46, %49 : vector<16x8xf32>
    %51 = vector.shape_cast %36 : vector<16x8xf32> to vector<2x8x8xf32>
    %52 = arith.truncf %51 : vector<2x8x8xf32> to vector<2x8x8xbf16>
    %53 = vector.shape_cast %43 : vector<16x8xf32> to vector<2x8x8xf32>
    %54 = arith.truncf %53 : vector<2x8x8xf32> to vector<2x8x8xbf16>
    %55 = vector.shape_cast %50 : vector<16x8xf32> to vector<2x8x8xf32>
    %56 = arith.truncf %55 : vector<2x8x8xf32> to vector<2x8x8xbf16>
    "tpu.trace_start"() <{level = 10 : i32, message = "bqd,bkd->bqk"}> : () -> ()
    %cst_38 = arith.constant dense<0.000000e+00> : vector<2x8x8xf32>
    %57 = tpu.matmul %52, %54, %cst_38 {dimension_numbers = #tpu.dot_dimension_numbers<[2], [2], [1], [1], [0, 0, 0, 1, 1, 1], [0], [0]>} : vector<2x8x8xbf16>, vector<2x8x8xbf16>, vector<2x8x8xf32> -> vector<2x8x8xf32>
    "tpu.trace_stop"() : () -> ()
    %cst_39 = arith.constant 0.353553385 : f32
    %58 = vector.broadcast %cst_39 : f32 to vector<2x8x8xf32>
    %59 = arith.mulf %57, %58 : vector<2x8x8xf32>
    %cst_40 = arith.constant 0.000000e+00 : f32
    %60 = vector.broadcast %cst_40 : f32 to vector<2x8x8xf32>
    %61 = arith.cmpf oeq, %2, %60 : vector<2x8x8xf32>
    %cst_41 = arith.constant -6.550000e+04 : f32
    %62 = vector.broadcast %cst_41 : f32 to vector<2x8x8xf32>
    %63 = arith.select %61, %62, %59 : vector<2x8x8xi1>, vector<2x8x8xf32>
    %cst_42 = arith.constant dense<0xFF800000> : vector<2x8xf32>
    %64 = vector.multi_reduction <maximumf>, %63, %cst_42 [2] : vector<2x8x8xf32> to vector<2x8xf32>
    %65 = vector.shape_cast %64 : vector<2x8xf32> to vector<2x8x1xf32>
    %66 = vector.broadcast %65 : vector<2x8x1xf32> to vector<2x8x8xf32>
    %67 = arith.subf %63, %66 : vector<2x8x8xf32>
    %68 = math.exp %67 : vector<2x8x8xf32>
    %cst_43 = arith.constant dense<0.000000e+00> : vector<2x8xf32>
    %69 = vector.multi_reduction <add>, %68, %cst_43 [2] : vector<2x8x8xf32> to vector<2x8xf32>
    %70 = vector.shape_cast %69 : vector<2x8xf32> to vector<2x8x1xf32>
    %71 = tpu.reciprocal %70 {approx = true} : vector<2x8x1xf32> -> vector<2x8x1xf32>
    %72 = vector.broadcast %71 : vector<2x8x1xf32> to vector<2x8x8xf32>
    %73 = arith.mulf %68, %72 : vector<2x8x8xf32>
    %74 = arith.truncf %73 : vector<2x8x8xf32> to vector<2x8x8xbf16>
    "tpu.trace_start"() <{level = 10 : i32, message = "bqk,bkd->bqd"}> : () -> ()
    %cst_44 = arith.constant dense<0.000000e+00> : vector<2x8x8xf32>
    %75 = tpu.matmul %74, %56, %cst_44 {dimension_numbers = #tpu.dot_dimension_numbers<[2], [1], [1], [2], [0, 0, 0, 1, 1, 2], [0], [0]>} : vector<2x8x8xbf16>, vector<2x8x8xbf16>, vector<2x8x8xf32> -> vector<2x8x8xf32>
    "tpu.trace_stop"() : () -> ()
    %76 = vector.shape_cast %75 : vector<2x8x8xf32> to vector<16x8xf32>
    %77 = arith.truncf %76 : vector<16x8xf32> to vector<16x8xbf16>
    %c0_45 = arith.constant 0 : index
    %c0_46 = arith.constant 0 : index
    %c0_47 = arith.constant 0 : index
    %78 = vector.load %arg12[%c0_45, %c0_46, %c0_47] : memref<4x8x32xbf16, #tpu.memory_space<vmem>>, vector<1x8x32xbf16>
    %79 = vector.shape_cast %78 : vector<1x8x32xbf16> to vector<8x32xbf16>
    %cst_48 = arith.constant dense<0.000000e+00> : vector<16x32xf32>
    %80 = tpu.matmul %77, %79, %cst_48 {dimension_numbers = #tpu.dot_dimension_numbers<[1], [0], [0], [1], [0, 0, 1, 1], [], []>} : vector<16x8xbf16>, vector<8x32xbf16>, vector<16x32xf32> -> vector<16x32xf32>
    %81 = arith.addf %29, %80 : vector<16x32xf32>
    %c1 = arith.constant 1 : index
    %c0_49 = arith.constant 0 : index
    %c0_50 = arith.constant 0 : index
    %82 = vector.load %arg6[%c1, %c0_49, %c0_50] : memref<4x32x8xbf16, #tpu.memory_space<vmem>>, vector<1x32x8xbf16>
    %83 = vector.shape_cast %82 : vector<1x32x8xbf16> to vector<32x8xbf16>
    %cst_51 = arith.constant dense<0.000000e+00> : vector<16x8xf32>
    %84 = tpu.matmul %28, %83, %cst_51 {dimension_numbers = #tpu.dot_dimension_numbers<[1], [0], [0], [1], [0, 0, 1, 1], [], []>} : vector<16x32xbf16>, vector<32x8xbf16>, vector<16x8xf32> -> vector<16x8xf32>
    %c1_52 = arith.constant 1 : index
    %c0_53 = arith.constant 0 : index
    %c0_54 = arith.constant 0 : index
    %85 = vector.load %arg9[%c1_52, %c0_53, %c0_54] : memref<4x1x8xf32, #tpu.memory_space<vmem>>, vector<1x1x8xf32>
    %86 = vector.shape_cast %85 : vector<1x1x8xf32> to vector<1x8xf32>
    %87 = vector.broadcast %86 : vector<1x8xf32> to vector<16x8xf32>
    %88 = arith.addf %84, %87 : vector<16x8xf32>
    %c1_55 = arith.constant 1 : index
    %c0_56 = arith.constant 0 : index
    %c0_57 = arith.constant 0 : index
    %89 = vector.load %arg7[%c1_55, %c0_56, %c0_57] : memref<4x32x8xbf16, #tpu.memory_space<vmem>>, vector<1x32x8xbf16>
    %90 = vector.shape_cast %89 : vector<1x32x8xbf16> to vector<32x8xbf16>
    %cst_58 = arith.constant dense<0.000000e+00> : vector<16x8xf32>
    %91 = tpu.matmul %28, %90, %cst_58 {dimension_numbers = #tpu.dot_dimension_numbers<[1], [0], [0], [1], [0, 0, 1, 1], [], []>} : vector<16x32xbf16>, vector<32x8xbf16>, vector<16x8xf32> -> vector<16x8xf32>
    %c1_59 = arith.constant 1 : index
    %c0_60 = arith.constant 0 : index
    %c0_61 = arith.constant 0 : index
    %92 = vector.load %arg10[%c1_59, %c0_60, %c0_61] : memref<4x1x8xf32, #tpu.memory_space<vmem>>, vector<1x1x8xf32>
    %93 = vector.shape_cast %92 : vector<1x1x8xf32> to vector<1x8xf32>
    %94 = vector.broadcast %93 : vector<1x8xf32> to vector<16x8xf32>
    %95 = arith.addf %91, %94 : vector<16x8xf32>
    %c1_62 = arith.constant 1 : index
    %c0_63 = arith.constant 0 : index
    %c0_64 = arith.constant 0 : index
    %96 = vector.load %arg8[%c1_62, %c0_63, %c0_64] : memref<4x32x8xbf16, #tpu.memory_space<vmem>>, vector<1x32x8xbf16>
    %97 = vector.shape_cast %96 : vector<1x32x8xbf16> to vector<32x8xbf16>
    %cst_65 = arith.constant dense<0.000000e+00> : vector<16x8xf32>
    %98 = tpu.matmul %28, %97, %cst_65 {dimension_numbers = #tpu.dot_dimension_numbers<[1], [0], [0], [1], [0, 0, 1, 1], [], []>} : vector<16x32xbf16>, vector<32x8xbf16>, vector<16x8xf32> -> vector<16x8xf32>
    %c1_66 = arith.constant 1 : index
    %c0_67 = arith.constant 0 : index
    %c0_68 = arith.constant 0 : index
    %99 = vector.load %arg11[%c1_66, %c0_67, %c0_68] : memref<4x1x8xf32, #tpu.memory_space<vmem>>, vector<1x1x8xf32>
    %100 = vector.shape_cast %99 : vector<1x1x8xf32> to vector<1x8xf32>
    %101 = vector.broadcast %100 : vector<1x8xf32> to vector<16x8xf32>
    %102 = arith.addf %98, %101 : vector<16x8xf32>
    %103 = vector.shape_cast %88 : vector<16x8xf32> to vector<2x8x8xf32>
    %104 = arith.truncf %103 : vector<2x8x8xf32> to vector<2x8x8xbf16>
    %105 = vector.shape_cast %95 : vector<16x8xf32> to vector<2x8x8xf32>
    %106 = arith.truncf %105 : vector<2x8x8xf32> to vector<2x8x8xbf16>
    %107 = vector.shape_cast %102 : vector<16x8xf32> to vector<2x8x8xf32>
    %108 = arith.truncf %107 : vector<2x8x8xf32> to vector<2x8x8xbf16>
    "tpu.trace_start"() <{level = 10 : i32, message = "bqd,bkd->bqk"}> : () -> ()
    %cst_69 = arith.constant dense<0.000000e+00> : vector<2x8x8xf32>
    %109 = tpu.matmul %104, %106, %cst_69 {dimension_numbers = #tpu.dot_dimension_numbers<[2], [2], [1], [1], [0, 0, 0, 1, 1, 1], [0], [0]>} : vector<2x8x8xbf16>, vector<2x8x8xbf16>, vector<2x8x8xf32> -> vector<2x8x8xf32>
    "tpu.trace_stop"() : () -> ()
    %cst_70 = arith.constant 0.353553385 : f32
    %110 = vector.broadcast %cst_70 : f32 to vector<2x8x8xf32>
    %111 = arith.mulf %109, %110 : vector<2x8x8xf32>
    %cst_71 = arith.constant 0.000000e+00 : f32
    %112 = vector.broadcast %cst_71 : f32 to vector<2x8x8xf32>
    %113 = arith.cmpf oeq, %2, %112 : vector<2x8x8xf32>
    %cst_72 = arith.constant -6.550000e+04 : f32
    %114 = vector.broadcast %cst_72 : f32 to vector<2x8x8xf32>
    %115 = arith.select %113, %114, %111 : vector<2x8x8xi1>, vector<2x8x8xf32>
    %cst_73 = arith.constant dense<0xFF800000> : vector<2x8xf32>
    %116 = vector.multi_reduction <maximumf>, %115, %cst_73 [2] : vector<2x8x8xf32> to vector<2x8xf32>
    %117 = vector.shape_cast %116 : vector<2x8xf32> to vector<2x8x1xf32>
    %118 = vector.broadcast %117 : vector<2x8x1xf32> to vector<2x8x8xf32>
    %119 = arith.subf %115, %118 : vector<2x8x8xf32>
    %120 = math.exp %119 : vector<2x8x8xf32>
    %cst_74 = arith.constant dense<0.000000e+00> : vector<2x8xf32>
    %121 = vector.multi_reduction <add>, %120, %cst_74 [2] : vector<2x8x8xf32> to vector<2x8xf32>
    %122 = vector.shape_cast %121 : vector<2x8xf32> to vector<2x8x1xf32>
    %123 = tpu.reciprocal %122 {approx = true} : vector<2x8x1xf32> -> vector<2x8x1xf32>
    %124 = vector.broadcast %123 : vector<2x8x1xf32> to vector<2x8x8xf32>
    %125 = arith.mulf %120, %124 : vector<2x8x8xf32>
    %126 = arith.truncf %125 : vector<2x8x8xf32> to vector<2x8x8xbf16>
    "tpu.trace_start"() <{level = 10 : i32, message = "bqk,bkd->bqd"}> : () -> ()
    %cst_75 = arith.constant dense<0.000000e+00> : vector<2x8x8xf32>
    %127 = tpu.matmul %126, %108, %cst_75 {dimension_numbers = #tpu.dot_dimension_numbers<[2], [1], [1], [2], [0, 0, 0, 1, 1, 2], [0], [0]>} : vector<2x8x8xbf16>, vector<2x8x8xbf16>, vector<2x8x8xf32> -> vector<2x8x8xf32>
    "tpu.trace_stop"() : () -> ()
    %128 = vector.shape_cast %127 : vector<2x8x8xf32> to vector<16x8xf32>
    %129 = arith.truncf %128 : vector<16x8xf32> to vector<16x8xbf16>
    %c1_76 = arith.constant 1 : index
    %c0_77 = arith.constant 0 : index
    %c0_78 = arith.constant 0 : index
    %130 = vector.load %arg12[%c1_76, %c0_77, %c0_78] : memref<4x8x32xbf16, #tpu.memory_space<vmem>>, vector<1x8x32xbf16>
    %131 = vector.shape_cast %130 : vector<1x8x32xbf16> to vector<8x32xbf16>
    %cst_79 = arith.constant dense<0.000000e+00> : vector<16x32xf32>
    %132 = tpu.matmul %129, %131, %cst_79 {dimension_numbers = #tpu.dot_dimension_numbers<[1], [0], [0], [1], [0, 0, 1, 1], [], []>} : vector<16x8xbf16>, vector<8x32xbf16>, vector<16x32xf32> -> vector<16x32xf32>
    %133 = arith.addf %81, %132 : vector<16x32xf32>
    %c2 = arith.constant 2 : index
    %c0_80 = arith.constant 0 : index
    %c0_81 = arith.constant 0 : index
    %134 = vector.load %arg6[%c2, %c0_80, %c0_81] : memref<4x32x8xbf16, #tpu.memory_space<vmem>>, vector<1x32x8xbf16>
    %135 = vector.shape_cast %134 : vector<1x32x8xbf16> to vector<32x8xbf16>
    %cst_82 = arith.constant dense<0.000000e+00> : vector<16x8xf32>
    %136 = tpu.matmul %28, %135, %cst_82 {dimension_numbers = #tpu.dot_dimension_numbers<[1], [0], [0], [1], [0, 0, 1, 1], [], []>} : vector<16x32xbf16>, vector<32x8xbf16>, vector<16x8xf32> -> vector<16x8xf32>
    %c2_83 = arith.constant 2 : index
    %c0_84 = arith.constant 0 : index
    %c0_85 = arith.constant 0 : index
    %137 = vector.load %arg9[%c2_83, %c0_84, %c0_85] : memref<4x1x8xf32, #tpu.memory_space<vmem>>, vector<1x1x8xf32>
    %138 = vector.shape_cast %137 : vector<1x1x8xf32> to vector<1x8xf32>
    %139 = vector.broadcast %138 : vector<1x8xf32> to vector<16x8xf32>
    %140 = arith.addf %136, %139 : vector<16x8xf32>
    %c2_86 = arith.constant 2 : index
    %c0_87 = arith.constant 0 : index
    %c0_88 = arith.constant 0 : index
    %141 = vector.load %arg7[%c2_86, %c0_87, %c0_88] : memref<4x32x8xbf16, #tpu.memory_space<vmem>>, vector<1x32x8xbf16>
    %142 = vector.shape_cast %141 : vector<1x32x8xbf16> to vector<32x8xbf16>
    %cst_89 = arith.constant dense<0.000000e+00> : vector<16x8xf32>
    %143 = tpu.matmul %28, %142, %cst_89 {dimension_numbers = #tpu.dot_dimension_numbers<[1], [0], [0], [1], [0, 0, 1, 1], [], []>} : vector<16x32xbf16>, vector<32x8xbf16>, vector<16x8xf32> -> vector<16x8xf32>
    %c2_90 = arith.constant 2 : index
    %c0_91 = arith.constant 0 : index
    %c0_92 = arith.constant 0 : index
    %144 = vector.load %arg10[%c2_90, %c0_91, %c0_92] : memref<4x1x8xf32, #tpu.memory_space<vmem>>, vector<1x1x8xf32>
    %145 = vector.shape_cast %144 : vector<1x1x8xf32> to vector<1x8xf32>
    %146 = vector.broadcast %145 : vector<1x8xf32> to vector<16x8xf32>
    %147 = arith.addf %143, %146 : vector<16x8xf32>
    %c2_93 = arith.constant 2 : index
    %c0_94 = arith.constant 0 : index
    %c0_95 = arith.constant 0 : index
    %148 = vector.load %arg8[%c2_93, %c0_94, %c0_95] : memref<4x32x8xbf16, #tpu.memory_space<vmem>>, vector<1x32x8xbf16>
    %149 = vector.shape_cast %148 : vector<1x32x8xbf16> to vector<32x8xbf16>
    %cst_96 = arith.constant dense<0.000000e+00> : vector<16x8xf32>
    %150 = tpu.matmul %28, %149, %cst_96 {dimension_numbers = #tpu.dot_dimension_numbers<[1], [0], [0], [1], [0, 0, 1, 1], [], []>} : vector<16x32xbf16>, vector<32x8xbf16>, vector<16x8xf32> -> vector<16x8xf32>
    %c2_97 = arith.constant 2 : index
    %c0_98 = arith.constant 0 : index
    %c0_99 = arith.constant 0 : index
    %151 = vector.load %arg11[%c2_97, %c0_98, %c0_99] : memref<4x1x8xf32, #tpu.memory_space<vmem>>, vector<1x1x8xf32>
    %152 = vector.shape_cast %151 : vector<1x1x8xf32> to vector<1x8xf32>
    %153 = vector.broadcast %152 : vector<1x8xf32> to vector<16x8xf32>
    %154 = arith.addf %150, %153 : vector<16x8xf32>
    %155 = vector.shape_cast %140 : vector<16x8xf32> to vector<2x8x8xf32>
    %156 = arith.truncf %155 : vector<2x8x8xf32> to vector<2x8x8xbf16>
    %157 = vector.shape_cast %147 : vector<16x8xf32> to vector<2x8x8xf32>
    %158 = arith.truncf %157 : vector<2x8x8xf32> to vector<2x8x8xbf16>
    %159 = vector.shape_cast %154 : vector<16x8xf32> to vector<2x8x8xf32>
    %160 = arith.truncf %159 : vector<2x8x8xf32> to vector<2x8x8xbf16>
    "tpu.trace_start"() <{level = 10 : i32, message = "bqd,bkd->bqk"}> : () -> ()
    %cst_100 = arith.constant dense<0.000000e+00> : vector<2x8x8xf32>
    %161 = tpu.matmul %156, %158, %cst_100 {dimension_numbers = #tpu.dot_dimension_numbers<[2], [2], [1], [1], [0, 0, 0, 1, 1, 1], [0], [0]>} : vector<2x8x8xbf16>, vector<2x8x8xbf16>, vector<2x8x8xf32> -> vector<2x8x8xf32>
    "tpu.trace_stop"() : () -> ()
    %cst_101 = arith.constant 0.353553385 : f32
    %162 = vector.broadcast %cst_101 : f32 to vector<2x8x8xf32>
    %163 = arith.mulf %161, %162 : vector<2x8x8xf32>
    %cst_102 = arith.constant 0.000000e+00 : f32
    %164 = vector.broadcast %cst_102 : f32 to vector<2x8x8xf32>
    %165 = arith.cmpf oeq, %2, %164 : vector<2x8x8xf32>
    %cst_103 = arith.constant -6.550000e+04 : f32
    %166 = vector.broadcast %cst_103 : f32 to vector<2x8x8xf32>
    %167 = arith.select %165, %166, %163 : vector<2x8x8xi1>, vector<2x8x8xf32>
    %cst_104 = arith.constant dense<0xFF800000> : vector<2x8xf32>
    %168 = vector.multi_reduction <maximumf>, %167, %cst_104 [2] : vector<2x8x8xf32> to vector<2x8xf32>
    %169 = vector.shape_cast %168 : vector<2x8xf32> to vector<2x8x1xf32>
    %170 = vector.broadcast %169 : vector<2x8x1xf32> to vector<2x8x8xf32>
    %171 = arith.subf %167, %170 : vector<2x8x8xf32>
    %172 = math.exp %171 : vector<2x8x8xf32>
    %cst_105 = arith.constant dense<0.000000e+00> : vector<2x8xf32>
    %173 = vector.multi_reduction <add>, %172, %cst_105 [2] : vector<2x8x8xf32> to vector<2x8xf32>
    %174 = vector.shape_cast %173 : vector<2x8xf32> to vector<2x8x1xf32>
    %175 = tpu.reciprocal %174 {approx = true} : vector<2x8x1xf32> -> vector<2x8x1xf32>
    %176 = vector.broadcast %175 : vector<2x8x1xf32> to vector<2x8x8xf32>
    %177 = arith.mulf %172, %176 : vector<2x8x8xf32>
    %178 = arith.truncf %177 : vector<2x8x8xf32> to vector<2x8x8xbf16>
    "tpu.trace_start"() <{level = 10 : i32, message = "bqk,bkd->bqd"}> : () -> ()
    %cst_106 = arith.constant dense<0.000000e+00> : vector<2x8x8xf32>
    %179 = tpu.matmul %178, %160, %cst_106 {dimension_numbers = #tpu.dot_dimension_numbers<[2], [1], [1], [2], [0, 0, 0, 1, 1, 2], [0], [0]>} : vector<2x8x8xbf16>, vector<2x8x8xbf16>, vector<2x8x8xf32> -> vector<2x8x8xf32>
    "tpu.trace_stop"() : () -> ()
    %180 = vector.shape_cast %179 : vector<2x8x8xf32> to vector<16x8xf32>
    %181 = arith.truncf %180 : vector<16x8xf32> to vector<16x8xbf16>
    %c2_107 = arith.constant 2 : index
    %c0_108 = arith.constant 0 : index
    %c0_109 = arith.constant 0 : index
    %182 = vector.load %arg12[%c2_107, %c0_108, %c0_109] : memref<4x8x32xbf16, #tpu.memory_space<vmem>>, vector<1x8x32xbf16>
    %183 = vector.shape_cast %182 : vector<1x8x32xbf16> to vector<8x32xbf16>
    %cst_110 = arith.constant dense<0.000000e+00> : vector<16x32xf32>
    %184 = tpu.matmul %181, %183, %cst_110 {dimension_numbers = #tpu.dot_dimension_numbers<[1], [0], [0], [1], [0, 0, 1, 1], [], []>} : vector<16x8xbf16>, vector<8x32xbf16>, vector<16x32xf32> -> vector<16x32xf32>
    %185 = arith.addf %133, %184 : vector<16x32xf32>
    %c3 = arith.constant 3 : index
    %c0_111 = arith.constant 0 : index
    %c0_112 = arith.constant 0 : index
    %186 = vector.load %arg6[%c3, %c0_111, %c0_112] : memref<4x32x8xbf16, #tpu.memory_space<vmem>>, vector<1x32x8xbf16>
    %187 = vector.shape_cast %186 : vector<1x32x8xbf16> to vector<32x8xbf16>
    %cst_113 = arith.constant dense<0.000000e+00> : vector<16x8xf32>
    %188 = tpu.matmul %28, %187, %cst_113 {dimension_numbers = #tpu.dot_dimension_numbers<[1], [0], [0], [1], [0, 0, 1, 1], [], []>} : vector<16x32xbf16>, vector<32x8xbf16>, vector<16x8xf32> -> vector<16x8xf32>
    %c3_114 = arith.constant 3 : index
    %c0_115 = arith.constant 0 : index
    %c0_116 = arith.constant 0 : index
    %189 = vector.load %arg9[%c3_114, %c0_115, %c0_116] : memref<4x1x8xf32, #tpu.memory_space<vmem>>, vector<1x1x8xf32>
    %190 = vector.shape_cast %189 : vector<1x1x8xf32> to vector<1x8xf32>
    %191 = vector.broadcast %190 : vector<1x8xf32> to vector<16x8xf32>
    %192 = arith.addf %188, %191 : vector<16x8xf32>
    %c3_117 = arith.constant 3 : index
    %c0_118 = arith.constant 0 : index
    %c0_119 = arith.constant 0 : index
    %193 = vector.load %arg7[%c3_117, %c0_118, %c0_119] : memref<4x32x8xbf16, #tpu.memory_space<vmem>>, vector<1x32x8xbf16>
    %194 = vector.shape_cast %193 : vector<1x32x8xbf16> to vector<32x8xbf16>
    %cst_120 = arith.constant dense<0.000000e+00> : vector<16x8xf32>
    %195 = tpu.matmul %28, %194, %cst_120 {dimension_numbers = #tpu.dot_dimension_numbers<[1], [0], [0], [1], [0, 0, 1, 1], [], []>} : vector<16x32xbf16>, vector<32x8xbf16>, vector<16x8xf32> -> vector<16x8xf32>
    %c3_121 = arith.constant 3 : index
    %c0_122 = arith.constant 0 : index
    %c0_123 = arith.constant 0 : index
    %196 = vector.load %arg10[%c3_121, %c0_122, %c0_123] : memref<4x1x8xf32, #tpu.memory_space<vmem>>, vector<1x1x8xf32>
    %197 = vector.shape_cast %196 : vector<1x1x8xf32> to vector<1x8xf32>
    %198 = vector.broadcast %197 : vector<1x8xf32> to vector<16x8xf32>
    %199 = arith.addf %195, %198 : vector<16x8xf32>
    %c3_124 = arith.constant 3 : index
    %c0_125 = arith.constant 0 : index
    %c0_126 = arith.constant 0 : index
    %200 = vector.load %arg8[%c3_124, %c0_125, %c0_126] : memref<4x32x8xbf16, #tpu.memory_space<vmem>>, vector<1x32x8xbf16>
    %201 = vector.shape_cast %200 : vector<1x32x8xbf16> to vector<32x8xbf16>
    %cst_127 = arith.constant dense<0.000000e+00> : vector<16x8xf32>
    %202 = tpu.matmul %28, %201, %cst_127 {dimension_numbers = #tpu.dot_dimension_numbers<[1], [0], [0], [1], [0, 0, 1, 1], [], []>} : vector<16x32xbf16>, vector<32x8xbf16>, vector<16x8xf32> -> vector<16x8xf32>
    %c3_128 = arith.constant 3 : index
    %c0_129 = arith.constant 0 : index
    %c0_130 = arith.constant 0 : index
    %203 = vector.load %arg11[%c3_128, %c0_129, %c0_130] : memref<4x1x8xf32, #tpu.memory_space<vmem>>, vector<1x1x8xf32>
    %204 = vector.shape_cast %203 : vector<1x1x8xf32> to vector<1x8xf32>
    %205 = vector.broadcast %204 : vector<1x8xf32> to vector<16x8xf32>
    %206 = arith.addf %202, %205 : vector<16x8xf32>
    %207 = vector.shape_cast %192 : vector<16x8xf32> to vector<2x8x8xf32>
    %208 = arith.truncf %207 : vector<2x8x8xf32> to vector<2x8x8xbf16>
    %209 = vector.shape_cast %199 : vector<16x8xf32> to vector<2x8x8xf32>
    %210 = arith.truncf %209 : vector<2x8x8xf32> to vector<2x8x8xbf16>
    %211 = vector.shape_cast %206 : vector<16x8xf32> to vector<2x8x8xf32>
    %212 = arith.truncf %211 : vector<2x8x8xf32> to vector<2x8x8xbf16>
    "tpu.trace_start"() <{level = 10 : i32, message = "bqd,bkd->bqk"}> : () -> ()
    %cst_131 = arith.constant dense<0.000000e+00> : vector<2x8x8xf32>
    %213 = tpu.matmul %208, %210, %cst_131 {dimension_numbers = #tpu.dot_dimension_numbers<[2], [2], [1], [1], [0, 0, 0, 1, 1, 1], [0], [0]>} : vector<2x8x8xbf16>, vector<2x8x8xbf16>, vector<2x8x8xf32> -> vector<2x8x8xf32>
    "tpu.trace_stop"() : () -> ()
    %cst_132 = arith.constant 0.353553385 : f32
    %214 = vector.broadcast %cst_132 : f32 to vector<2x8x8xf32>
    %215 = arith.mulf %213, %214 : vector<2x8x8xf32>
    %cst_133 = arith.constant 0.000000e+00 : f32
    %216 = vector.broadcast %cst_133 : f32 to vector<2x8x8xf32>
    %217 = arith.cmpf oeq, %2, %216 : vector<2x8x8xf32>
    %cst_134 = arith.constant -6.550000e+04 : f32
    %218 = vector.broadcast %cst_134 : f32 to vector<2x8x8xf32>
    %219 = arith.select %217, %218, %215 : vector<2x8x8xi1>, vector<2x8x8xf32>
    %cst_135 = arith.constant dense<0xFF800000> : vector<2x8xf32>
    %220 = vector.multi_reduction <maximumf>, %219, %cst_135 [2] : vector<2x8x8xf32> to vector<2x8xf32>
    %221 = vector.shape_cast %220 : vector<2x8xf32> to vector<2x8x1xf32>
    %222 = vector.broadcast %221 : vector<2x8x1xf32> to vector<2x8x8xf32>
    %223 = arith.subf %219, %222 : vector<2x8x8xf32>
    %224 = math.exp %223 : vector<2x8x8xf32>
    %cst_136 = arith.constant dense<0.000000e+00> : vector<2x8xf32>
    %225 = vector.multi_reduction <add>, %224, %cst_136 [2] : vector<2x8x8xf32> to vector<2x8xf32>
    %226 = vector.shape_cast %225 : vector<2x8xf32> to vector<2x8x1xf32>
    %227 = tpu.reciprocal %226 {approx = true} : vector<2x8x1xf32> -> vector<2x8x1xf32>
    %228 = vector.broadcast %227 : vector<2x8x1xf32> to vector<2x8x8xf32>
    %229 = arith.mulf %224, %228 : vector<2x8x8xf32>
    %230 = arith.truncf %229 : vector<2x8x8xf32> to vector<2x8x8xbf16>
    "tpu.trace_start"() <{level = 10 : i32, message = "bqk,bkd->bqd"}> : () -> ()
    %cst_137 = arith.constant dense<0.000000e+00> : vector<2x8x8xf32>
    %231 = tpu.matmul %230, %212, %cst_137 {dimension_numbers = #tpu.dot_dimension_numbers<[2], [1], [1], [2], [0, 0, 0, 1, 1, 2], [0], [0]>} : vector<2x8x8xbf16>, vector<2x8x8xbf16>, vector<2x8x8xf32> -> vector<2x8x8xf32>
    "tpu.trace_stop"() : () -> ()
    %232 = vector.shape_cast %231 : vector<2x8x8xf32> to vector<16x8xf32>
    %233 = arith.truncf %232 : vector<16x8xf32> to vector<16x8xbf16>
    %c3_138 = arith.constant 3 : index
    %c0_139 = arith.constant 0 : index
    %c0_140 = arith.constant 0 : index
    %234 = vector.load %arg12[%c3_138, %c0_139, %c0_140] : memref<4x8x32xbf16, #tpu.memory_space<vmem>>, vector<1x8x32xbf16>
    %235 = vector.shape_cast %234 : vector<1x8x32xbf16> to vector<8x32xbf16>
    %cst_141 = arith.constant dense<0.000000e+00> : vector<16x32xf32>
    %236 = tpu.matmul %233, %235, %cst_141 {dimension_numbers = #tpu.dot_dimension_numbers<[1], [0], [0], [1], [0, 0, 1, 1], [], []>} : vector<16x8xbf16>, vector<8x32xbf16>, vector<16x32xf32> -> vector<16x32xf32>
    %237 = arith.addf %185, %236 : vector<16x32xf32>
    %c0_142 = arith.constant 0 : index
    %c0_143 = arith.constant 0 : index
    %238 = vector.load %arg13[%c0_142, %c0_143] : memref<1x32xf32, #tpu.memory_space<vmem>>, vector<1x32xf32>
    %239 = vector.broadcast %238 : vector<1x32xf32> to vector<16x32xf32>
    %240 = arith.addf %237, %239 : vector<16x32xf32>
    %241 = arith.addf %1, %240 : vector<16x32xf32>
    %c1_144 = arith.constant 1 : index
    %c0_145 = arith.constant 0 : index
    %242 = vector.load %arg22[%c1_144, %c0_145] : memref<3x32xf32, #tpu.memory_space<vmem>>, vector<1x32xf32>
    %c1_146 = arith.constant 1 : index
    %c0_147 = arith.constant 0 : index
    %243 = vector.load %arg23[%c1_146, %c0_147] : memref<3x32xf32, #tpu.memory_space<vmem>>, vector<1x32xf32>
    %cst_148 = arith.constant dense<0.000000e+00> : vector<16xf32>
    %244 = vector.multi_reduction <add>, %241, %cst_148 [1] : vector<16x32xf32> to vector<16xf32>
    %245 = vector.shape_cast %244 : vector<16xf32> to vector<16x1xf32>
    %cst_149 = arith.constant 3.200000e+01 : f32
    %246 = vector.broadcast %cst_149 : f32 to vector<16x1xf32>
    %247 = arith.divf %245, %246 : vector<16x1xf32>
    %248 = vector.broadcast %247 : vector<16x1xf32> to vector<16x32xf32>
    %249 = arith.subf %241, %248 : vector<16x32xf32>
    %250 = arith.mulf %249, %249 : vector<16x32xf32>
    %cst_150 = arith.constant dense<0.000000e+00> : vector<16xf32>
    %251 = vector.multi_reduction <add>, %250, %cst_150 [1] : vector<16x32xf32> to vector<16xf32>
    %252 = vector.shape_cast %251 : vector<16xf32> to vector<16x1xf32>
    %cst_151 = arith.constant 3.200000e+01 : f32
    %253 = vector.broadcast %cst_151 : f32 to vector<16x1xf32>
    %254 = arith.divf %252, %253 : vector<16x1xf32>
    %255 = vector.broadcast %247 : vector<16x1xf32> to vector<16x32xf32>
    %256 = arith.subf %241, %255 : vector<16x32xf32>
    %cst_152 = arith.constant 9.99999974E-6 : f32
    %257 = vector.broadcast %cst_152 : f32 to vector<16x1xf32>
    %258 = arith.addf %254, %257 : vector<16x1xf32>
    %259 = math.rsqrt %258 : vector<16x1xf32>
    %260 = vector.broadcast %259 : vector<16x1xf32> to vector<16x32xf32>
    %261 = arith.mulf %256, %260 : vector<16x32xf32>
    %262 = vector.broadcast %242 : vector<1x32xf32> to vector<16x32xf32>
    %263 = arith.mulf %261, %262 : vector<16x32xf32>
    %264 = vector.broadcast %243 : vector<1x32xf32> to vector<16x32xf32>
    %265 = arith.addf %263, %264 : vector<16x32xf32>
    %266 = arith.truncf %265 : vector<16x32xf32> to vector<16x32xbf16>
    %cst_153 = arith.constant 0.000000e+00 : f32
    %267 = vector.broadcast %cst_153 : f32 to vector<16x32xf32>
    %c0_154 = arith.constant 0 : index
    %c0_155 = arith.constant 0 : index
    %c0_156 = arith.constant 0 : index
    %268 = vector.load %arg14[%c0_154, %c0_155, %c0_156] : memref<4x32x8xbf16, #tpu.memory_space<vmem>>, vector<1x32x8xbf16>
    %269 = vector.shape_cast %268 : vector<1x32x8xbf16> to vector<32x8xbf16>
    %cst_157 = arith.constant dense<0.000000e+00> : vector<16x8xf32>
    %270 = tpu.matmul %266, %269, %cst_157 {dimension_numbers = #tpu.dot_dimension_numbers<[1], [0], [0], [1], [0, 0, 1, 1], [], []>} : vector<16x32xbf16>, vector<32x8xbf16>, vector<16x8xf32> -> vector<16x8xf32>
    %c0_158 = arith.constant 0 : index
    %c0_159 = arith.constant 0 : index
    %c0_160 = arith.constant 0 : index
    %271 = vector.load %arg15[%c0_158, %c0_159, %c0_160] : memref<4x1x8xf32, #tpu.memory_space<vmem>>, vector<1x1x8xf32>
    %272 = vector.shape_cast %271 : vector<1x1x8xf32> to vector<1x8xf32>
    %273 = vector.broadcast %272 : vector<1x8xf32> to vector<16x8xf32>
    %274 = arith.addf %270, %273 : vector<16x8xf32>
    %c0_161 = arith.constant 0 : index
    %c0_162 = arith.constant 0 : index
    %c0_163 = arith.constant 0 : index
    %275 = vector.load %arg4[%c0_161, %c0_162, %c0_163] : memref<4x16x8xbf16, #tpu.memory_space<vmem>>, vector<1x16x8xbf16>
    %276 = vector.shape_cast %275 : vector<1x16x8xbf16> to vector<16x8xbf16>
    %c0_164 = arith.constant 0 : index
    %c0_165 = arith.constant 0 : index
    %c0_166 = arith.constant 0 : index
    %277 = vector.load %arg5[%c0_164, %c0_165, %c0_166] : memref<4x16x8xbf16, #tpu.memory_space<vmem>>, vector<1x16x8xbf16>
    %278 = vector.shape_cast %277 : vector<1x16x8xbf16> to vector<16x8xbf16>
    %279 = arith.truncf %274 : vector<16x8xf32> to vector<16x8xbf16>
    %cst_167 = arith.constant dense<0.000000e+00> : vector<16x16xf32>
    %280 = tpu.matmul %279, %276, %cst_167 {dimension_numbers = #tpu.dot_dimension_numbers<[1], [1], [0], [0], [0, 0, 1, 0], [], []>} : vector<16x8xbf16>, vector<16x8xbf16>, vector<16x16xf32> -> vector<16x16xf32>
    %cst_168 = arith.constant 0.353553385 : f32
    %281 = vector.broadcast %cst_168 : f32 to vector<16x16xf32>
    %282 = arith.mulf %280, %281 : vector<16x16xf32>
    %cst_169 = arith.constant 0.000000e+00 : f32
    %283 = vector.broadcast %cst_169 : f32 to vector<2x1x16xf32>
    %284 = arith.cmpf oeq, %3, %283 : vector<2x1x16xf32>
    %285 = vector.shape_cast %282 : vector<16x16xf32> to vector<2x8x16xf32>
    %cst_170 = arith.constant -6.550000e+04 : f32
    %286 = vector.shape_cast %284 : vector<2x1x16xi1> to vector<2x1x16xi1>
    %287 = vector.broadcast %286 : vector<2x1x16xi1> to vector<2x8x16xi1>
    %288 = vector.broadcast %cst_170 : f32 to vector<2x8x16xf32>
    %289 = arith.select %287, %288, %285 : vector<2x8x16xi1>, vector<2x8x16xf32>
    %cst_171 = arith.constant dense<0xFF800000> : vector<2x8xf32>
    %290 = vector.multi_reduction <maximumf>, %289, %cst_171 [2] : vector<2x8x16xf32> to vector<2x8xf32>
    %291 = vector.shape_cast %290 : vector<2x8xf32> to vector<2x8x1xf32>
    %292 = vector.broadcast %291 : vector<2x8x1xf32> to vector<2x8x16xf32>
    %293 = arith.subf %289, %292 : vector<2x8x16xf32>
    %294 = math.exp %293 : vector<2x8x16xf32>
    %cst_172 = arith.constant dense<0.000000e+00> : vector<2x8xf32>
    %295 = vector.multi_reduction <add>, %294, %cst_172 [2] : vector<2x8x16xf32> to vector<2x8xf32>
    %296 = vector.shape_cast %295 : vector<2x8xf32> to vector<2x8x1xf32>
    %297 = tpu.reciprocal %296 {approx = true} : vector<2x8x1xf32> -> vector<2x8x1xf32>
    %298 = vector.broadcast %297 : vector<2x8x1xf32> to vector<2x8x16xf32>
    %299 = arith.mulf %294, %298 : vector<2x8x16xf32>
    %300 = vector.shape_cast %299 : vector<2x8x16xf32> to vector<16x16xf32>
    %301 = arith.truncf %300 : vector<16x16xf32> to vector<16x16xbf16>
    %cst_173 = arith.constant dense<0.000000e+00> : vector<16x8xf32>
    %302 = tpu.matmul %301, %278, %cst_173 {dimension_numbers = #tpu.dot_dimension_numbers<[1], [0], [0], [1], [0, 0, 1, 1], [], []>} : vector<16x16xbf16>, vector<16x8xbf16>, vector<16x8xf32> -> vector<16x8xf32>
    %303 = arith.truncf %302 : vector<16x8xf32> to vector<16x8xbf16>
    %c0_174 = arith.constant 0 : index
    %c0_175 = arith.constant 0 : index
    %c0_176 = arith.constant 0 : index
    %304 = vector.load %arg16[%c0_174, %c0_175, %c0_176] : memref<4x8x32xbf16, #tpu.memory_space<vmem>>, vector<1x8x32xbf16>
    %305 = vector.shape_cast %304 : vector<1x8x32xbf16> to vector<8x32xbf16>
    %cst_177 = arith.constant dense<0.000000e+00> : vector<16x32xf32>
    %306 = tpu.matmul %303, %305, %cst_177 {dimension_numbers = #tpu.dot_dimension_numbers<[1], [0], [0], [1], [0, 0, 1, 1], [], []>} : vector<16x8xbf16>, vector<8x32xbf16>, vector<16x32xf32> -> vector<16x32xf32>
    %307 = arith.addf %267, %306 : vector<16x32xf32>
    %c1_178 = arith.constant 1 : index
    %c0_179 = arith.constant 0 : index
    %c0_180 = arith.constant 0 : index
    %308 = vector.load %arg14[%c1_178, %c0_179, %c0_180] : memref<4x32x8xbf16, #tpu.memory_space<vmem>>, vector<1x32x8xbf16>
    %309 = vector.shape_cast %308 : vector<1x32x8xbf16> to vector<32x8xbf16>
    %cst_181 = arith.constant dense<0.000000e+00> : vector<16x8xf32>
    %310 = tpu.matmul %266, %309, %cst_181 {dimension_numbers = #tpu.dot_dimension_numbers<[1], [0], [0], [1], [0, 0, 1, 1], [], []>} : vector<16x32xbf16>, vector<32x8xbf16>, vector<16x8xf32> -> vector<16x8xf32>
    %c1_182 = arith.constant 1 : index
    %c0_183 = arith.constant 0 : index
    %c0_184 = arith.constant 0 : index
    %311 = vector.load %arg15[%c1_182, %c0_183, %c0_184] : memref<4x1x8xf32, #tpu.memory_space<vmem>>, vector<1x1x8xf32>
    %312 = vector.shape_cast %311 : vector<1x1x8xf32> to vector<1x8xf32>
    %313 = vector.broadcast %312 : vector<1x8xf32> to vector<16x8xf32>
    %314 = arith.addf %310, %313 : vector<16x8xf32>
    %c1_185 = arith.constant 1 : index
    %c0_186 = arith.constant 0 : index
    %c0_187 = arith.constant 0 : index
    %315 = vector.load %arg4[%c1_185, %c0_186, %c0_187] : memref<4x16x8xbf16, #tpu.memory_space<vmem>>, vector<1x16x8xbf16>
    %316 = vector.shape_cast %315 : vector<1x16x8xbf16> to vector<16x8xbf16>
    %c1_188 = arith.constant 1 : index
    %c0_189 = arith.constant 0 : index
    %c0_190 = arith.constant 0 : index
    %317 = vector.load %arg5[%c1_188, %c0_189, %c0_190] : memref<4x16x8xbf16, #tpu.memory_space<vmem>>, vector<1x16x8xbf16>
    %318 = vector.shape_cast %317 : vector<1x16x8xbf16> to vector<16x8xbf16>
    %319 = arith.truncf %314 : vector<16x8xf32> to vector<16x8xbf16>
    %cst_191 = arith.constant dense<0.000000e+00> : vector<16x16xf32>
    %320 = tpu.matmul %319, %316, %cst_191 {dimension_numbers = #tpu.dot_dimension_numbers<[1], [1], [0], [0], [0, 0, 1, 0], [], []>} : vector<16x8xbf16>, vector<16x8xbf16>, vector<16x16xf32> -> vector<16x16xf32>
    %cst_192 = arith.constant 0.353553385 : f32
    %321 = vector.broadcast %cst_192 : f32 to vector<16x16xf32>
    %322 = arith.mulf %320, %321 : vector<16x16xf32>
    %cst_193 = arith.constant 0.000000e+00 : f32
    %323 = vector.broadcast %cst_193 : f32 to vector<2x1x16xf32>
    %324 = arith.cmpf oeq, %3, %323 : vector<2x1x16xf32>
    %325 = vector.shape_cast %322 : vector<16x16xf32> to vector<2x8x16xf32>
    %cst_194 = arith.constant -6.550000e+04 : f32
    %326 = vector.shape_cast %324 : vector<2x1x16xi1> to vector<2x1x16xi1>
    %327 = vector.broadcast %326 : vector<2x1x16xi1> to vector<2x8x16xi1>
    %328 = vector.broadcast %cst_194 : f32 to vector<2x8x16xf32>
    %329 = arith.select %327, %328, %325 : vector<2x8x16xi1>, vector<2x8x16xf32>
    %cst_195 = arith.constant dense<0xFF800000> : vector<2x8xf32>
    %330 = vector.multi_reduction <maximumf>, %329, %cst_195 [2] : vector<2x8x16xf32> to vector<2x8xf32>
    %331 = vector.shape_cast %330 : vector<2x8xf32> to vector<2x8x1xf32>
    %332 = vector.broadcast %331 : vector<2x8x1xf32> to vector<2x8x16xf32>
    %333 = arith.subf %329, %332 : vector<2x8x16xf32>
    %334 = math.exp %333 : vector<2x8x16xf32>
    %cst_196 = arith.constant dense<0.000000e+00> : vector<2x8xf32>
    %335 = vector.multi_reduction <add>, %334, %cst_196 [2] : vector<2x8x16xf32> to vector<2x8xf32>
    %336 = vector.shape_cast %335 : vector<2x8xf32> to vector<2x8x1xf32>
    %337 = tpu.reciprocal %336 {approx = true} : vector<2x8x1xf32> -> vector<2x8x1xf32>
    %338 = vector.broadcast %337 : vector<2x8x1xf32> to vector<2x8x16xf32>
    %339 = arith.mulf %334, %338 : vector<2x8x16xf32>
    %340 = vector.shape_cast %339 : vector<2x8x16xf32> to vector<16x16xf32>
    %341 = arith.truncf %340 : vector<16x16xf32> to vector<16x16xbf16>
    %cst_197 = arith.constant dense<0.000000e+00> : vector<16x8xf32>
    %342 = tpu.matmul %341, %318, %cst_197 {dimension_numbers = #tpu.dot_dimension_numbers<[1], [0], [0], [1], [0, 0, 1, 1], [], []>} : vector<16x16xbf16>, vector<16x8xbf16>, vector<16x8xf32> -> vector<16x8xf32>
    %343 = arith.truncf %342 : vector<16x8xf32> to vector<16x8xbf16>
    %c1_198 = arith.constant 1 : index
    %c0_199 = arith.constant 0 : index
    %c0_200 = arith.constant 0 : index
    %344 = vector.load %arg16[%c1_198, %c0_199, %c0_200] : memref<4x8x32xbf16, #tpu.memory_space<vmem>>, vector<1x8x32xbf16>
    %345 = vector.shape_cast %344 : vector<1x8x32xbf16> to vector<8x32xbf16>
    %cst_201 = arith.constant dense<0.000000e+00> : vector<16x32xf32>
    %346 = tpu.matmul %343, %345, %cst_201 {dimension_numbers = #tpu.dot_dimension_numbers<[1], [0], [0], [1], [0, 0, 1, 1], [], []>} : vector<16x8xbf16>, vector<8x32xbf16>, vector<16x32xf32> -> vector<16x32xf32>
    %347 = arith.addf %307, %346 : vector<16x32xf32>
    %c2_202 = arith.constant 2 : index
    %c0_203 = arith.constant 0 : index
    %c0_204 = arith.constant 0 : index
    %348 = vector.load %arg14[%c2_202, %c0_203, %c0_204] : memref<4x32x8xbf16, #tpu.memory_space<vmem>>, vector<1x32x8xbf16>
    %349 = vector.shape_cast %348 : vector<1x32x8xbf16> to vector<32x8xbf16>
    %cst_205 = arith.constant dense<0.000000e+00> : vector<16x8xf32>
    %350 = tpu.matmul %266, %349, %cst_205 {dimension_numbers = #tpu.dot_dimension_numbers<[1], [0], [0], [1], [0, 0, 1, 1], [], []>} : vector<16x32xbf16>, vector<32x8xbf16>, vector<16x8xf32> -> vector<16x8xf32>
    %c2_206 = arith.constant 2 : index
    %c0_207 = arith.constant 0 : index
    %c0_208 = arith.constant 0 : index
    %351 = vector.load %arg15[%c2_206, %c0_207, %c0_208] : memref<4x1x8xf32, #tpu.memory_space<vmem>>, vector<1x1x8xf32>
    %352 = vector.shape_cast %351 : vector<1x1x8xf32> to vector<1x8xf32>
    %353 = vector.broadcast %352 : vector<1x8xf32> to vector<16x8xf32>
    %354 = arith.addf %350, %353 : vector<16x8xf32>
    %c2_209 = arith.constant 2 : index
    %c0_210 = arith.constant 0 : index
    %c0_211 = arith.constant 0 : index
    %355 = vector.load %arg4[%c2_209, %c0_210, %c0_211] : memref<4x16x8xbf16, #tpu.memory_space<vmem>>, vector<1x16x8xbf16>
    %356 = vector.shape_cast %355 : vector<1x16x8xbf16> to vector<16x8xbf16>
    %c2_212 = arith.constant 2 : index
    %c0_213 = arith.constant 0 : index
    %c0_214 = arith.constant 0 : index
    %357 = vector.load %arg5[%c2_212, %c0_213, %c0_214] : memref<4x16x8xbf16, #tpu.memory_space<vmem>>, vector<1x16x8xbf16>
    %358 = vector.shape_cast %357 : vector<1x16x8xbf16> to vector<16x8xbf16>
    %359 = arith.truncf %354 : vector<16x8xf32> to vector<16x8xbf16>
    %cst_215 = arith.constant dense<0.000000e+00> : vector<16x16xf32>
    %360 = tpu.matmul %359, %356, %cst_215 {dimension_numbers = #tpu.dot_dimension_numbers<[1], [1], [0], [0], [0, 0, 1, 0], [], []>} : vector<16x8xbf16>, vector<16x8xbf16>, vector<16x16xf32> -> vector<16x16xf32>
    %cst_216 = arith.constant 0.353553385 : f32
    %361 = vector.broadcast %cst_216 : f32 to vector<16x16xf32>
    %362 = arith.mulf %360, %361 : vector<16x16xf32>
    %cst_217 = arith.constant 0.000000e+00 : f32
    %363 = vector.broadcast %cst_217 : f32 to vector<2x1x16xf32>
    %364 = arith.cmpf oeq, %3, %363 : vector<2x1x16xf32>
    %365 = vector.shape_cast %362 : vector<16x16xf32> to vector<2x8x16xf32>
    %cst_218 = arith.constant -6.550000e+04 : f32
    %366 = vector.shape_cast %364 : vector<2x1x16xi1> to vector<2x1x16xi1>
    %367 = vector.broadcast %366 : vector<2x1x16xi1> to vector<2x8x16xi1>
    %368 = vector.broadcast %cst_218 : f32 to vector<2x8x16xf32>
    %369 = arith.select %367, %368, %365 : vector<2x8x16xi1>, vector<2x8x16xf32>
    %cst_219 = arith.constant dense<0xFF800000> : vector<2x8xf32>
    %370 = vector.multi_reduction <maximumf>, %369, %cst_219 [2] : vector<2x8x16xf32> to vector<2x8xf32>
    %371 = vector.shape_cast %370 : vector<2x8xf32> to vector<2x8x1xf32>
    %372 = vector.broadcast %371 : vector<2x8x1xf32> to vector<2x8x16xf32>
    %373 = arith.subf %369, %372 : vector<2x8x16xf32>
    %374 = math.exp %373 : vector<2x8x16xf32>
    %cst_220 = arith.constant dense<0.000000e+00> : vector<2x8xf32>
    %375 = vector.multi_reduction <add>, %374, %cst_220 [2] : vector<2x8x16xf32> to vector<2x8xf32>
    %376 = vector.shape_cast %375 : vector<2x8xf32> to vector<2x8x1xf32>
    %377 = tpu.reciprocal %376 {approx = true} : vector<2x8x1xf32> -> vector<2x8x1xf32>
    %378 = vector.broadcast %377 : vector<2x8x1xf32> to vector<2x8x16xf32>
    %379 = arith.mulf %374, %378 : vector<2x8x16xf32>
    %380 = vector.shape_cast %379 : vector<2x8x16xf32> to vector<16x16xf32>
    %381 = arith.truncf %380 : vector<16x16xf32> to vector<16x16xbf16>
    %cst_221 = arith.constant dense<0.000000e+00> : vector<16x8xf32>
    %382 = tpu.matmul %381, %358, %cst_221 {dimension_numbers = #tpu.dot_dimension_numbers<[1], [0], [0], [1], [0, 0, 1, 1], [], []>} : vector<16x16xbf16>, vector<16x8xbf16>, vector<16x8xf32> -> vector<16x8xf32>
    %383 = arith.truncf %382 : vector<16x8xf32> to vector<16x8xbf16>
    %c2_222 = arith.constant 2 : index
    %c0_223 = arith.constant 0 : index
    %c0_224 = arith.constant 0 : index
    %384 = vector.load %arg16[%c2_222, %c0_223, %c0_224] : memref<4x8x32xbf16, #tpu.memory_space<vmem>>, vector<1x8x32xbf16>
    %385 = vector.shape_cast %384 : vector<1x8x32xbf16> to vector<8x32xbf16>
    %cst_225 = arith.constant dense<0.000000e+00> : vector<16x32xf32>
    %386 = tpu.matmul %383, %385, %cst_225 {dimension_numbers = #tpu.dot_dimension_numbers<[1], [0], [0], [1], [0, 0, 1, 1], [], []>} : vector<16x8xbf16>, vector<8x32xbf16>, vector<16x32xf32> -> vector<16x32xf32>
    %387 = arith.addf %347, %386 : vector<16x32xf32>
    %c3_226 = arith.constant 3 : index
    %c0_227 = arith.constant 0 : index
    %c0_228 = arith.constant 0 : index
    %388 = vector.load %arg14[%c3_226, %c0_227, %c0_228] : memref<4x32x8xbf16, #tpu.memory_space<vmem>>, vector<1x32x8xbf16>
    %389 = vector.shape_cast %388 : vector<1x32x8xbf16> to vector<32x8xbf16>
    %cst_229 = arith.constant dense<0.000000e+00> : vector<16x8xf32>
    %390 = tpu.matmul %266, %389, %cst_229 {dimension_numbers = #tpu.dot_dimension_numbers<[1], [0], [0], [1], [0, 0, 1, 1], [], []>} : vector<16x32xbf16>, vector<32x8xbf16>, vector<16x8xf32> -> vector<16x8xf32>
    %c3_230 = arith.constant 3 : index
    %c0_231 = arith.constant 0 : index
    %c0_232 = arith.constant 0 : index
    %391 = vector.load %arg15[%c3_230, %c0_231, %c0_232] : memref<4x1x8xf32, #tpu.memory_space<vmem>>, vector<1x1x8xf32>
    %392 = vector.shape_cast %391 : vector<1x1x8xf32> to vector<1x8xf32>
    %393 = vector.broadcast %392 : vector<1x8xf32> to vector<16x8xf32>
    %394 = arith.addf %390, %393 : vector<16x8xf32>
    %c3_233 = arith.constant 3 : index
    %c0_234 = arith.constant 0 : index
    %c0_235 = arith.constant 0 : index
    %395 = vector.load %arg4[%c3_233, %c0_234, %c0_235] : memref<4x16x8xbf16, #tpu.memory_space<vmem>>, vector<1x16x8xbf16>
    %396 = vector.shape_cast %395 : vector<1x16x8xbf16> to vector<16x8xbf16>
    %c3_236 = arith.constant 3 : index
    %c0_237 = arith.constant 0 : index
    %c0_238 = arith.constant 0 : index
    %397 = vector.load %arg5[%c3_236, %c0_237, %c0_238] : memref<4x16x8xbf16, #tpu.memory_space<vmem>>, vector<1x16x8xbf16>
    %398 = vector.shape_cast %397 : vector<1x16x8xbf16> to vector<16x8xbf16>
    %399 = arith.truncf %394 : vector<16x8xf32> to vector<16x8xbf16>
    %cst_239 = arith.constant dense<0.000000e+00> : vector<16x16xf32>
    %400 = tpu.matmul %399, %396, %cst_239 {dimension_numbers = #tpu.dot_dimension_numbers<[1], [1], [0], [0], [0, 0, 1, 0], [], []>} : vector<16x8xbf16>, vector<16x8xbf16>, vector<16x16xf32> -> vector<16x16xf32>
    %cst_240 = arith.constant 0.353553385 : f32
    %401 = vector.broadcast %cst_240 : f32 to vector<16x16xf32>
    %402 = arith.mulf %400, %401 : vector<16x16xf32>
    %cst_241 = arith.constant 0.000000e+00 : f32
    %403 = vector.broadcast %cst_241 : f32 to vector<2x1x16xf32>
    %404 = arith.cmpf oeq, %3, %403 : vector<2x1x16xf32>
    %405 = vector.shape_cast %402 : vector<16x16xf32> to vector<2x8x16xf32>
    %cst_242 = arith.constant -6.550000e+04 : f32
    %406 = vector.shape_cast %404 : vector<2x1x16xi1> to vector<2x1x16xi1>
    %407 = vector.broadcast %406 : vector<2x1x16xi1> to vector<2x8x16xi1>
    %408 = vector.broadcast %cst_242 : f32 to vector<2x8x16xf32>
    %409 = arith.select %407, %408, %405 : vector<2x8x16xi1>, vector<2x8x16xf32>
    %cst_243 = arith.constant dense<0xFF800000> : vector<2x8xf32>
    %410 = vector.multi_reduction <maximumf>, %409, %cst_243 [2] : vector<2x8x16xf32> to vector<2x8xf32>
    %411 = vector.shape_cast %410 : vector<2x8xf32> to vector<2x8x1xf32>
    %412 = vector.broadcast %411 : vector<2x8x1xf32> to vector<2x8x16xf32>
    %413 = arith.subf %409, %412 : vector<2x8x16xf32>
    %414 = math.exp %413 : vector<2x8x16xf32>
    %cst_244 = arith.constant dense<0.000000e+00> : vector<2x8xf32>
    %415 = vector.multi_reduction <add>, %414, %cst_244 [2] : vector<2x8x16xf32> to vector<2x8xf32>
    %416 = vector.shape_cast %415 : vector<2x8xf32> to vector<2x8x1xf32>
    %417 = tpu.reciprocal %416 {approx = true} : vector<2x8x1xf32> -> vector<2x8x1xf32>
    %418 = vector.broadcast %417 : vector<2x8x1xf32> to vector<2x8x16xf32>
    %419 = arith.mulf %414, %418 : vector<2x8x16xf32>
    %420 = vector.shape_cast %419 : vector<2x8x16xf32> to vector<16x16xf32>
    %421 = arith.truncf %420 : vector<16x16xf32> to vector<16x16xbf16>
    %cst_245 = arith.constant dense<0.000000e+00> : vector<16x8xf32>
    %422 = tpu.matmul %421, %398, %cst_245 {dimension_numbers = #tpu.dot_dimension_numbers<[1], [0], [0], [1], [0, 0, 1, 1], [], []>} : vector<16x16xbf16>, vector<16x8xbf16>, vector<16x8xf32> -> vector<16x8xf32>
    %423 = arith.truncf %422 : vector<16x8xf32> to vector<16x8xbf16>
    %c3_246 = arith.constant 3 : index
    %c0_247 = arith.constant 0 : index
    %c0_248 = arith.constant 0 : index
    %424 = vector.load %arg16[%c3_246, %c0_247, %c0_248] : memref<4x8x32xbf16, #tpu.memory_space<vmem>>, vector<1x8x32xbf16>
    %425 = vector.shape_cast %424 : vector<1x8x32xbf16> to vector<8x32xbf16>
    %cst_249 = arith.constant dense<0.000000e+00> : vector<16x32xf32>
    %426 = tpu.matmul %423, %425, %cst_249 {dimension_numbers = #tpu.dot_dimension_numbers<[1], [0], [0], [1], [0, 0, 1, 1], [], []>} : vector<16x8xbf16>, vector<8x32xbf16>, vector<16x32xf32> -> vector<16x32xf32>
    %427 = arith.addf %387, %426 : vector<16x32xf32>
    %c0_250 = arith.constant 0 : index
    %c0_251 = arith.constant 0 : index
    %428 = vector.load %arg17[%c0_250, %c0_251] : memref<1x32xf32, #tpu.memory_space<vmem>>, vector<1x32xf32>
    %429 = vector.broadcast %428 : vector<1x32xf32> to vector<16x32xf32>
    %430 = arith.addf %427, %429 : vector<16x32xf32>
    %431 = arith.addf %241, %430 : vector<16x32xf32>
    %c2_252 = arith.constant 2 : index
    %c0_253 = arith.constant 0 : index
    %432 = vector.load %arg22[%c2_252, %c0_253] : memref<3x32xf32, #tpu.memory_space<vmem>>, vector<1x32xf32>
    %c2_254 = arith.constant 2 : index
    %c0_255 = arith.constant 0 : index
    %433 = vector.load %arg23[%c2_254, %c0_255] : memref<3x32xf32, #tpu.memory_space<vmem>>, vector<1x32xf32>
    %cst_256 = arith.constant dense<0.000000e+00> : vector<16xf32>
    %434 = vector.multi_reduction <add>, %431, %cst_256 [1] : vector<16x32xf32> to vector<16xf32>
    %435 = vector.shape_cast %434 : vector<16xf32> to vector<16x1xf32>
    %cst_257 = arith.constant 3.200000e+01 : f32
    %436 = vector.broadcast %cst_257 : f32 to vector<16x1xf32>
    %437 = arith.divf %435, %436 : vector<16x1xf32>
    %438 = vector.broadcast %437 : vector<16x1xf32> to vector<16x32xf32>
    %439 = arith.subf %431, %438 : vector<16x32xf32>
    %440 = arith.mulf %439, %439 : vector<16x32xf32>
    %cst_258 = arith.constant dense<0.000000e+00> : vector<16xf32>
    %441 = vector.multi_reduction <add>, %440, %cst_258 [1] : vector<16x32xf32> to vector<16xf32>
    %442 = vector.shape_cast %441 : vector<16xf32> to vector<16x1xf32>
    %cst_259 = arith.constant 3.200000e+01 : f32
    %443 = vector.broadcast %cst_259 : f32 to vector<16x1xf32>
    %444 = arith.divf %442, %443 : vector<16x1xf32>
    %445 = vector.broadcast %437 : vector<16x1xf32> to vector<16x32xf32>
    %446 = arith.subf %431, %445 : vector<16x32xf32>
    %cst_260 = arith.constant 9.99999974E-6 : f32
    %447 = vector.broadcast %cst_260 : f32 to vector<16x1xf32>
    %448 = arith.addf %444, %447 : vector<16x1xf32>
    %449 = math.rsqrt %448 : vector<16x1xf32>
    %450 = vector.broadcast %449 : vector<16x1xf32> to vector<16x32xf32>
    %451 = arith.mulf %446, %450 : vector<16x32xf32>
    %452 = vector.broadcast %432 : vector<1x32xf32> to vector<16x32xf32>
    %453 = arith.mulf %451, %452 : vector<16x32xf32>
    %454 = vector.broadcast %433 : vector<1x32xf32> to vector<16x32xf32>
    %455 = arith.addf %453, %454 : vector<16x32xf32>
    %456 = arith.truncf %455 : vector<16x32xf32> to vector<16x32xbf16>
    %c0_261 = arith.constant 0 : index
    %c0_262 = arith.constant 0 : index
    %457 = vector.load %arg18[%c0_261, %c0_262] : memref<32x64xbf16, #tpu.memory_space<vmem>>, vector<32x64xbf16>
    %cst_263 = arith.constant dense<0.000000e+00> : vector<16x64xf32>
    %458 = tpu.matmul %456, %457, %cst_263 {dimension_numbers = #tpu.dot_dimension_numbers<[1], [0], [0], [1], [0, 0, 1, 1], [], []>} : vector<16x32xbf16>, vector<32x64xbf16>, vector<16x64xf32> -> vector<16x64xf32>
    %c0_264 = arith.constant 0 : index
    %c0_265 = arith.constant 0 : index
    %459 = vector.load %arg19[%c0_264, %c0_265] : memref<1x64xf32, #tpu.memory_space<vmem>>, vector<1x64xf32>
    %460 = vector.broadcast %459 : vector<1x64xf32> to vector<16x64xf32>
    %461 = arith.addf %458, %460 : vector<16x64xf32>
    %cst_266 = arith.constant 0.000000e+00 : f32
    %462 = vector.broadcast %cst_266 : f32 to vector<16x64xf32>
    %463 = arith.maximumf %461, %462 : vector<16x64xf32>
    %464 = arith.truncf %463 : vector<16x64xf32> to vector<16x64xbf16>
    %c0_267 = arith.constant 0 : index
    %c0_268 = arith.constant 0 : index
    %465 = vector.load %arg20[%c0_267, %c0_268] : memref<64x32xbf16, #tpu.memory_space<vmem>>, vector<64x32xbf16>
    %cst_269 = arith.constant dense<0.000000e+00> : vector<16x32xf32>
    %466 = tpu.matmul %464, %465, %cst_269 {dimension_numbers = #tpu.dot_dimension_numbers<[1], [0], [0], [1], [0, 0, 1, 1], [], []>} : vector<16x64xbf16>, vector<64x32xbf16>, vector<16x32xf32> -> vector<16x32xf32>
    %c0_270 = arith.constant 0 : index
    %c0_271 = arith.constant 0 : index
    %467 = vector.load %arg21[%c0_270, %c0_271] : memref<1x32xf32, #tpu.memory_space<vmem>>, vector<1x32xf32>
    %468 = vector.broadcast %467 : vector<1x32xf32> to vector<16x32xf32>
    %469 = arith.addf %466, %468 : vector<16x32xf32>
    %470 = arith.addf %431, %469 : vector<16x32xf32>
    %471 = vector.shape_cast %470 : vector<16x32xf32> to vector<2x8x32xf32>
    %c0_272 = arith.constant 0 : index
    %c0_273 = arith.constant 0 : index
    %c0_274 = arith.constant 0 : index
    %472 = vector.load %arg24[%c0_272, %c0_273, %c0_274] : memref<2x8x32xf32, #tpu.memory_space<vmem>>, vector<2x8x32xf32>
    tpu.vector_store %arg24[%c0_272, %c0_273, %c0_274], %471 {strides = array<i32>} : memref<2x8x32xf32, #tpu.memory_space<vmem>>, vector<2x8x32xf32>,
    return
  }
  func.func @transform_0(%arg0: i32) -> (i32, i32, i32) {
    %c0_i32 = arith.constant 0 : i32
    %c0_i32_0 = arith.constant 0 : i32
    %c0_i32_1 = arith.constant 0 : i32
    return %arg0, %c0_i32, %c0_i32_0 : i32, i32, i32
  }
  func.func @transform_1(%arg0: i32) -> (i32, i32, i32) {
    %c0_i32 = arith.constant 0 : i32
    %c0_i32_0 = arith.constant 0 : i32
    %c0_i32_1 = arith.constant 0 : i32
    return %arg0, %c0_i32, %c0_i32_0 : i32, i32, i32
  }
  func.func @transform_2(%arg0: i32) -> (i32, i32, i32) {
    %c0_i32 = arith.constant 0 : i32
    %c0_i32_0 = arith.constant 0 : i32
    %c0_i32_1 = arith.constant 0 : i32
    return %arg0, %c0_i32, %c0_i32_0 : i32, i32, i32
  }
  func.func @transform_3(%arg0: i32) -> (i32, i32, i32) {
    %c0_i32 = arith.constant 0 : i32
    %c0_i32_0 = arith.constant 0 : i32
    %c0_i32_1 = arith.constant 0 : i32
    %c0_i32_2 = arith.constant 0 : i32
    return %c0_i32, %c0_i32_0, %c0_i32_1 : i32, i32, i32
  }
  func.func @transform_4(%arg0: i32) -> (i32, i32, i32) {
    %c0_i32 = arith.constant 0 : i32
    %c0_i32_0 = arith.constant 0 : i32
    %c0_i32_1 = arith.constant 0 : i32
    %c0_i32_2 = arith.constant 0 : i32
    return %c0_i32, %c0_i32_0, %c0_i32_1 : i32, i32, i32
  }
  func.func @transform_5(%arg0: i32) -> (i32, i32, i32) {
    %c0_i32 = arith.constant 0 : i32
    %c0_i32_0 = arith.constant 0 : i32
    %c0_i32_1 = arith.constant 0 : i32
    %c0_i32_2 = arith.constant 0 : i32
    return %c0_i32, %c0_i32_0, %c0_i32_1 : i32, i32, i32
  }
  func.func @transform_6(%arg0: i32) -> (i32, i32, i32) {
    %c0_i32 = arith.constant 0 : i32
    %c0_i32_0 = arith.constant 0 : i32
    %c0_i32_1 = arith.constant 0 : i32
    %c0_i32_2 = arith.constant 0 : i32
    return %c0_i32, %c0_i32_0, %c0_i32_1 : i32, i32, i32
  }
  func.func @transform_7(%arg0: i32) -> (i32, i32, i32) {
    %c0_i32 = arith.constant 0 : i32
    %c0_i32_0 = arith.constant 0 : i32
    %c0_i32_1 = arith.constant 0 : i32
    %c0_i32_2 = arith.constant 0 : i32
    return %c0_i32, %c0_i32_0, %c0_i32_1 : i32, i32, i32
  }
  func.func @transform_8(%arg0: i32) -> (i32, i32, i32) {
    %c0_i32 = arith.constant 0 : i32
    %c0_i32_0 = arith.constant 0 : i32
    %c0_i32_1 = arith.constant 0 : i32
    %c0_i32_2 = arith.constant 0 : i32
    return %c0_i32, %c0_i32_0, %c0_i32_1 : i32, i32, i32
  }
  func.func @transform_9(%arg0: i32) -> (i32, i32, i32) {
    %c0_i32 = arith.constant 0 : i32
    %c0_i32_0 = arith.constant 0 : i32
    %c0_i32_1 = arith.constant 0 : i32
    %c0_i32_2 = arith.constant 0 : i32
    return %c0_i32, %c0_i32_0, %c0_i32_1 : i32, i32, i32
  }
  func.func @transform_10(%arg0: i32) -> (i32, i32, i32) {
    %c0_i32 = arith.constant 0 : i32
    %c0_i32_0 = arith.constant 0 : i32
    %c0_i32_1 = arith.constant 0 : i32
    %c0_i32_2 = arith.constant 0 : i32
    return %c0_i32, %c0_i32_0, %c0_i32_1 : i32, i32, i32
  }
  func.func @transform_11(%arg0: i32) -> (i32, i32, i32) {
    %c0_i32 = arith.constant 0 : i32
    %c0_i32_0 = arith.constant 0 : i32
    %c0_i32_1 = arith.constant 0 : i32
    %c0_i32_2 = arith.constant 0 : i32
    return %c0_i32, %c0_i32_0, %c0_i32_1 : i32, i32, i32
  }
  func.func @transform_12(%arg0: i32) -> (i32, i32) {
    %c0_i32 = arith.constant 0 : i32
    %c0_i32_0 = arith.constant 0 : i32
    %c0_i32_1 = arith.constant 0 : i32
    return %c0_i32, %c0_i32_0 : i32, i32
  }
  func.func @transform_13(%arg0: i32) -> (i32, i32, i32) {
    %c0_i32 = arith.constant 0 : i32
    %c0_i32_0 = arith.constant 0 : i32
    %c0_i32_1 = arith.constant 0 : i32
    %c0_i32_2 = arith.constant 0 : i32
    return %c0_i32, %c0_i32_0, %c0_i32_1 : i32, i32, i32
  }
  func.func @transform_14(%arg0: i32) -> (i32, i32, i32) {
    %c0_i32 = arith.constant 0 : i32
    %c0_i32_0 = arith.constant 0 : i32
    %c0_i32_1 = arith.constant 0 : i32
    %c0_i32_2 = arith.constant 0 : i32
    return %c0_i32, %c0_i32_0, %c0_i32_1 : i32, i32, i32
  }
  func.func @transform_15(%arg0: i32) -> (i32, i32, i32) {
    %c0_i32 = arith.constant 0 : i32
    %c0_i32_0 = arith.constant 0 : i32
    %c0_i32_1 = arith.constant 0 : i32
    %c0_i32_2 = arith.constant 0 : i32
    return %c0_i32, %c0_i32_0, %c0_i32_1 : i32, i32, i32
  }
  func.func @transform_16(%arg0: i32) -> (i32, i32) {
    %c0_i32 = arith.constant 0 : i32
    %c0_i32_0 = arith.constant 0 : i32
    %c0_i32_1 = arith.constant 0 : i32
    return %c0_i32, %c0_i32_0 : i32, i32
  }
  func.func @transform_17(%arg0: i32) -> (i32, i32) {
    %c0_i32 = arith.constant 0 : i32
    %c0_i32_0 = arith.constant 0 : i32
    %c0_i32_1 = arith.constant 0 : i32
    return %c0_i32, %c0_i32_0 : i32, i32
  }
  func.func @transform_18(%arg0: i32) -> (i32, i32) {
    %c0_i32 = arith.constant 0 : i32
    %c0_i32_0 = arith.constant 0 : i32
    %c0_i32_1 = arith.constant 0 : i32
    return %c0_i32, %c0_i32_0 : i32, i32
  }
  func.func @transform_19(%arg0: i32) -> (i32, i32) {
    %c0_i32 = arith.constant 0 : i32
    %c0_i32_0 = arith.constant 0 : i32
    %c0_i32_1 = arith.constant 0 : i32
    return %c0_i32, %c0_i32_0 : i32, i32
  }
  func.func @transform_20(%arg0: i32) -> (i32, i32) {
    %c0_i32 = arith.constant 0 : i32
    %c0_i32_0 = arith.constant 0 : i32
    %c0_i32_1 = arith.constant 0 : i32
    return %c0_i32, %c0_i32_0 : i32, i32
  }
  func.func @transform_21(%arg0: i32) -> (i32, i32) {
    %c0_i32 = arith.constant 0 : i32
    %c0_i32_0 = arith.constant 0 : i32
    %c0_i32_1 = arith.constant 0 : i32
    return %c0_i32, %c0_i32_0 : i32, i32
  }
  func.func @transform_22(%arg0: i32) -> (i32, i32) {
    %c0_i32 = arith.constant 0 : i32
    %c0_i32_0 = arith.constant 0 : i32
    %c0_i32_1 = arith.constant 0 : i32
    return %c0_i32, %c0_i32_0 : i32, i32
  }
  func.func @transform_23(%arg0: i32) -> (i32, i32, i32) {
    %c0_i32 = arith.constant 0 : i32
    %c0_i32_0 = arith.constant 0 : i32
    %c0_i32_1 = arith.constant 0 : i32
    return %arg0, %c0_i32, %c0_i32_0 : i32, i32, i32
  }
}

</mosaic_0001>

<llo_original>
// kernel: tpu_custom_call.1
$region0: #{tpu_custom_call.1}
  #allocation0 [shape = 'u32[]', space=smem, size = 0x4, offset = 0x4, fixed_abs, tag = 'smem constant byte address 0x4 - core index']
  #allocation1 [shape = 'u32[144,128]{1,0:T(1,128)}', space=vmem, size = 0x12000, scoped, tag = 'internal scratch']
  %s0 = inlined_call_operand.hbm [shape: f32[2,8,32], index: 0, kind: input, shape index: {}]
  %s1 = inlined_call_operand.hbm [shape: f32[2,8,8], index: 1, kind: input, shape index: {}]
  %s2 = inlined_call_operand.hbm [shape: f32[2,1,16], index: 2, kind: input, shape index: {}]
  %s3 = inlined_call_operand.hbm [shape: bf16[4,16,8], index: 3, kind: input, shape index: {}]
  %s4 = inlined_call_operand.hbm [shape: bf16[4,16,8], index: 4, kind: input, shape index: {}]
  %s5 = inlined_call_operand.hbm [shape: bf16[4,32,8], index: 5, kind: input, shape index: {}]
  %s6 = inlined_call_operand.hbm [shape: bf16[4,32,8], index: 6, kind: input, shape index: {}]
  %s7 = inlined_call_operand.hbm [shape: bf16[4,32,8], index: 7, kind: input, shape index: {}]
  %s8 = inlined_call_operand.hbm [shape: f32[4,1,8], index: 8, kind: input, shape index: {}]
  %s9 = inlined_call_operand.hbm [shape: f32[4,1,8], index: 9, kind: input, shape index: {}]
  %s10 = inlined_call_operand.hbm [shape: f32[4,1,8], index: 10, kind: input, shape index: {}]
  %s11 = inlined_call_operand.hbm [shape: bf16[4,8,32], index: 11, kind: input, shape index: {}]
  %s12 = inlined_call_operand.hbm [shape: f32[1,32], index: 12, kind: input, shape index: {}]
  %s13 = inlined_call_operand.hbm [shape: bf16[4,32,8], index: 13, kind: input, shape index: {}]
  %s14 = inlined_call_operand.hbm [shape: f32[4,1,8], index: 14, kind: input, shape index: {}]
  %s15 = inlined_call_operand.hbm [shape: bf16[4,8,32], index: 15, kind: input, shape index: {}]
  %s16 = inlined_call_operand.hbm [shape: f32[1,32], index: 16, kind: input, shape index: {}]
  %s17 = inlined_call_operand.hbm [shape: bf16[32,64], index: 17, kind: input, shape index: {}]
  %s18 = inlined_call_operand.hbm [shape: f32[1,64], index: 18, kind: input, shape index: {}]
  %s19 = inlined_call_operand.hbm [shape: bf16[64,32], index: 19, kind: input, shape index: {}]
  %s20 = inlined_call_operand.hbm [shape: f32[1,32], index: 20, kind: input, shape index: {}]
  %s21 = inlined_call_operand.hbm [shape: f32[3,32], index: 21, kind: input, shape index: {}]
  %s22 = inlined_call_operand.hbm [shape: f32[3,32], index: 22, kind: input, shape index: {}]
  %s23 = inlined_call_operand.hbm [shape: f32[2,8,32], index: 23, kind: output, shape index: {}]
  %s24 = sld [smem:[#allocation0]]
  $region194: #{tpu_custom_call.1} parent=0
    _
  %s26 = ssub.s32 1, %s24
  %s27 = scalar_select 0, %s26, %s24
  $region1: #{tpu_custom_call.1} parent=0
    #allocation2 [shape = 'u8[8192]{0}', space=vmem, size = 0x2000, scoped, tag = 'input window, operand 0, single buffered']
    #allocation3 [shape = 's32[1]{0}', space=sflag, size = 0x4, scoped, tag = 'scoped memory for tpu_custom_call.1']
    #allocation4 [shape = 's32[1]{0}', space=sflag, size = 0x4, scoped, tag = 'scoped memory for tpu_custom_call.1']
    #allocation5 [shape = 'u8[8192]{0}', space=vmem, size = 0x2000, scoped, tag = 'input window, operand 1, single buffered']
    #allocation6 [shape = 's32[1]{0}', space=sflag, size = 0x4, scoped, tag = 'scoped memory for tpu_custom_call.1']
    #allocation7 [shape = 'u8[1024]{0}', space=vmem, size = 0x400, scoped, tag = 'input window, operand 2, single buffered']
    #allocation8 [shape = 'u8[16384]{0}', space=vmem, size = 0x4000, scoped, tag = 'input window, operand 3, single buffered']
    #allocation9 [shape = 's32[1]{0}', space=sflag, size = 0x4, scoped, tag = 'scoped memory for tpu_custom_call.1']
    #allocation10 [shape = 'u8[16384]{0}', space=vmem, size = 0x4000, scoped, tag = 'input window, operand 4, single buffered']
    #allocation11 [shape = 'u8[32768]{0}', space=vmem, size = 0x8000, scoped, tag = 'input window, operand 5, single buffered']
    #allocation12 [shape = 's32[1]{0}', space=sflag, size = 0x4, scoped, tag = 'scoped memory for tpu_custom_call.1']
    #allocation13 [shape = 'u8[32768]{0}', space=vmem, size = 0x8000, scoped, tag = 'input window, operand 6, single buffered']
    #allocation14 [shape = 'u8[32768]{0}', space=vmem, size = 0x8000, scoped, tag = 'input window, operand 7, single buffered']
    #allocation15 [shape = 's32[1]{0}', space=sflag, size = 0x4, scoped, tag = 'scoped memory for tpu_custom_call.1']
    #allocation16 [shape = 'u8[2048]{0}', space=vmem, size = 0x800, scoped, tag = 'input window, operand 8, single buffered']
    #allocation17 [shape = 'u8[2048]{0}', space=vmem, size = 0x800, scoped, tag = 'input window, operand 9, single buffered']
    #allocation18 [shape = 's32[1]{0}', space=sflag, size = 0x4, scoped, tag = 'scoped memory for tpu_custom_call.1']
    #allocation19 [shape = 'u8[2048]{0}', space=vmem, size = 0x800, scoped, tag = 'input window, operand 10, single buffered']
    #allocation20 [shape = 'u8[8192]{0}', space=vmem, size = 0x2000, scoped, tag = 'input window, operand 11, single buffered']
    #allocation21 [shape = 's32[1]{0}', space=sflag, size = 0x4, scoped, tag = 'scoped memory for tpu_custom_call.1']
    #allocation22 [shape = 'u8[512]{0}', space=vmem, size = 0x400, scoped, tag = 'input window, operand 12, single buffered']
    #allocation23 [shape = 'u8[32768]{0}', space=vmem, size = 0x8000, scoped, tag = 'input window, operand 13, single buffered']
    #allocation24 [shape = 's32[1]{0}', space=sflag, size = 0x4, scoped, tag = 'scoped memory for tpu_custom_call.1']
    #allocation25 [shape = 'u8[2048]{0}', space=vmem, size = 0x800, scoped, tag = 'input window, operand 14, single buffered']
    #allocation26 [shape = 'u8[8192]{0}', space=vmem, size = 0x2000, scoped, tag = 'input window, operand 15, single buffered']
    #allocation27 [shape = 's32[1]{0}', space=sflag, size = 0x4, scoped, tag = 'scoped memory for tpu_custom_call.1']
    #allocation28 [shape = 'u8[512]{0}', space=vmem, size = 0x400, scoped, tag = 'input window, operand 16, single buffered']
    #allocation29 [shape = 'u8[8192]{0}', space=vmem, size = 0x2000, scoped, tag = 'input window, operand 17, single buffered']
    #allocation30 [shape = 's32[1]{0}', space=sflag, size = 0x4, scoped, tag = 'scoped memory for tpu_custom_call.1']
    #allocation31 [shape = 'u8[512]{0}', space=vmem, size = 0x400, scoped, tag = 'input window, operand 18, single buffered']
    #allocation32 [shape = 'u8[16384]{0}', space=vmem, size = 0x4000, scoped, tag = 'input window, operand 19, single buffered']
    #allocation33 [shape = 's32[1]{0}', space=sflag, size = 0x4, scoped, tag = 'scoped memory for tpu_custom_call.1']
    #allocation34 [shape = 'u8[512]{0}', space=vmem, size = 0x400, scoped, tag = 'input window, operand 20, single buffered']
    #allocation35 [shape = 'u8[2048]{0}', space=vmem, size = 0x800, scoped, tag = 'input window, operand 21, single buffered']
    #allocation36 [shape = 's32[1]{0}', space=sflag, size = 0x4, scoped, tag = 'scoped memory for tpu_custom_call.1']
    #allocation37 [shape = 'u8[2048]{0}', space=vmem, size = 0x800, scoped, tag = 'input window, operand 22, single buffered']
    #allocation38 [shape = 'u8[8192]{0}', space=vmem, size = 0x2000, scoped, tag = 'output window, operand 0, single buffered']
    %28 = vsyncpa [#allocation3], 0
    %29 = vsyncpa [#allocation6], 0
    %30 = vsyncpa [#allocation9], 0
    %31 = vsyncpa [#allocation12], 0
    %32 = vsyncpa [#allocation15], 0
    %33 = vsyncpa [#allocation18], 0
    %34 = vsyncpa [#allocation21], 0
    %35 = vsyncpa [#allocation24], 0
    %36 = vsyncpa [#allocation27], 0
    %37 = vsyncpa [#allocation30], 0
    %38 = vsyncpa [#allocation33], 0
    %39 = vsyncpa [#allocation36], 0
    %40 = vsyncpa [#allocation4], 0
    // Predicated region
    $region2: #{tpu_custom_call.1} parent=1 // pred_check
      _
    $region3: #{tpu_custom_call.1} parent=1 // pred_check_branch
      %42 = sbr.rel (0) target = $region5
    $region4: #{tpu_custom_call.1} parent=1 // pred_region
      %s44 = ssub.s32 256, 256
      %45 = vsyncadd [#allocation3], %s44
      %s46 = sshll.u32 [#allocation2], 4
      %s47 = int_to_ptr.vmem [resolvable:$true] %s46
      %52 = dma.hbm_to_vmem [thread:$0]  %s0, 256, %s47, [#allocation3], 128, 128, 8
    $region5: #{tpu_custom_call.1} parent=1 // pred_fallthru
      _
    // Predicated region
    $region6: #{tpu_custom_call.1} parent=1 // pred_check
      _
    $region7: #{tpu_custom_call.1} parent=1 // pred_check_branch
      %54 = sbr.rel (0) target = $region9
    $region8: #{tpu_custom_call.1} parent=1 // pred_region
      %s56 = ssub.s32 256, 256
      %57 = vsyncadd [#allocation6], %s56
      %s58 = sshll.u32 [#allocation5], 4
      %s59 = int_to_ptr.vmem [resolvable:$true] %s58
      %64 = dma.hbm_to_vmem [thread:$0]  %s1, 256, %s59, [#allocation6], 128, 128, 8
    $region9: #{tpu_custom_call.1} parent=1 // pred_fallthru
      _
    // Predicated region
    $region10: #{tpu_custom_call.1} parent=1 // pred_check
      _
    $region11: #{tpu_custom_call.1} parent=1 // pred_check_branch
      %66 = sbr.rel (0) target = $region13
    $region12: #{tpu_custom_call.1} parent=1 // pred_region
      %s68 = ssub.s32 32, 32
      %69 = vsyncadd [#allocation6], %s68
      %s70 = sshll.u32 [#allocation7], 4
      %s71 = int_to_ptr.vmem [resolvable:$true] %s70
      %76 = dma.hbm_to_vmem [thread:$0]  %s2, 32, %s71, [#allocation6], 16, 16, 1
    $region13: #{tpu_custom_call.1} parent=1 // pred_fallthru
      _
    // Predicated region
    $region14: #{tpu_custom_call.1} parent=1 // pred_check
      _
    $region15: #{tpu_custom_call.1} parent=1 // pred_check_branch
      %78 = sbr.rel (0) target = $region17
    $region16: #{tpu_custom_call.1} parent=1 // pred_region
      %s80 = ssub.s32 512, 512
      %81 = vsyncadd [#allocation9], %s80
      %s82 = sshll.u32 [#allocation8], 4
      %s83 = int_to_ptr.vmem [resolvable:$true] %s82
      %88 = dma.hbm_to_vmem [thread:$0]  %s3, 512, %s83, [#allocation9], 64, 64, 4
    $region17: #{tpu_custom_call.1} parent=1 // pred_fallthru
      _
    // Predicated region
    $region18: #{tpu_custom_call.1} parent=1 // pred_check
      _
    $region19: #{tpu_custom_call.1} parent=1 // pred_check_branch
      %90 = sbr.rel (0) target = $region21
    $region20: #{tpu_custom_call.1} parent=1 // pred_region
      %s92 = ssub.s32 512, 512
      %93 = vsyncadd [#allocation9], %s92
      %s94 = sshll.u32 [#allocation10], 4
      %s95 = int_to_ptr.vmem [resolvable:$true] %s94
      %100 = dma.hbm_to_vmem [thread:$0]  %s4, 512, %s95, [#allocation9], 64, 64, 4
    $region21: #{tpu_custom_call.1} parent=1 // pred_fallthru
      _
    // Predicated region
    $region22: #{tpu_custom_call.1} parent=1 // pred_check
      _
    $region23: #{tpu_custom_call.1} parent=1 // pred_check_branch
      %102 = sbr.rel (0) target = $region25
    $region24: #{tpu_custom_call.1} parent=1 // pred_region
      %s104 = ssub.s32 1024, 1024
      %105 = vsyncadd [#allocation12], %s104
      %s106 = sshll.u32 [#allocation11], 4
      %s107 = int_to_ptr.vmem [resolvable:$true] %s106
      %112 = dma.hbm_to_vmem [thread:$0]  %s5, 1024, %s107, [#allocation12], 64, 64, 4
    $region25: #{tpu_custom_call.1} parent=1 // pred_fallthru
      _
    // Predicated region
    $region26: #{tpu_custom_call.1} parent=1 // pred_check
      _
    $region27: #{tpu_custom_call.1} parent=1 // pred_check_branch
      %114 = sbr.rel (0) target = $region29
    $region28: #{tpu_custom_call.1} parent=1 // pred_region
      %s116 = ssub.s32 1024, 1024
      %117 = vsyncadd [#allocation12], %s116
      %s118 = sshll.u32 [#allocation13], 4
      %s119 = int_to_ptr.vmem [resolvable:$true] %s118
      %124 = dma.hbm_to_vmem [thread:$0]  %s6, 1024, %s119, [#allocation12], 64, 64, 4
    $region29: #{tpu_custom_call.1} parent=1 // pred_fallthru
      _
    // Predicated region
    $region30: #{tpu_custom_call.1} parent=1 // pred_check
      _
    $region31: #{tpu_custom_call.1} parent=1 // pred_check_branch
      %126 = sbr.rel (0) target = $region33
    $region32: #{tpu_custom_call.1} parent=1 // pred_region
      %s128 = ssub.s32 1024, 1024
      %129 = vsyncadd [#allocation15], %s128
      %s130 = sshll.u32 [#allocation14], 4
      %s131 = int_to_ptr.vmem [resolvable:$true] %s130
      %136 = dma.hbm_to_vmem [thread:$0]  %s7, 1024, %s131, [#allocation15], 64, 64, 4
    $region33: #{tpu_custom_call.1} parent=1 // pred_fallthru
      _
    // Predicated region
    $region34: #{tpu_custom_call.1} parent=1 // pred_check
      _
    $region35: #{tpu_custom_call.1} parent=1 // pred_check_branch
      %138 = sbr.rel (0) target = $region37
    $region36: #{tpu_custom_call.1} parent=1 // pred_region
      %s140 = ssub.s32 64, 64
      %141 = vsyncadd [#allocation15], %s140
      %s142 = sshll.u32 [#allocation16], 4
      %s143 = int_to_ptr.vmem [resolvable:$true] %s142
      %148 = dma.hbm_to_vmem [thread:$0]  %s8, 64, %s143, [#allocation15], 16, 16, 1
    $region37: #{tpu_custom_call.1} parent=1 // pred_fallthru
      _
    // Predicated region
    $region38: #{tpu_custom_call.1} parent=1 // pred_check
      _
    $region39: #{tpu_custom_call.1} parent=1 // pred_check_branch
      %150 = sbr.rel (0) target = $region41
    $region40: #{tpu_custom_call.1} parent=1 // pred_region
      %s152 = ssub.s32 64, 64
      %153 = vsyncadd [#allocation18], %s152
      %s154 = sshll.u32 [#allocation17], 4
      %s155 = int_to_ptr.vmem [resolvable:$true] %s154
      %160 = dma.hbm_to_vmem [thread:$0]  %s9, 64, %s155, [#allocation18], 16, 16, 1
    $region41: #{tpu_custom_call.1} parent=1 // pred_fallthru
      _
    // Predicated region
    $region42: #{tpu_custom_call.1} parent=1 // pred_check
      _
    $region43: #{tpu_custom_call.1} parent=1 // pred_check_branch
      %162 = sbr.rel (0) target = $region45
    $region44: #{tpu_custom_call.1} parent=1 // pred_region
      %s164 = ssub.s32 64, 64
      %165 = vsyncadd [#allocation18], %s164
      %s166 = sshll.u32 [#allocation19], 4
      %s167 = int_to_ptr.vmem [resolvable:$true] %s166
      %172 = dma.hbm_to_vmem [thread:$0]  %s10, 64, %s167, [#allocation18], 16, 16, 1
    $region45: #{tpu_custom_call.1} parent=1 // pred_fallthru
      _
    // Predicated region
    $region46: #{tpu_custom_call.1} parent=1 // pred_check
      _
    $region47: #{tpu_custom_call.1} parent=1 // pred_check_branch
      %174 = sbr.rel (0) target = $region49
    $region48: #{tpu_custom_call.1} parent=1 // pred_region
      %s176 = ssub.s32 256, 256
      %177 = vsyncadd [#allocation21], %s176
      %s178 = sshll.u32 [#allocation20], 4
      %s179 = int_to_ptr.vmem [resolvable:$true] %s178
      %184 = dma.hbm_to_vmem [thread:$0]  %s11, 256, %s179, [#allocation21], 64, 64, 4
    $region49: #{tpu_custom_call.1} parent=1 // pred_fallthru
      _
    // Predicated region
    $region50: #{tpu_custom_call.1} parent=1 // pred_check
      _
    $region51: #{tpu_custom_call.1} parent=1 // pred_check_branch
      %186 = sbr.rel (0) target = $region53
    $region52: #{tpu_custom_call.1} parent=1 // pred_region
      %s188 = ssub.s32 16, 16
      %189 = vsyncadd [#allocation21], %s188
      %s191 = sshll.u32 [#allocation22], 4
      %s192 = int_to_ptr.vmem [resolvable:$true] %s191
      %194 = dma.hbm_to_vmem [thread:$0]  %s12, 16, %s192, [#allocation21]
    $region53: #{tpu_custom_call.1} parent=1 // pred_fallthru
      _
    // Predicated region
    $region54: #{tpu_custom_call.1} parent=1 // pred_check
      _
    $region55: #{tpu_custom_call.1} parent=1 // pred_check_branch
      %196 = sbr.rel (0) target = $region57
    $region56: #{tpu_custom_call.1} parent=1 // pred_region
      %s198 = ssub.s32 1024, 1024
      %199 = vsyncadd [#allocation24], %s198
      %s200 = sshll.u32 [#allocation23], 4
      %s201 = int_to_ptr.vmem [resolvable:$true] %s200
      %206 = dma.hbm_to_vmem [thread:$0]  %s13, 1024, %s201, [#allocation24], 64, 64, 4
    $region57: #{tpu_custom_call.1} parent=1 // pred_fallthru
      _
    // Predicated region
    $region58: #{tpu_custom_call.1} parent=1 // pred_check
      _
    $region59: #{tpu_custom_call.1} parent=1 // pred_check_branch
      %208 = sbr.rel (0) target = $region61
    $region60: #{tpu_custom_call.1} parent=1 // pred_region
      %s210 = ssub.s32 64, 64
      %211 = vsyncadd [#allocation24], %s210
      %s212 = sshll.u32 [#allocation25], 4
      %s213 = int_to_ptr.vmem [resolvable:$true] %s212
      %218 = dma.hbm_to_vmem [thread:$0]  %s14, 64, %s213, [#allocation24], 16, 16, 1
    $region61: #{tpu_custom_call.1} parent=1 // pred_fallthru
      _
    // Predicated region
    $region62: #{tpu_custom_call.1} parent=1 // pred_check
      _
    $region63: #{tpu_custom_call.1} parent=1 // pred_check_branch
      %220 = sbr.rel (0) target = $region65
    $region64: #{tpu_custom_call.1} parent=1 // pred_region
      %s222 = ssub.s32 256, 256
      %223 = vsyncadd [#allocation27], %s222
      %s224 = sshll.u32 [#allocation26], 4
      %s225 = int_to_ptr.vmem [resolvable:$true] %s224
      %230 = dma.hbm_to_vmem [thread:$0]  %s15, 256, %s225, [#allocation27], 64, 64, 4
    $region65: #{tpu_custom_call.1} parent=1 // pred_fallthru
      _
    // Predicated region
    $region66: #{tpu_custom_call.1} parent=1 // pred_check
      _
    $region67: #{tpu_custom_call.1} parent=1 // pred_check_branch
      %232 = sbr.rel (0) target = $region69
    $region68: #{tpu_custom_call.1} parent=1 // pred_region
      %s234 = ssub.s32 16, 16
      %235 = vsyncadd [#allocation27], %s234
      %s237 = sshll.u32 [#allocation28], 4
      %s238 = int_to_ptr.vmem [resolvable:$true] %s237
      %240 = dma.hbm_to_vmem [thread:$0]  %s16, 16, %s238, [#allocation27]
    $region69: #{tpu_custom_call.1} parent=1 // pred_fallthru
      _
    // Predicated region
    $region70: #{tpu_custom_call.1} parent=1 // pred_check
      _
    $region71: #{tpu_custom_call.1} parent=1 // pred_check_branch
      %242 = sbr.rel (0) target = $region73
    $region72: #{tpu_custom_call.1} parent=1 // pred_region
      %s244 = ssub.s32 256, 256
      %245 = vsyncadd [#allocation30], %s244
      %s246 = sshll.u32 [#allocation29], 4
      %s247 = int_to_ptr.vmem [resolvable:$true] %s246
      %252 = dma.hbm_to_vmem [thread:$0]  %s17, 256, %s247, [#allocation30], 64, 64, 4
    $region73: #{tpu_custom_call.1} parent=1 // pred_fallthru
      _
    // Predicated region
    $region74: #{tpu_custom_call.1} parent=1 // pred_check
      _
    $region75: #{tpu_custom_call.1} parent=1 // pred_check_branch
      %254 = sbr.rel (0) target = $region77
    $region76: #{tpu_custom_call.1} parent=1 // pred_region
      %s256 = ssub.s32 16, 16
      %257 = vsyncadd [#allocation30], %s256
      %s259 = sshll.u32 [#allocation31], 4
      %s260 = int_to_ptr.vmem [resolvable:$true] %s259
      %262 = dma.hbm_to_vmem [thread:$0]  %s18, 16, %s260, [#allocation30]
    $region77: #{tpu_custom_call.1} parent=1 // pred_fallthru
      _
    // Predicated region
    $region78: #{tpu_custom_call.1} parent=1 // pred_check
      _
    $region79: #{tpu_custom_call.1} parent=1 // pred_check_branch
      %264 = sbr.rel (0) target = $region81
    $region80: #{tpu_custom_call.1} parent=1 // pred_region
      %s266 = ssub.s32 512, 512
      %267 = vsyncadd [#allocation33], %s266
      %s268 = sshll.u32 [#allocation32], 4
      %s269 = int_to_ptr.vmem [resolvable:$true] %s268
      %274 = dma.hbm_to_vmem [thread:$0]  %s19, 512, %s269, [#allocation33], 64, 64, 4
    $region81: #{tpu_custom_call.1} parent=1 // pred_fallthru
      _
    // Predicated region
    $region82: #{tpu_custom_call.1} parent=1 // pred_check
      _
    $region83: #{tpu_custom_call.1} parent=1 // pred_check_branch
      %276 = sbr.rel (0) target = $region85
    $region84: #{tpu_custom_call.1} parent=1 // pred_region
      %s278 = ssub.s32 16, 16
      %279 = vsyncadd [#allocation33], %s278
      %s281 = sshll.u32 [#allocation34], 4
      %s282 = int_to_ptr.vmem [resolvable:$true] %s281
      %284 = dma.hbm_to_vmem [thread:$0]  %s20, 16, %s282, [#allocation33]
    $region85: #{tpu_custom_call.1} parent=1 // pred_fallthru
      _
    // Predicated region
    $region86: #{tpu_custom_call.1} parent=1 // pred_check
      _
    $region87: #{tpu_custom_call.1} parent=1 // pred_check_branch
      %286 = sbr.rel (0) target = $region89
    $region88: #{tpu_custom_call.1} parent=1 // pred_region
      %s288 = ssub.s32 64, 64
      %289 = vsyncadd [#allocation36], %s288
      %s291 = sshll.u32 [#allocation35], 4
      %s292 = int_to_ptr.vmem [resolvable:$true] %s291
      %294 = dma.hbm_to_vmem [thread:$0]  %s21, 64, %s292, [#allocation36]
    $region89: #{tpu_custom_call.1} parent=1 // pred_fallthru
      _
    // Predicated region
    $region90: #{tpu_custom_call.1} parent=1 // pred_check
      _
    $region91: #{tpu_custom_call.1} parent=1 // pred_check_branch
      %296 = sbr.rel (0) target = $region93
    $region92: #{tpu_custom_call.1} parent=1 // pred_region
      %s298 = ssub.s32 64, 64
      %299 = vsyncadd [#allocation36], %s298
      %s301 = sshll.u32 [#allocation37], 4
      %s302 = int_to_ptr.vmem [resolvable:$true] %s301
      %304 = dma.hbm_to_vmem [thread:$0]  %s22, 64, %s302, [#allocation36]
    $region93: #{tpu_custom_call.1} parent=1 // pred_fallthru
      _
    // Predicated region
    $region94: #{tpu_custom_call.1} parent=1 // pred_check
      _
    $region95: #{tpu_custom_call.1} parent=1 // pred_check_branch
      %306 = sbr.rel (0) target = $region97
    $region96: #{tpu_custom_call.1} parent=1 // pred_region
      %307 = dma.done [#allocation3], 256
    $region97: #{tpu_custom_call.1} parent=1 // pred_fallthru
      _
    // Predicated region
    $region98: #{tpu_custom_call.1} parent=1 // pred_check
      _
    $region99: #{tpu_custom_call.1} parent=1 // pred_check_branch
      %309 = sbr.rel (0) target = $region101
    $region100: #{tpu_custom_call.1} parent=1 // pred_region
      %310 = dma.done [#allocation6], 256
    $region101: #{tpu_custom_call.1} parent=1 // pred_fallthru
      _
    // Predicated region
    $region102: #{tpu_custom_call.1} parent=1 // pred_check
      _
    $region103: #{tpu_custom_call.1} parent=1 // pred_check_branch
      %312 = sbr.rel (0) target = $region105
    $region104: #{tpu_custom_call.1} parent=1 // pred_region
      %313 = dma.done [#allocation6], 32
    $region105: #{tpu_custom_call.1} parent=1 // pred_fallthru
      _
    // Predicated region
    $region106: #{tpu_custom_call.1} parent=1 // pred_check
      _
    $region107: #{tpu_custom_call.1} parent=1 // pred_check_branch
      %315 = sbr.rel (0) target = $region109
    $region108: #{tpu_custom_call.1} parent=1 // pred_region
      %316 = dma.done [#allocation9], 512
    $region109: #{tpu_custom_call.1} parent=1 // pred_fallthru
      _
    // Predicated region
    $region110: #{tpu_custom_call.1} parent=1 // pred_check
      _
    $region111: #{tpu_custom_call.1} parent=1 // pred_check_branch
      %318 = sbr.rel (0) target = $region113
    $region112: #{tpu_custom_call.1} parent=1 // pred_region
      %319 = dma.done [#allocation9], 512
    $region113: #{tpu_custom_call.1} parent=1 // pred_fallthru
      _
    // Predicated region
    $region114: #{tpu_custom_call.1} parent=1 // pred_check
      _
    $region115: #{tpu_custom_call.1} parent=1 // pred_check_branch
      %321 = sbr.rel (0) target = $region117
    $region116: #{tpu_custom_call.1} parent=1 // pred_region
      %322 = dma.done [#allocation12], 1024
    $region117: #{tpu_custom_call.1} parent=1 // pred_fallthru
      _
    // Predicated region
    $region118: #{tpu_custom_call.1} parent=1 // pred_check
      _
    $region119: #{tpu_custom_call.1} parent=1 // pred_check_branch
      %324 = sbr.rel (0) target = $region121
    $region120: #{tpu_custom_call.1} parent=1 // pred_region
      %325 = dma.done [#allocation12], 1024
    $region121: #{tpu_custom_call.1} parent=1 // pred_fallthru
      _
    // Predicated region
    $region122: #{tpu_custom_call.1} parent=1 // pred_check
      _
    $region123: #{tpu_custom_call.1} parent=1 // pred_check_branch
      %327 = sbr.rel (0) target = $region125
    $region124: #{tpu_custom_call.1} parent=1 // pred_region
      %328 = dma.done [#allocation15], 1024
    $region125: #{tpu_custom_call.1} parent=1 // pred_fallthru
      _
    // Predicated region
    $region126: #{tpu_custom_call.1} parent=1 // pred_check
      _
    $region127: #{tpu_custom_call.1} parent=1 // pred_check_branch
      %330 = sbr.rel (0) target = $region129
    $region128: #{tpu_custom_call.1} parent=1 // pred_region
      %331 = dma.done [#allocation15], 64
    $region129: #{tpu_custom_call.1} parent=1 // pred_fallthru
      _
    // Predicated region
    $region130: #{tpu_custom_call.1} parent=1 // pred_check
      _
    $region131: #{tpu_custom_call.1} parent=1 // pred_check_branch
      %333 = sbr.rel (0) target = $region133
    $region132: #{tpu_custom_call.1} parent=1 // pred_region
      %334 = dma.done [#allocation18], 64
    $region133: #{tpu_custom_call.1} parent=1 // pred_fallthru
      _
    // Predicated region
    $region134: #{tpu_custom_call.1} parent=1 // pred_check
      _
    $region135: #{tpu_custom_call.1} parent=1 // pred_check_branch
      %336 = sbr.rel (0) target = $region137
    $region136: #{tpu_custom_call.1} parent=1 // pred_region
      %337 = dma.done [#allocation18], 64
    $region137: #{tpu_custom_call.1} parent=1 // pred_fallthru
      _
    // Predicated region
    $region138: #{tpu_custom_call.1} parent=1 // pred_check
      _
    $region139: #{tpu_custom_call.1} parent=1 // pred_check_branch
      %339 = sbr.rel (0) target = $region141
    $region140: #{tpu_custom_call.1} parent=1 // pred_region
      %340 = dma.done [#allocation21], 256
    $region141: #{tpu_custom_call.1} parent=1 // pred_fallthru
      _
    // Predicated region
    $region142: #{tpu_custom_call.1} parent=1 // pred_check
      _
    $region143: #{tpu_custom_call.1} parent=1 // pred_check_branch
      %342 = sbr.rel (0) target = $region145
    $region144: #{tpu_custom_call.1} parent=1 // pred_region
      %343 = dma.done [#allocation21], 16
    $region145: #{tpu_custom_call.1} parent=1 // pred_fallthru
      _
    // Predicated region
    $region146: #{tpu_custom_call.1} parent=1 // pred_check
      _
    $region147: #{tpu_custom_call.1} parent=1 // pred_check_branch
      %345 = sbr.rel (0) target = $region149
    $region148: #{tpu_custom_call.1} parent=1 // pred_region
      %346 = dma.done [#allocation24], 1024
    $region149: #{tpu_custom_call.1} parent=1 // pred_fallthru
      _
    // Predicated region
    $region150: #{tpu_custom_call.1} parent=1 // pred_check
      _
    $region151: #{tpu_custom_call.1} parent=1 // pred_check_branch
      %348 = sbr.rel (0) target = $region153
    $region152: #{tpu_custom_call.1} parent=1 // pred_region
      %349 = dma.done [#allocation24], 64
    $region153: #{tpu_custom_call.1} parent=1 // pred_fallthru
      _
    // Predicated region
    $region154: #{tpu_custom_call.1} parent=1 // pred_check
      _
    $region155: #{tpu_custom_call.1} parent=1 // pred_check_branch
      %351 = sbr.rel (0) target = $region157
    $region156: #{tpu_custom_call.1} parent=1 // pred_region
      %352 = dma.done [#allocation27], 256
    $region157: #{tpu_custom_call.1} parent=1 // pred_fallthru
      _
    // Predicated region
    $region158: #{tpu_custom_call.1} parent=1 // pred_check
      _
    $region159: #{tpu_custom_call.1} parent=1 // pred_check_branch
      %354 = sbr.rel (0) target = $region161
    $region160: #{tpu_custom_call.1} parent=1 // pred_region
      %355 = dma.done [#allocation27], 16
    $region161: #{tpu_custom_call.1} parent=1 // pred_fallthru
      _
    // Predicated region
    $region162: #{tpu_custom_call.1} parent=1 // pred_check
      _
    $region163: #{tpu_custom_call.1} parent=1 // pred_check_branch
      %357 = sbr.rel (0) target = $region165
    $region164: #{tpu_custom_call.1} parent=1 // pred_region
      %358 = dma.done [#allocation30], 256
    $region165: #{tpu_custom_call.1} parent=1 // pred_fallthru
      _
    // Predicated region
    $region166: #{tpu_custom_call.1} parent=1 // pred_check
      _
    $region167: #{tpu_custom_call.1} parent=1 // pred_check_branch
      %360 = sbr.rel (0) target = $region169
    $region168: #{tpu_custom_call.1} parent=1 // pred_region
      %361 = dma.done [#allocation30], 16
    $region169: #{tpu_custom_call.1} parent=1 // pred_fallthru
      _
    // Predicated region
    $region170: #{tpu_custom_call.1} parent=1 // pred_check
      _
    $region171: #{tpu_custom_call.1} parent=1 // pred_check_branch
      %363 = sbr.rel (0) target = $region173
    $region172: #{tpu_custom_call.1} parent=1 // pred_region
      %364 = dma.done [#allocation33], 512
    $region173: #{tpu_custom_call.1} parent=1 // pred_fallthru
      _
    // Predicated region
    $region174: #{tpu_custom_call.1} parent=1 // pred_check
      _
    $region175: #{tpu_custom_call.1} parent=1 // pred_check_branch
      %366 = sbr.rel (0) target = $region177
    $region176: #{tpu_custom_call.1} parent=1 // pred_region
      %367 = dma.done [#allocation33], 16
    $region177: #{tpu_custom_call.1} parent=1 // pred_fallthru
      _
    // Predicated region
    $region178: #{tpu_custom_call.1} parent=1 // pred_check
      _
    $region179: #{tpu_custom_call.1} parent=1 // pred_check_branch
      %369 = sbr.rel (0) target = $region181
    $region180: #{tpu_custom_call.1} parent=1 // pred_region
      %370 = dma.done [#allocation36], 64
    $region181: #{tpu_custom_call.1} parent=1 // pred_fallthru
      _
    // Predicated region
    $region182: #{tpu_custom_call.1} parent=1 // pred_check
      _
    $region183: #{tpu_custom_call.1} parent=1 // pred_check_branch
      %372 = sbr.rel (0) target = $region185
    $region184: #{tpu_custom_call.1} parent=1 // pred_region
      %373 = dma.done [#allocation36], 64
    $region185: #{tpu_custom_call.1} parent=1 // pred_fallthru
      _
    %v375 = vld [vmem:[#allocation2] sm:$0xff]
    %v376 = vld [vmem:[#allocation2 + $0x8] sm:$0xff]
    %v377 = vld [vmem:[#allocation5] sm:$0xff]
    %v378 = vld [vmem:[#allocation5 + $0x8] sm:$0xff]
    %v379 = vld [vmem:[#allocation7] sm:$0x1]
    %v380 = vld [vmem:[#allocation7 + $0x1] sm:$0x1]
    %v381 = vld [vmem:[#allocation35] sm:$0x1]
    %v382 = vld [vmem:[#allocation37] sm:$0x1]
    %vm383 = vcmask 261120
    %v384 = vsel %vm383, %v375, 0.0
    %385 = vadd.xlane.f32.xlu0 %v384
    %v386 = vpop.xlane.xlu0 %385
    %v387 = vsel %vm383, %v376, 0.0
    %388 = vadd.xlane.f32.xlu0 %v387
    %v389 = vpop.xlane.xlu0 %388
    %v390 = vrcp.pop 32.0
    %v391 = vmul.f32 %v386, %v390
    %v392 = vmul.f32 %v389, %v390
    %v393 = vsub.f32 %v375, %v391
    %v394 = vsub.f32 %v376, %v392
    %v395 = vmul.f32 %v393, %v393
    %v396 = vmul.f32 %v394, %v394
    %v397 = vsel %vm383, %v395, 0.0
    %398 = vadd.xlane.f32.xlu0 %v397
    %v399 = vpop.xlane.xlu0 %398
    %v400 = vsel %vm383, %v396, 0.0
    %401 = vadd.xlane.f32.xlu0 %v400
    %v402 = vpop.xlane.xlu0 %401
    %v403 = vmul.f32 %v399, %v390
    %v404 = vmul.f32 %v402, %v390
    %v405 = vadd.f32 %v403, 1e-05
    %v406 = vadd.f32 %v404, 1e-05
    %v407 = vrsqrt.pop %v405
    %v408 = vrsqrt.pop %v406
    %v409 = vmul.f32 %v393, %v407
    %v410 = vmul.f32 %v394, %v408
    %v411 = vlaneseq
    %v412 = vshrl.u32 %v411, 7
    %v413 = vsub.s32 0, %v412
    %v414 = vrot.slane %v381, %v413
    %v415 = vmul.f32 %v409, %v414
    %v416 = vmul.f32 %v410, %v414
    %v417 = vlaneseq
    %v418 = vshrl.u32 %v417, 7
    %v419 = vsub.s32 0, %v418
    %v420 = vrot.slane %v382, %v419
    %v421 = vadd.f32 %v415, %v420
    %v422 = vadd.f32 %v416, %v420
    %v423 = vpack.c.bf16 %v422, %v421
    %v424 = vld [vmem:[#allocation11] sm:$0xf]
    %v425 = vld [vmem:[#allocation11 + $0x4] sm:$0xf]
    %v426 = vld [vmem:[#allocation11 + $0x8] sm:$0xf]
    %v427 = vld [vmem:[#allocation11 + $0xc] sm:$0xf]
    %v428 = vld [vmem:[#allocation16] sm:$0x1]
    %v430 = vlaneseq
    %v431 = vshrl.u32 %v430, 7
    %v432 = vsub.s32 0, %v431
    %v433 = vrot.slane %v428, %v432
    %v439 = vunpack.c.l.b16 %v424
    %v440 = vunpack.c.l.b16 %v425
    %v441 = vunpack.c.l.b16 %v426
    %v442 = vunpack.c.l.b16 %v427
    %v443 = vpack.c.b16 %v440, %v439
    %v444 = vpack.c.b16 %v442, %v441
    %v448 = vsel %vm383, %v423, 0
    %450 = vmatprep.subr.bf16.mxu0 0
    %451 = vmatpush1.bf16.msra.mxu0 %v443
    %452 = vmatprep.subr.bf16.mxu0 0
    %453 = vmatpush1.bf16.msra.mxu0 %v444
    %454 = vmatprep.subr.bf16.mxu0 0
    %455 = vmatpush1.bf16.msra.mxu0 0
    %456 = vmatprep.subr.bf16.mxu0 0
    %457 = vmatpush1.bf16.msra.mxu0 0
    %458 = vmatprep.subr.bf16.mxu0 0
    %459 = vmatpush1.bf16.msra.mxu0 0
    %460 = vmatprep.subr.bf16.mxu0 0
    %461 = vmatpush1.bf16.msra.mxu0 0
    %462 = vmatprep.subr.bf16.mxu0 0
    %463 = vmatpush1.bf16.msra.mxu0 0
    %464 = vmatprep.subr.bf16.mxu0 0
    %465 = vmatpush1.bf16.msra.mxu0 0
    %466 = vmatprep.subr.bf16.mxu0 0
    %467 = vmatpush1.bf16.msra.mxu0 0
    %468 = vmatprep.subr.bf16.mxu0 0
    %469 = vmatpush1.bf16.msra.mxu0 0
    %470 = vmatprep.subr.bf16.mxu0 0
    %471 = vmatpush1.bf16.msra.mxu0 0
    %472 = vmatprep.subr.bf16.mxu0 0
    %473 = vmatpush1.bf16.msra.mxu0 0
    %474 = vmatprep.subr.bf16.mxu0 0
    %475 = vmatpush1.bf16.msra.mxu0 0
    %476 = vmatprep.subr.bf16.mxu0 0
    %477 = vmatpush1.bf16.msra.mxu0 0
    %478 = vmatprep.subr.bf16.mxu0 0
    %479 = vmatpush1.bf16.msra.mxu0 0
    %480 = vmatprep.subr.bf16.mxu0 0
    %481 = vmatpush1.bf16.msra.mxu0 0
    %482 = vmatprep.mubr.bf16.mxu0 0
    %483 = vmatmul.mubr.bf16.gmra.mrb[0].mxu0 %v448
    %v484 = vpop.f32.mrb[0].mxu0
    %v485 = vadd.f32 %v433, %v484
    %v486 = vpop.f32.mrb[0].mxu0
    %v487 = vpop.f32.mrb[0].mxu0
    %v488 = vadd.f32 %v433, %v487
    %v489 = vpop.f32.mrb[0].mxu0
    %490 = vdwg.mxu0
    %v491 = vld [vmem:[#allocation13] sm:$0xf]
    %v492 = vld [vmem:[#allocation13 + $0x4] sm:$0xf]
    %v493 = vld [vmem:[#allocation13 + $0x8] sm:$0xf]
    %v494 = vld [vmem:[#allocation13 + $0xc] sm:$0xf]
    %v495 = vld [vmem:[#allocation17] sm:$0x1]
    %v497 = vlaneseq
    %v498 = vshrl.u32 %v497, 7
    %v499 = vsub.s32 0, %v498
    %v500 = vrot.slane %v495, %v499
    %v506 = vunpack.c.l.b16 %v491
    %v507 = vunpack.c.l.b16 %v492
    %v508 = vunpack.c.l.b16 %v493
    %v509 = vunpack.c.l.b16 %v494
    %v510 = vpack.c.b16 %v507, %v506
    %v511 = vpack.c.b16 %v509, %v508
    %514 = vmatprep.subr.bf16.mxu0 0
    %515 = vmatpush1.bf16.msra.mxu0 %v510
    %516 = vmatprep.subr.bf16.mxu0 0
    %517 = vmatpush1.bf16.msra.mxu0 %v511
    %518 = vmatprep.subr.bf16.mxu0 0
    %519 = vmatpush1.bf16.msra.mxu0 0
    %520 = vmatprep.subr.bf16.mxu0 0
    %521 = vmatpush1.bf16.msra.mxu0 0
    %522 = vmatprep.subr.bf16.mxu0 0
    %523 = vmatpush1.bf16.msra.mxu0 0
    %524 = vmatprep.subr.bf16.mxu0 0
    %525 = vmatpush1.bf16.msra.mxu0 0
    %526 = vmatprep.subr.bf16.mxu0 0
    %527 = vmatpush1.bf16.msra.mxu0 0
    %528 = vmatprep.subr.bf16.mxu0 0
    %529 = vmatpush1.bf16.msra.mxu0 0
    %530 = vmatprep.subr.bf16.mxu0 0
    %531 = vmatpush1.bf16.msra.mxu0 0
    %532 = vmatprep.subr.bf16.mxu0 0
    %533 = vmatpush1.bf16.msra.mxu0 0
    %534 = vmatprep.subr.bf16.mxu0 0
    %535 = vmatpush1.bf16.msra.mxu0 0
    %536 = vmatprep.subr.bf16.mxu0 0
    %537 = vmatpush1.bf16.msra.mxu0 0
    %538 = vmatprep.subr.bf16.mxu0 0
    %539 = vmatpush1.bf16.msra.mxu0 0
    %540 = vmatprep.subr.bf16.mxu0 0
    %541 = vmatpush1.bf16.msra.mxu0 0
    %542 = vmatprep.subr.bf16.mxu0 0
    %543 = vmatpush1.bf16.msra.mxu0 0
    %544 = vmatprep.subr.bf16.mxu0 0
    %545 = vmatpush1.bf16.msra.mxu0 0
    %546 = vmatprep.mubr.bf16.mxu0 0
    %547 = vmatmul.mubr.bf16.gmra.mrb[0].mxu0 %v448
    %v548 = vpop.f32.mrb[0].mxu0
    %v549 = vadd.f32 %v500, %v548
    %v550 = vpop.f32.mrb[0].mxu0
    %v551 = vpop.f32.mrb[0].mxu0
    %v552 = vadd.f32 %v500, %v551
    %v553 = vpop.f32.mrb[0].mxu0
    %554 = vdwg.mxu0
    %v555 = vld [vmem:[#allocation14] sm:$0xf]
    %v556 = vld [vmem:[#allocation14 + $0x4] sm:$0xf]
    %v557 = vld [vmem:[#allocation14 + $0x8] sm:$0xf]
    %v558 = vld [vmem:[#allocation14 + $0xc] sm:$0xf]
    %v559 = vld [vmem:[#allocation19] sm:$0x1]
    %v561 = vlaneseq
    %v562 = vshrl.u32 %v561, 7
    %v563 = vsub.s32 0, %v562
    %v564 = vrot.slane %v559, %v563
    %v570 = vunpack.c.l.b16 %v555
    %v571 = vunpack.c.l.b16 %v556
    %v572 = vunpack.c.l.b16 %v557
    %v573 = vunpack.c.l.b16 %v558
    %v574 = vpack.c.b16 %v571, %v570
    %v575 = vpack.c.b16 %v573, %v572
    %578 = vmatprep.subr.bf16.mxu0 0
    %579 = vmatpush1.bf16.msra.mxu0 %v574
    %580 = vmatprep.subr.bf16.mxu0 0
    %581 = vmatpush1.bf16.msra.mxu0 %v575
    %582 = vmatprep.subr.bf16.mxu0 0
    %583 = vmatpush1.bf16.msra.mxu0 0
    %584 = vmatprep.subr.bf16.mxu0 0
    %585 = vmatpush1.bf16.msra.mxu0 0
    %586 = vmatprep.subr.bf16.mxu0 0
    %587 = vmatpush1.bf16.msra.mxu0 0
    %588 = vmatprep.subr.bf16.mxu0 0
    %589 = vmatpush1.bf16.msra.mxu0 0
    %590 = vmatprep.subr.bf16.mxu0 0
    %591 = vmatpush1.bf16.msra.mxu0 0
    %592 = vmatprep.subr.bf16.mxu0 0
    %593 = vmatpush1.bf16.msra.mxu0 0
    %594 = vmatprep.subr.bf16.mxu0 0
    %595 = vmatpush1.bf16.msra.mxu0 0
    %596 = vmatprep.subr.bf16.mxu0 0
    %597 = vmatpush1.bf16.msra.mxu0 0
    %598 = vmatprep.subr.bf16.mxu0 0
    %599 = vmatpush1.bf16.msra.mxu0 0
    %600 = vmatprep.subr.bf16.mxu0 0
    %601 = vmatpush1.bf16.msra.mxu0 0
    %602 = vmatprep.subr.bf16.mxu0 0
    %603 = vmatpush1.bf16.msra.mxu0 0
    %604 = vmatprep.subr.bf16.mxu0 0
    %605 = vmatpush1.bf16.msra.mxu0 0
    %606 = vmatprep.subr.bf16.mxu0 0
    %607 = vmatpush1.bf16.msra.mxu0 0
    %608 = vmatprep.subr.bf16.mxu0 0
    %609 = vmatpush1.bf16.msra.mxu0 0
    %610 = vmatprep.mubr.bf16.mxu0 0
    %611 = vmatmul.mubr.bf16.gmra.mrb[0].mxu0 %v448
    %v612 = vpop.f32.mrb[0].mxu0
    %v613 = vadd.f32 %v564, %v612
    %v614 = vpop.f32.mrb[0].mxu0
    %v615 = vpop.f32.mrb[0].mxu0
    %v616 = vadd.f32 %v564, %v615
    %v617 = vpop.f32.mrb[0].mxu0
    %618 = vdwg.mxu0
    %v619 = vpack.c.bf16 %v485, %v485
    %v620 = vpack.c.bf16 %v488, %v488
    %v621 = vpack.c.bf16 %v549, %v549
    %v622 = vpack.c.bf16 %v552, %v552
    %v623 = vpack.c.bf16 %v613, %v613
    %v624 = vpack.c.bf16 %v616, %v616
    %vm625 = vcmask 64512
    %v627 = vsel %vm625, %v619, 0
    %v630 = vsel %vm625, %v621, 0
    %632 = vmatprep.subr.bf16.mxu0 0
    %633 = vmatpush1.bf16.xpose.msra.mxu0 %v630
    %634 = vmatprep.subr.bf16.mxu0 0
    %635 = vmatpush1.bf16.xpose.msra.mxu0 0
    %636 = vmatprep.subr.bf16.mxu0 0
    %637 = vmatpush1.bf16.xpose.msra.mxu0 0
    %638 = vmatprep.subr.bf16.mxu0 0
    %639 = vmatpush1.bf16.xpose.msra.mxu0 0
    %640 = vmatprep.subr.bf16.mxu0 0
    %641 = vmatpush1.bf16.xpose.msra.mxu0 0
    %642 = vmatprep.subr.bf16.mxu0 0
    %643 = vmatpush1.bf16.xpose.msra.mxu0 0
    %644 = vmatprep.subr.bf16.mxu0 0
    %645 = vmatpush1.bf16.xpose.msra.mxu0 0
    %646 = vmatprep.subr.bf16.mxu0 0
    %647 = vmatpush1.bf16.xpose.msra.mxu0 0
    %648 = vmatprep.subr.bf16.mxu0 0
    %649 = vmatpush1.bf16.xpose.msra.mxu0 0
    %650 = vmatprep.subr.bf16.mxu0 0
    %651 = vmatpush1.bf16.xpose.msra.mxu0 0
    %652 = vmatprep.subr.bf16.mxu0 0
    %653 = vmatpush1.bf16.xpose.msra.mxu0 0
    %654 = vmatprep.subr.bf16.mxu0 0
    %655 = vmatpush1.bf16.xpose.msra.mxu0 0
    %656 = vmatprep.subr.bf16.mxu0 0
    %657 = vmatpush1.bf16.xpose.msra.mxu0 0
    %658 = vmatprep.subr.bf16.mxu0 0
    %659 = vmatpush1.bf16.xpose.msra.mxu0 0
    %660 = vmatprep.subr.bf16.mxu0 0
    %661 = vmatpush1.bf16.xpose.msra.mxu0 0
    %662 = vmatprep.subr.bf16.mxu0 0
    %663 = vmatpush1.bf16.xpose.msra.mxu0 0
    %664 = vmatprep.mubr.bf16.mxu0 0
    %665 = vmatmul.mubr.bf16.gmra.mrb[0].mxu0 %v627
    %v666 = vpop.f32.mrb[0].mxu0
    %v667 = vadd.f32 0.0, %v666
    %v668 = vpop.f32.mrb[0].mxu0
    %v669 = vpop.f32.mrb[0].mxu0
    %v670 = vpop.f32.mrb[0].mxu0
    %671 = vdwg.mxu0
    %v673 = vsel %vm625, %v620, 0
    %v676 = vsel %vm625, %v622, 0
    %678 = vmatprep.subr.bf16.mxu0 0
    %679 = vmatpush1.bf16.xpose.msra.mxu0 %v676
    %680 = vmatprep.subr.bf16.mxu0 0
    %681 = vmatpush1.bf16.xpose.msra.mxu0 0
    %682 = vmatprep.subr.bf16.mxu0 0
    %683 = vmatpush1.bf16.xpose.msra.mxu0 0
    %684 = vmatprep.subr.bf16.mxu0 0
    %685 = vmatpush1.bf16.xpose.msra.mxu0 0
    %686 = vmatprep.subr.bf16.mxu0 0
    %687 = vmatpush1.bf16.xpose.msra.mxu0 0
    %688 = vmatprep.subr.bf16.mxu0 0
    %689 = vmatpush1.bf16.xpose.msra.mxu0 0
    %690 = vmatprep.subr.bf16.mxu0 0
    %691 = vmatpush1.bf16.xpose.msra.mxu0 0
    %692 = vmatprep.subr.bf16.mxu0 0
    %693 = vmatpush1.bf16.xpose.msra.mxu0 0
    %694 = vmatprep.subr.bf16.mxu0 0
    %695 = vmatpush1.bf16.xpose.msra.mxu0 0
    %696 = vmatprep.subr.bf16.mxu0 0
    %697 = vmatpush1.bf16.xpose.msra.mxu0 0
    %698 = vmatprep.subr.bf16.mxu0 0
    %699 = vmatpush1.bf16.xpose.msra.mxu0 0
    %700 = vmatprep.subr.bf16.mxu0 0
    %701 = vmatpush1.bf16.xpose.msra.mxu0 0
    %702 = vmatprep.subr.bf16.mxu0 0
    %703 = vmatpush1.bf16.xpose.msra.mxu0 0
    %704 = vmatprep.subr.bf16.mxu0 0
    %705 = vmatpush1.bf16.xpose.msra.mxu0 0
    %706 = vmatprep.subr.bf16.mxu0 0
    %707 = vmatpush1.bf16.xpose.msra.mxu0 0
    %708 = vmatprep.subr.bf16.mxu0 0
    %709 = vmatpush1.bf16.xpose.msra.mxu0 0
    %710 = vmatprep.mubr.bf16.mxu0 0
    %711 = vmatmul.mubr.bf16.gmra.mrb[0].mxu0 %v673
    %v712 = vpop.f32.mrb[0].mxu0
    %v713 = vadd.f32 0.0, %v712
    %v714 = vpop.f32.mrb[0].mxu0
    %v715 = vpop.f32.mrb[0].mxu0
    %v716 = vpop.f32.mrb[0].mxu0
    %717 = vdwg.mxu0
    %v718 = vmul.f32 %v667, 0.35355338
    %v719 = vmul.f32 %v713, 0.35355338
    %vm720 = vcmp.eq.f32.partialorder %v377, 0.0
    %vm721 = vcmp.eq.f32.partialorder %v378, 0.0
    %v722 = vsel %vm720, -65500.0, %v718
    %v723 = vsel %vm721, -65500.0, %v719
    %v724 = vsel %vm625, %v722, -inf
    %725 = vmax.xlane.f32.xlu0 %v724
    %v726 = vpop.xlane.xlu0 %725
    %v727 = vsel %vm625, %v723, -inf
    %728 = vmax.xlane.f32.xlu0 %v727
    %v729 = vpop.xlane.xlu0 %728
    %v730 = vsub.f32 %v722, %v726
    %v731 = vsub.f32 %v723, %v729
    %v732 = vmul.f32 %v730, 1.442695
    %v733 = vpow.pop %v732
    %v734 = vmul.f32 %v731, 1.442695
    %v735 = vpow.pop %v734
    %v736 = vsel %vm625, %v733, 0.0
    %737 = vadd.xlane.f32.xlu0 %v736
    %v738 = vpop.xlane.xlu0 %737
    %v739 = vsel %vm625, %v735, 0.0
    %740 = vadd.xlane.f32.xlu0 %v739
    %v741 = vpop.xlane.xlu0 %740
    %v742 = vrcp.pop %v738
    %v743 = vrcp.pop %v741
    %v744 = vmul.f32 %v733, %v742
    %v745 = vmul.f32 %v735, %v743
    %v746 = vpack.c.bf16 %v744, %v744
    %v747 = vpack.c.bf16 %v745, %v745
    %v749 = vsel %vm625, %v746, 0
    %vm751 = vcmask 1043456
    %v753 = vsel %vm751, %v623, 0
    %755 = vmatprep.subr.bf16.mxu0 0
    %756 = vmatpush1.bf16.msra.mxu0 %v753
    %757 = vmatprep.subr.bf16.mxu0 0
    %758 = vmatpush1.bf16.msra.mxu0 0
    %759 = vmatprep.subr.bf16.mxu0 0
    %760 = vmatpush1.bf16.msra.mxu0 0
    %761 = vmatprep.subr.bf16.mxu0 0
    %762 = vmatpush1.bf16.msra.mxu0 0
    %763 = vmatprep.subr.bf16.mxu0 0
    %764 = vmatpush1.bf16.msra.mxu0 0
    %765 = vmatprep.subr.bf16.mxu0 0
    %766 = vmatpush1.bf16.msra.mxu0 0
    %767 = vmatprep.subr.bf16.mxu0 0
    %768 = vmatpush1.bf16.msra.mxu0 0
    %769 = vmatprep.subr.bf16.mxu0 0
    %770 = vmatpush1.bf16.msra.mxu0 0
    %771 = vmatprep.subr.bf16.mxu0 0
    %772 = vmatpush1.bf16.msra.mxu0 0
    %773 = vmatprep.subr.bf16.mxu0 0
    %774 = vmatpush1.bf16.msra.mxu0 0
    %775 = vmatprep.subr.bf16.mxu0 0
    %776 = vmatpush1.bf16.msra.mxu0 0
    %777 = vmatprep.subr.bf16.mxu0 0
    %778 = vmatpush1.bf16.msra.mxu0 0
    %779 = vmatprep.subr.bf16.mxu0 0
    %780 = vmatpush1.bf16.msra.mxu0 0
    %781 = vmatprep.subr.bf16.mxu0 0
    %782 = vmatpush1.bf16.msra.mxu0 0
    %783 = vmatprep.subr.bf16.mxu0 0
    %784 = vmatpush1.bf16.msra.mxu0 0
    %785 = vmatprep.subr.bf16.mxu0 0
    %786 = vmatpush1.bf16.msra.mxu0 0
    %787 = vmatprep.mubr.bf16.mxu0 0
    %788 = vmatmul.mubr.bf16.gmra.mrb[0].mxu0 %v749
    %v789 = vpop.f32.mrb[0].mxu0
    %v790 = vadd.f32 0.0, %v789
    %v791 = vpop.f32.mrb[0].mxu0
    %v792 = vpop.f32.mrb[0].mxu0
    %v793 = vpop.f32.mrb[0].mxu0
    %794 = vdwg.mxu0
    %v796 = vsel %vm625, %v747, 0
    %v799 = vsel %vm751, %v624, 0
    %801 = vmatprep.subr.bf16.mxu0 0
    %802 = vmatpush1.bf16.msra.mxu0 %v799
    %803 = vmatprep.subr.bf16.mxu0 0
    %804 = vmatpush1.bf16.msra.mxu0 0
    %805 = vmatprep.subr.bf16.mxu0 0
    %806 = vmatpush1.bf16.msra.mxu0 0
    %807 = vmatprep.subr.bf16.mxu0 0
    %808 = vmatpush1.bf16.msra.mxu0 0
    %809 = vmatprep.subr.bf16.mxu0 0
    %810 = vmatpush1.bf16.msra.mxu0 0
    %811 = vmatprep.subr.bf16.mxu0 0
    %812 = vmatpush1.bf16.msra.mxu0 0
    %813 = vmatprep.subr.bf16.mxu0 0
    %814 = vmatpush1.bf16.msra.mxu0 0
    %815 = vmatprep.subr.bf16.mxu0 0
    %816 = vmatpush1.bf16.msra.mxu0 0
    %817 = vmatprep.subr.bf16.mxu0 0
    %818 = vmatpush1.bf16.msra.mxu0 0
    %819 = vmatprep.subr.bf16.mxu0 0
    %820 = vmatpush1.bf16.msra.mxu0 0
    %821 = vmatprep.subr.bf16.mxu0 0
    %822 = vmatpush1.bf16.msra.mxu0 0
    %823 = vmatprep.subr.bf16.mxu0 0
    %824 = vmatpush1.bf16.msra.mxu0 0
    %825 = vmatprep.subr.bf16.mxu0 0
    %826 = vmatpush1.bf16.msra.mxu0 0
    %827 = vmatprep.subr.bf16.mxu0 0
    %828 = vmatpush1.bf16.msra.mxu0 0
    %829 = vmatprep.subr.bf16.mxu0 0
    %830 = vmatpush1.bf16.msra.mxu0 0
    %831 = vmatprep.subr.bf16.mxu0 0
    %832 = vmatpush1.bf16.msra.mxu0 0
    %833 = vmatprep.mubr.bf16.mxu0 0
    %834 = vmatmul.mubr.bf16.gmra.mrb[0].mxu0 %v796
    %v835 = vpop.f32.mrb[0].mxu0
    %v836 = vadd.f32 0.0, %v835
    %v837 = vpop.f32.mrb[0].mxu0
    %v838 = vpop.f32.mrb[0].mxu0
    %v839 = vpop.f32.mrb[0].mxu0
    %840 = vdwg.mxu0
    %v841 = vpack.c.bf16 %v836, %v790
    %v842 = vld [vmem:[#allocation20] sm:$0xf]
    %s843 = scalar_lea.vmem [#allocation11], 16
    %v844 = vld [vmem:[%s843] sm:$0xf]
    %v845 = vld [vmem:[%s843 + $0x4] sm:$0xf]
    %v846 = vld [vmem:[%s843 + $0x8] sm:$0xf]
    %v847 = vld [vmem:[%s843 + $0xc] sm:$0xf]
    %s848 = scalar_lea.vmem [#allocation16], 1
    %v849 = vld [vmem:[%s848] sm:$0x1]
    %v851 = vlaneseq
    %v852 = vshrl.u32 %v851, 7
    %v853 = vsub.s32 0, %v852
    %v854 = vrot.slane %v849, %v853
    %v860 = vunpack.c.l.b16 %v844
    %v861 = vunpack.c.l.b16 %v845
    %v862 = vunpack.c.l.b16 %v846
    %v863 = vunpack.c.l.b16 %v847
    %v864 = vpack.c.b16 %v861, %v860
    %v865 = vpack.c.b16 %v863, %v862
    %868 = vmatprep.subr.bf16.mxu0 0
    %869 = vmatpush1.bf16.msra.mxu0 %v864
    %870 = vmatprep.subr.bf16.mxu0 0
    %871 = vmatpush1.bf16.msra.mxu0 %v865
    %872 = vmatprep.subr.bf16.mxu0 0
    %873 = vmatpush1.bf16.msra.mxu0 0
    %874 = vmatprep.subr.bf16.mxu0 0
    %875 = vmatpush1.bf16.msra.mxu0 0
    %876 = vmatprep.subr.bf16.mxu0 0
    %877 = vmatpush1.bf16.msra.mxu0 0
    %878 = vmatprep.subr.bf16.mxu0 0
    %879 = vmatpush1.bf16.msra.mxu0 0
    %880 = vmatprep.subr.bf16.mxu0 0
    %881 = vmatpush1.bf16.msra.mxu0 0
    %882 = vmatprep.subr.bf16.mxu0 0
    %883 = vmatpush1.bf16.msra.mxu0 0
    %884 = vmatprep.subr.bf16.mxu0 0
    %885 = vmatpush1.bf16.msra.mxu0 0
    %886 = vmatprep.subr.bf16.mxu0 0
    %887 = vmatpush1.bf16.msra.mxu0 0
    %888 = vmatprep.subr.bf16.mxu0 0
    %889 = vmatpush1.bf16.msra.mxu0 0
    %890 = vmatprep.subr.bf16.mxu0 0
    %891 = vmatpush1.bf16.msra.mxu0 0
    %892 = vmatprep.subr.bf16.mxu0 0
    %893 = vmatpush1.bf16.msra.mxu0 0
    %894 = vmatprep.subr.bf16.mxu0 0
    %895 = vmatpush1.bf16.msra.mxu0 0
    %896 = vmatprep.subr.bf16.mxu0 0
    %897 = vmatpush1.bf16.msra.mxu0 0
    %898 = vmatprep.subr.bf16.mxu0 0
    %899 = vmatpush1.bf16.msra.mxu0 0
    %900 = vmatprep.mubr.bf16.mxu0 0
    %901 = vmatmul.mubr.bf16.gmra.mrb[0].mxu0 %v448
    %v902 = vpop.f32.mrb[0].mxu0
    %v903 = vadd.f32 %v854, %v902
    %v904 = vpop.f32.mrb[0].mxu0
    %v905 = vpop.f32.mrb[0].mxu0
    %v906 = vadd.f32 %v854, %v905
    %v907 = vpop.f32.mrb[0].mxu0
    %908 = vdwg.mxu0
    %s909 = scalar_lea.vmem [#allocation13], 16
    %v910 = vld [vmem:[%s909] sm:$0xf]
    %v911 = vld [vmem:[%s909 + $0x4] sm:$0xf]
    %v912 = vld [vmem:[%s909 + $0x8] sm:$0xf]
    %v913 = vld [vmem:[%s909 + $0xc] sm:$0xf]
    %s914 = scalar_lea.vmem [#allocation17], 1
    %v915 = vld [vmem:[%s914] sm:$0x1]
    %v917 = vlaneseq
    %v918 = vshrl.u32 %v917, 7
    %v919 = vsub.s32 0, %v918
    %v920 = vrot.slane %v915, %v919
    %v926 = vunpack.c.l.b16 %v910
    %v927 = vunpack.c.l.b16 %v911
    %v928 = vunpack.c.l.b16 %v912
    %v929 = vunpack.c.l.b16 %v913
    %v930 = vpack.c.b16 %v927, %v926
    %v931 = vpack.c.b16 %v929, %v928
    %934 = vmatprep.subr.bf16.mxu0 0
    %935 = vmatpush1.bf16.msra.mxu0 %v930
    %936 = vmatprep.subr.bf16.mxu0 0
    %937 = vmatpush1.bf16.msra.mxu0 %v931
    %938 = vmatprep.subr.bf16.mxu0 0
    %939 = vmatpush1.bf16.msra.mxu0 0
    %940 = vmatprep.subr.bf16.mxu0 0
    %941 = vmatpush1.bf16.msra.mxu0 0
    %942 = vmatprep.subr.bf16.mxu0 0
    %943 = vmatpush1.bf16.msra.mxu0 0
    %944 = vmatprep.subr.bf16.mxu0 0
    %945 = vmatpush1.bf16.msra.mxu0 0
    %946 = vmatprep.subr.bf16.mxu0 0
    %947 = vmatpush1.bf16.msra.mxu0 0
    %948 = vmatprep.subr.bf16.mxu0 0
    %949 = vmatpush1.bf16.msra.mxu0 0
    %950 = vmatprep.subr.bf16.mxu0 0
    %951 = vmatpush1.bf16.msra.mxu0 0
    %952 = vmatprep.subr.bf16.mxu0 0
    %953 = vmatpush1.bf16.msra.mxu0 0
    %954 = vmatprep.subr.bf16.mxu0 0
    %955 = vmatpush1.bf16.msra.mxu0 0
    %956 = vmatprep.subr.bf16.mxu0 0
    %957 = vmatpush1.bf16.msra.mxu0 0
    %958 = vmatprep.subr.bf16.mxu0 0
    %959 = vmatpush1.bf16.msra.mxu0 0
    %960 = vmatprep.subr.bf16.mxu0 0
    %961 = vmatpush1.bf16.msra.mxu0 0
    %962 = vmatprep.subr.bf16.mxu0 0
    %963 = vmatpush1.bf16.msra.mxu0 0
    %964 = vmatprep.subr.bf16.mxu0 0
    %965 = vmatpush1.bf16.msra.mxu0 0
    %966 = vmatprep.mubr.bf16.mxu0 0
    %967 = vmatmul.mubr.bf16.gmra.mrb[0].mxu0 %v448
    %v968 = vpop.f32.mrb[0].mxu0
    %v969 = vadd.f32 %v920, %v968
    %v970 = vpop.f32.mrb[0].mxu0
    %v971 = vpop.f32.mrb[0].mxu0
    %v972 = vadd.f32 %v920, %v971
    %v973 = vpop.f32.mrb[0].mxu0
    %974 = vdwg.mxu0
    %s975 = scalar_lea.vmem [#allocation14], 16
    %v976 = vld [vmem:[%s975] sm:$0xf]
    %v977 = vld [vmem:[%s975 + $0x4] sm:$0xf]
    %v978 = vld [vmem:[%s975 + $0x8] sm:$0xf]
    %v979 = vld [vmem:[%s975 + $0xc] sm:$0xf]
    %s980 = scalar_lea.vmem [#allocation19], 1
    %v981 = vld [vmem:[%s980] sm:$0x1]
    %v983 = vlaneseq
    %v984 = vshrl.u32 %v983, 7
    %v985 = vsub.s32 0, %v984
    %v986 = vrot.slane %v981, %v985
    %v992 = vunpack.c.l.b16 %v976
    %v993 = vunpack.c.l.b16 %v977
    %v994 = vunpack.c.l.b16 %v978
    %v995 = vunpack.c.l.b16 %v979
    %v996 = vpack.c.b16 %v993, %v992
    %v997 = vpack.c.b16 %v995, %v994
    %1000 = vmatprep.subr.bf16.mxu0 0
    %1001 = vmatpush1.bf16.msra.mxu0 %v996
    %1002 = vmatprep.subr.bf16.mxu0 0
    %1003 = vmatpush1.bf16.msra.mxu0 %v997
    %1004 = vmatprep.subr.bf16.mxu0 0
    %1005 = vmatpush1.bf16.msra.mxu0 0
    %1006 = vmatprep.subr.bf16.mxu0 0
    %1007 = vmatpush1.bf16.msra.mxu0 0
    %1008 = vmatprep.subr.bf16.mxu0 0
    %1009 = vmatpush1.bf16.msra.mxu0 0
    %1010 = vmatprep.subr.bf16.mxu0 0
    %1011 = vmatpush1.bf16.msra.mxu0 0
    %1012 = vmatprep.subr.bf16.mxu0 0
    %1013 = vmatpush1.bf16.msra.mxu0 0
    %1014 = vmatprep.subr.bf16.mxu0 0
    %1015 = vmatpush1.bf16.msra.mxu0 0
    %1016 = vmatprep.subr.bf16.mxu0 0
    %1017 = vmatpush1.bf16.msra.mxu0 0
    %1018 = vmatprep.subr.bf16.mxu0 0
    %1019 = vmatpush1.bf16.msra.mxu0 0
    %1020 = vmatprep.subr.bf16.mxu0 0
    %1021 = vmatpush1.bf16.msra.mxu0 0
    %1022 = vmatprep.subr.bf16.mxu0 0
    %1023 = vmatpush1.bf16.msra.mxu0 0
    %1024 = vmatprep.subr.bf16.mxu0 0
    %1025 = vmatpush1.bf16.msra.mxu0 0
    %1026 = vmatprep.subr.bf16.mxu0 0
    %1027 = vmatpush1.bf16.msra.mxu0 0
    %1028 = vmatprep.subr.bf16.mxu0 0
    %1029 = vmatpush1.bf16.msra.mxu0 0
    %1030 = vmatprep.subr.bf16.mxu0 0
    %1031 = vmatpush1.bf16.msra.mxu0 0
    %1032 = vmatprep.mubr.bf16.mxu0 0
    %1033 = vmatmul.mubr.bf16.gmra.mrb[0].mxu0 %v448
    %v1034 = vpop.f32.mrb[0].mxu0
    %v1035 = vadd.f32 %v986, %v1034
    %v1036 = vpop.f32.mrb[0].mxu0
    %v1037 = vpop.f32.mrb[0].mxu0
    %v1038 = vadd.f32 %v986, %v1037
    %v1039 = vpop.f32.mrb[0].mxu0
    %1040 = vdwg.mxu0
    %v1041 = vpack.c.bf16 %v903, %v903
    %v1042 = vpack.c.bf16 %v906, %v906
    %v1043 = vpack.c.bf16 %v969, %v969
    %v1044 = vpack.c.bf16 %v972, %v972
    %v1045 = vpack.c.bf16 %v1035, %v1035
    %v1046 = vpack.c.bf16 %v1038, %v1038
    %v1048 = vsel %vm625, %v1041, 0
    %v1051 = vsel %vm625, %v1043, 0
    %1053 = vmatprep.subr.bf16.mxu0 0
    %1054 = vmatpush1.bf16.xpose.msra.mxu0 %v1051
    %1055 = vmatprep.subr.bf16.mxu0 0
    %1056 = vmatpush1.bf16.xpose.msra.mxu0 0
    %1057 = vmatprep.subr.bf16.mxu0 0
    %1058 = vmatpush1.bf16.xpose.msra.mxu0 0
    %1059 = vmatprep.subr.bf16.mxu0 0
    %1060 = vmatpush1.bf16.xpose.msra.mxu0 0
    %1061 = vmatprep.subr.bf16.mxu0 0
    %1062 = vmatpush1.bf16.xpose.msra.mxu0 0
    %1063 = vmatprep.subr.bf16.mxu0 0
    %1064 = vmatpush1.bf16.xpose.msra.mxu0 0
    %1065 = vmatprep.subr.bf16.mxu0 0
    %1066 = vmatpush1.bf16.xpose.msra.mxu0 0
    %1067 = vmatprep.subr.bf16.mxu0 0
    %1068 = vmatpush1.bf16.xpose.msra.mxu0 0
    %1069 = vmatprep.subr.bf16.mxu0 0
    %1070 = vmatpush1.bf16.xpose.msra.mxu0 0
    %1071 = vmatprep.subr.bf16.mxu0 0
    %1072 = vmatpush1.bf16.xpose.msra.mxu0 0
    %1073 = vmatprep.subr.bf16.mxu0 0
    %1074 = vmatpush1.bf16.xpose.msra.mxu0 0
    %1075 = vmatprep.subr.bf16.mxu0 0
    %1076 = vmatpush1.bf16.xpose.msra.mxu0 0
    %1077 = vmatprep.subr.bf16.mxu0 0
    %1078 = vmatpush1.bf16.xpose.msra.mxu0 0
    %1079 = vmatprep.subr.bf16.mxu0 0
    %1080 = vmatpush1.bf16.xpose.msra.mxu0 0
    %1081 = vmatprep.subr.bf16.mxu0 0
    %1082 = vmatpush1.bf16.xpose.msra.mxu0 0
    %1083 = vmatprep.subr.bf16.mxu0 0
    %1084 = vmatpush1.bf16.xpose.msra.mxu0 0
    %1085 = vmatprep.mubr.bf16.mxu0 0
    %1086 = vmatmul.mubr.bf16.gmra.mrb[0].mxu0 %v1048
    %v1087 = vpop.f32.mrb[0].mxu0
    %v1088 = vadd.f32 0.0, %v1087
    %v1089 = vpop.f32.mrb[0].mxu0
    %v1090 = vpop.f32.mrb[0].mxu0
    %v1091 = vpop.f32.mrb[0].mxu0
    %1092 = vdwg.mxu0
    %v1094 = vsel %vm625, %v1042, 0
    %v1097 = vsel %vm625, %v1044, 0
    %1099 = vmatprep.subr.bf16.mxu0 0
    %1100 = vmatpush1.bf16.xpose.msra.mxu0 %v1097
    %1101 = vmatprep.subr.bf16.mxu0 0
    %1102 = vmatpush1.bf16.xpose.msra.mxu0 0
    %1103 = vmatprep.subr.bf16.mxu0 0
    %1104 = vmatpush1.bf16.xpose.msra.mxu0 0
    %1105 = vmatprep.subr.bf16.mxu0 0
    %1106 = vmatpush1.bf16.xpose.msra.mxu0 0
    %1107 = vmatprep.subr.bf16.mxu0 0
    %1108 = vmatpush1.bf16.xpose.msra.mxu0 0
    %1109 = vmatprep.subr.bf16.mxu0 0
    %1110 = vmatpush1.bf16.xpose.msra.mxu0 0
    %1111 = vmatprep.subr.bf16.mxu0 0
    %1112 = vmatpush1.bf16.xpose.msra.mxu0 0
    %1113 = vmatprep.subr.bf16.mxu0 0
    %1114 = vmatpush1.bf16.xpose.msra.mxu0 0
    %1115 = vmatprep.subr.bf16.mxu0 0
    %1116 = vmatpush1.bf16.xpose.msra.mxu0 0
    %1117 = vmatprep.subr.bf16.mxu0 0
    %1118 = vmatpush1.bf16.xpose.msra.mxu0 0
    %1119 = vmatprep.subr.bf16.mxu0 0
    %1120 = vmatpush1.bf16.xpose.msra.mxu0 0
    %1121 = vmatprep.subr.bf16.mxu0 0
    %1122 = vmatpush1.bf16.xpose.msra.mxu0 0
    %1123 = vmatprep.subr.bf16.mxu0 0
    %1124 = vmatpush1.bf16.xpose.msra.mxu0 0
    %1125 = vmatprep.subr.bf16.mxu0 0
    %1126 = vmatpush1.bf16.xpose.msra.mxu0 0
    %1127 = vmatprep.subr.bf16.mxu0 0
    %1128 = vmatpush1.bf16.xpose.msra.mxu0 0
    %1129 = vmatprep.subr.bf16.mxu0 0
    %1130 = vmatpush1.bf16.xpose.msra.mxu0 0
    %1131 = vmatprep.mubr.bf16.mxu0 0
    %1132 = vmatmul.mubr.bf16.gmra.mrb[0].mxu0 %v1094
    %v1133 = vpop.f32.mrb[0].mxu0
    %v1134 = vadd.f32 0.0, %v1133
    %v1135 = vpop.f32.mrb[0].mxu0
    %v1136 = vpop.f32.mrb[0].mxu0
    %v1137 = vpop.f32.mrb[0].mxu0
    %1138 = vdwg.mxu0
    %v1139 = vmul.f32 %v1088, 0.35355338
    %v1140 = vmul.f32 %v1134, 0.35355338
    %v1141 = vsel %vm720, -65500.0, %v1139
    %v1142 = vsel %vm721, -65500.0, %v1140
    %v1143 = vsel %vm625, %v1141, -inf
    %1144 = vmax.xlane.f32.xlu0 %v1143
    %v1145 = vpop.xlane.xlu0 %1144
    %v1146 = vsel %vm625, %v1142, -inf
    %1147 = vmax.xlane.f32.xlu0 %v1146
    %v1148 = vpop.xlane.xlu0 %1147
    %v1149 = vsub.f32 %v1141, %v1145
    %v1150 = vsub.f32 %v1142, %v1148
    %v1151 = vmul.f32 %v1149, 1.442695
    %v1152 = vpow.pop %v1151
    %v1153 = vmul.f32 %v1150, 1.442695
    %v1154 = vpow.pop %v1153
    %v1155 = vsel %vm625, %v1152, 0.0
    %1156 = vadd.xlane.f32.xlu0 %v1155
    %v1157 = vpop.xlane.xlu0 %1156
    %v1158 = vsel %vm625, %v1154, 0.0
    %1159 = vadd.xlane.f32.xlu0 %v1158
    %v1160 = vpop.xlane.xlu0 %1159
    %v1161 = vrcp.pop %v1157
    %v1162 = vrcp.pop %v1160
    %v1163 = vmul.f32 %v1152, %v1161
    %v1164 = vmul.f32 %v1154, %v1162
    %v1165 = vpack.c.bf16 %v1163, %v1163
    %v1166 = vpack.c.bf16 %v1164, %v1164
    %v1168 = vsel %vm625, %v1165, 0
    %v1171 = vsel %vm751, %v1045, 0
    %1173 = vmatprep.subr.bf16.mxu0 0
    %1174 = vmatpush1.bf16.msra.mxu0 %v1171
    %1175 = vmatprep.subr.bf16.mxu0 0
    %1176 = vmatpush1.bf16.msra.mxu0 0
    %1177 = vmatprep.subr.bf16.mxu0 0
    %1178 = vmatpush1.bf16.msra.mxu0 0
    %1179 = vmatprep.subr.bf16.mxu0 0
    %1180 = vmatpush1.bf16.msra.mxu0 0
    %1181 = vmatprep.subr.bf16.mxu0 0
    %1182 = vmatpush1.bf16.msra.mxu0 0
    %1183 = vmatprep.subr.bf16.mxu0 0
    %1184 = vmatpush1.bf16.msra.mxu0 0
    %1185 = vmatprep.subr.bf16.mxu0 0
    %1186 = vmatpush1.bf16.msra.mxu0 0
    %1187 = vmatprep.subr.bf16.mxu0 0
    %1188 = vmatpush1.bf16.msra.mxu0 0
    %1189 = vmatprep.subr.bf16.mxu0 0
    %1190 = vmatpush1.bf16.msra.mxu0 0
    %1191 = vmatprep.subr.bf16.mxu0 0
    %1192 = vmatpush1.bf16.msra.mxu0 0
    %1193 = vmatprep.subr.bf16.mxu0 0
    %1194 = vmatpush1.bf16.msra.mxu0 0
    %1195 = vmatprep.subr.bf16.mxu0 0
    %1196 = vmatpush1.bf16.msra.mxu0 0
    %1197 = vmatprep.subr.bf16.mxu0 0
    %1198 = vmatpush1.bf16.msra.mxu0 0
    %1199 = vmatprep.subr.bf16.mxu0 0
    %1200 = vmatpush1.bf16.msra.mxu0 0
    %1201 = vmatprep.subr.bf16.mxu0 0
    %1202 = vmatpush1.bf16.msra.mxu0 0
    %1203 = vmatprep.subr.bf16.mxu0 0
    %1204 = vmatpush1.bf16.msra.mxu0 0
    %1205 = vmatprep.mubr.bf16.mxu0 0
    %1206 = vmatmul.mubr.bf16.gmra.mrb[0].mxu0 %v1168
    %v1207 = vpop.f32.mrb[0].mxu0
    %v1208 = vadd.f32 0.0, %v1207
    %v1209 = vpop.f32.mrb[0].mxu0
    %v1210 = vpop.f32.mrb[0].mxu0
    %v1211 = vpop.f32.mrb[0].mxu0
    %1212 = vdwg.mxu0
    %v1214 = vsel %vm625, %v1166, 0
    %v1217 = vsel %vm751, %v1046, 0
    %1219 = vmatprep.subr.bf16.mxu0 0
    %1220 = vmatpush1.bf16.msra.mxu0 %v1217
    %1221 = vmatprep.subr.bf16.mxu0 0
    %1222 = vmatpush1.bf16.msra.mxu0 0
    %1223 = vmatprep.subr.bf16.mxu0 0
    %1224 = vmatpush1.bf16.msra.mxu0 0
    %1225 = vmatprep.subr.bf16.mxu0 0
    %1226 = vmatpush1.bf16.msra.mxu0 0
    %1227 = vmatprep.subr.bf16.mxu0 0
    %1228 = vmatpush1.bf16.msra.mxu0 0
    %1229 = vmatprep.subr.bf16.mxu0 0
    %1230 = vmatpush1.bf16.msra.mxu0 0
    %1231 = vmatprep.subr.bf16.mxu0 0
    %1232 = vmatpush1.bf16.msra.mxu0 0
    %1233 = vmatprep.subr.bf16.mxu0 0
    %1234 = vmatpush1.bf16.msra.mxu0 0
    %1235 = vmatprep.subr.bf16.mxu0 0
    %1236 = vmatpush1.bf16.msra.mxu0 0
    %1237 = vmatprep.subr.bf16.mxu0 0
    %1238 = vmatpush1.bf16.msra.mxu0 0
    %1239 = vmatprep.subr.bf16.mxu0 0
    %1240 = vmatpush1.bf16.msra.mxu0 0
    %1241 = vmatprep.subr.bf16.mxu0 0
    %1242 = vmatpush1.bf16.msra.mxu0 0
    %1243 = vmatprep.subr.bf16.mxu0 0
    %1244 = vmatpush1.bf16.msra.mxu0 0
    %1245 = vmatprep.subr.bf16.mxu0 0
    %1246 = vmatpush1.bf16.msra.mxu0 0
    %1247 = vmatprep.subr.bf16.mxu0 0
    %1248 = vmatpush1.bf16.msra.mxu0 0
    %1249 = vmatprep.subr.bf16.mxu0 0
    %1250 = vmatpush1.bf16.msra.mxu0 0
    %1251 = vmatprep.mubr.bf16.mxu0 0
    %1252 = vmatmul.mubr.bf16.gmra.mrb[0].mxu0 %v1214
    %v1253 = vpop.f32.mrb[0].mxu0
    %v1254 = vadd.f32 0.0, %v1253
    %v1255 = vpop.f32.mrb[0].mxu0
    %v1256 = vpop.f32.mrb[0].mxu0
    %v1257 = vpop.f32.mrb[0].mxu0
    %1258 = vdwg.mxu0
    %v1259 = vpack.c.bf16 %v1254, %v1208
    %s1260 = scalar_lea.vmem [#allocation20], 4
    %v1261 = vld [vmem:[%s1260] sm:$0xf]
    %v1263 = vsel %vm625, %v1259, 0
    %v1266 = vsel %vm751, %v1261, 0
    %1268 = vmatprep.subr.bf16.mxu0 0
    %1269 = vmatpush1.bf16.msra.mxu0 %v1266
    %1270 = vmatprep.subr.bf16.mxu0 0
    %1271 = vmatpush1.bf16.msra.mxu0 0
    %1272 = vmatprep.subr.bf16.mxu0 0
    %1273 = vmatpush1.bf16.msra.mxu0 0
    %1274 = vmatprep.subr.bf16.mxu0 0
    %1275 = vmatpush1.bf16.msra.mxu0 0
    %1276 = vmatprep.subr.bf16.mxu0 0
    %1277 = vmatpush1.bf16.msra.mxu0 0
    %1278 = vmatprep.subr.bf16.mxu0 0
    %1279 = vmatpush1.bf16.msra.mxu0 0
    %1280 = vmatprep.subr.bf16.mxu0 0
    %1281 = vmatpush1.bf16.msra.mxu0 0
    %1282 = vmatprep.subr.bf16.mxu0 0
    %1283 = vmatpush1.bf16.msra.mxu0 0
    %1284 = vmatprep.subr.bf16.mxu0 0
    %1285 = vmatpush1.bf16.msra.mxu0 0
    %1286 = vmatprep.subr.bf16.mxu0 0
    %1287 = vmatpush1.bf16.msra.mxu0 0
    %1288 = vmatprep.subr.bf16.mxu0 0
    %1289 = vmatpush1.bf16.msra.mxu0 0
    %1290 = vmatprep.subr.bf16.mxu0 0
    %1291 = vmatpush1.bf16.msra.mxu0 0
    %1292 = vmatprep.subr.bf16.mxu0 0
    %1293 = vmatpush1.bf16.msra.mxu0 0
    %1294 = vmatprep.subr.bf16.mxu0 0
    %1295 = vmatpush1.bf16.msra.mxu0 0
    %1296 = vmatprep.subr.bf16.mxu0 0
    %1297 = vmatpush1.bf16.msra.mxu0 0
    %1298 = vmatprep.subr.bf16.mxu0 0
    %1299 = vmatpush1.bf16.msra.mxu0 0
    %1300 = vmatprep.mubr.bf16.mxu0 0
    %1301 = vmatmul.mubr.bf16.gmra.mrb[0].mxu0 %v1263
    %v1302 = vpop.f32.mrb[0].mxu0
    %v1303 = vadd.f32 0.0, %v1302
    %v1304 = vpop.f32.mrb[0].mxu0
    %v1305 = vpop.f32.mrb[0].mxu0
    %v1306 = vadd.f32 0.0, %v1305
    %v1307 = vpop.f32.mrb[0].mxu0
    %1308 = vdwg.mxu0
    %v1310 = vsel %vm625, %v841, 0
    %v1313 = vsel %vm751, %v842, 0
    %1315 = vmatprep.subr.bf16.mxu0 0
    %1316 = vmatpush1.bf16.msra.mxu0 %v1313
    %1317 = vmatprep.subr.bf16.mxu0 0
    %1318 = vmatpush1.bf16.msra.mxu0 0
    %1319 = vmatprep.subr.bf16.mxu0 0
    %1320 = vmatpush1.bf16.msra.mxu0 0
    %1321 = vmatprep.subr.bf16.mxu0 0
    %1322 = vmatpush1.bf16.msra.mxu0 0
    %1323 = vmatprep.subr.bf16.mxu0 0
    %1324 = vmatpush1.bf16.msra.mxu0 0
    %1325 = vmatprep.subr.bf16.mxu0 0
    %1326 = vmatpush1.bf16.msra.mxu0 0
    %1327 = vmatprep.subr.bf16.mxu0 0
    %1328 = vmatpush1.bf16.msra.mxu0 0
    %1329 = vmatprep.subr.bf16.mxu0 0
    %1330 = vmatpush1.bf16.msra.mxu0 0
    %1331 = vmatprep.subr.bf16.mxu0 0
    %1332 = vmatpush1.bf16.msra.mxu0 0
    %1333 = vmatprep.subr.bf16.mxu0 0
    %1334 = vmatpush1.bf16.msra.mxu0 0
    %1335 = vmatprep.subr.bf16.mxu0 0
    %1336 = vmatpush1.bf16.msra.mxu0 0
    %1337 = vmatprep.subr.bf16.mxu0 0
    %1338 = vmatpush1.bf16.msra.mxu0 0
    %1339 = vmatprep.subr.bf16.mxu0 0
    %1340 = vmatpush1.bf16.msra.mxu0 0
    %1341 = vmatprep.subr.bf16.mxu0 0
    %1342 = vmatpush1.bf16.msra.mxu0 0
    %1343 = vmatprep.subr.bf16.mxu0 0
    %1344 = vmatpush1.bf16.msra.mxu0 0
    %1345 = vmatprep.subr.bf16.mxu0 0
    %1346 = vmatpush1.bf16.msra.mxu0 0
    %1347 = vmatprep.mubr.bf16.mxu0 0
    %1348 = vmatmul.mubr.bf16.gmra.mrb[0].mxu0 %v1310
    %v1349 = vpop.f32.mrb[0].mxu0
    %v1350 = vadd.f32 %v1303, %v1349
    %v1351 = vpop.f32.mrb[0].mxu0
    %v1352 = vpop.f32.mrb[0].mxu0
    %v1353 = vadd.f32 %v1306, %v1352
    %v1354 = vpop.f32.mrb[0].mxu0
    %1355 = vdwg.mxu0
    %s1356 = scalar_lea.vmem [#allocation11], 32
    %v1357 = vld [vmem:[%s1356] sm:$0xf]
    %v1358 = vld [vmem:[%s1356 + $0x4] sm:$0xf]
    %v1359 = vld [vmem:[%s1356 + $0x8] sm:$0xf]
    %v1360 = vld [vmem:[%s1356 + $0xc] sm:$0xf]
    %s1361 = scalar_lea.vmem [#allocation16], 2
    %v1362 = vld [vmem:[%s1361] sm:$0x1]
    %v1364 = vlaneseq
    %v1365 = vshrl.u32 %v1364, 7
    %v1366 = vsub.s32 0, %v1365
    %v1367 = vrot.slane %v1362, %v1366
    %v1373 = vunpack.c.l.b16 %v1357
    %v1374 = vunpack.c.l.b16 %v1358
    %v1375 = vunpack.c.l.b16 %v1359
    %v1376 = vunpack.c.l.b16 %v1360
    %v1377 = vpack.c.b16 %v1374, %v1373
    %v1378 = vpack.c.b16 %v1376, %v1375
    %1381 = vmatprep.subr.bf16.mxu0 0
    %1382 = vmatpush1.bf16.msra.mxu0 %v1377
    %1383 = vmatprep.subr.bf16.mxu0 0
    %1384 = vmatpush1.bf16.msra.mxu0 %v1378
    %1385 = vmatprep.subr.bf16.mxu0 0
    %1386 = vmatpush1.bf16.msra.mxu0 0
    %1387 = vmatprep.subr.bf16.mxu0 0
    %1388 = vmatpush1.bf16.msra.mxu0 0
    %1389 = vmatprep.subr.bf16.mxu0 0
    %1390 = vmatpush1.bf16.msra.mxu0 0
    %1391 = vmatprep.subr.bf16.mxu0 0
    %1392 = vmatpush1.bf16.msra.mxu0 0
    %1393 = vmatprep.subr.bf16.mxu0 0
    %1394 = vmatpush1.bf16.msra.mxu0 0
    %1395 = vmatprep.subr.bf16.mxu0 0
    %1396 = vmatpush1.bf16.msra.mxu0 0
    %1397 = vmatprep.subr.bf16.mxu0 0
    %1398 = vmatpush1.bf16.msra.mxu0 0
    %1399 = vmatprep.subr.bf16.mxu0 0
    %1400 = vmatpush1.bf16.msra.mxu0 0
    %1401 = vmatprep.subr.bf16.mxu0 0
    %1402 = vmatpush1.bf16.msra.mxu0 0
    %1403 = vmatprep.subr.bf16.mxu0 0
    %1404 = vmatpush1.bf16.msra.mxu0 0
    %1405 = vmatprep.subr.bf16.mxu0 0
    %1406 = vmatpush1.bf16.msra.mxu0 0
    %1407 = vmatprep.subr.bf16.mxu0 0
    %1408 = vmatpush1.bf16.msra.mxu0 0
    %1409 = vmatprep.subr.bf16.mxu0 0
    %1410 = vmatpush1.bf16.msra.mxu0 0
    %1411 = vmatprep.subr.bf16.mxu0 0
    %1412 = vmatpush1.bf16.msra.mxu0 0
    %1413 = vmatprep.mubr.bf16.mxu0 0
    %1414 = vmatmul.mubr.bf16.gmra.mrb[0].mxu0 %v448
    %v1415 = vpop.f32.mrb[0].mxu0
    %v1416 = vadd.f32 %v1367, %v1415
    %v1417 = vpop.f32.mrb[0].mxu0
    %v1418 = vpop.f32.mrb[0].mxu0
    %v1419 = vadd.f32 %v1367, %v1418
    %v1420 = vpop.f32.mrb[0].mxu0
    %1421 = vdwg.mxu0
    %s1422 = scalar_lea.vmem [#allocation13], 32
    %v1423 = vld [vmem:[%s1422] sm:$0xf]
    %v1424 = vld [vmem:[%s1422 + $0x4] sm:$0xf]
    %v1425 = vld [vmem:[%s1422 + $0x8] sm:$0xf]
    %v1426 = vld [vmem:[%s1422 + $0xc] sm:$0xf]
    %s1427 = scalar_lea.vmem [#allocation17], 2
    %v1428 = vld [vmem:[%s1427] sm:$0x1]
    %v1430 = vlaneseq
    %v1431 = vshrl.u32 %v1430, 7
    %v1432 = vsub.s32 0, %v1431
    %v1433 = vrot.slane %v1428, %v1432
    %v1439 = vunpack.c.l.b16 %v1423
    %v1440 = vunpack.c.l.b16 %v1424
    %v1441 = vunpack.c.l.b16 %v1425
    %v1442 = vunpack.c.l.b16 %v1426
    %v1443 = vpack.c.b16 %v1440, %v1439
    %v1444 = vpack.c.b16 %v1442, %v1441
    %1447 = vmatprep.subr.bf16.mxu0 0
    %1448 = vmatpush1.bf16.msra.mxu0 %v1443
    %1449 = vmatprep.subr.bf16.mxu0 0
    %1450 = vmatpush1.bf16.msra.mxu0 %v1444
    %1451 = vmatprep.subr.bf16.mxu0 0
    %1452 = vmatpush1.bf16.msra.mxu0 0
    %1453 = vmatprep.subr.bf16.mxu0 0
    %1454 = vmatpush1.bf16.msra.mxu0 0
    %1455 = vmatprep.subr.bf16.mxu0 0
    %1456 = vmatpush1.bf16.msra.mxu0 0
    %1457 = vmatprep.subr.bf16.mxu0 0
    %1458 = vmatpush1.bf16.msra.mxu0 0
    %1459 = vmatprep.subr.bf16.mxu0 0
    %1460 = vmatpush1.bf16.msra.mxu0 0
    %1461 = vmatprep.subr.bf16.mxu0 0
    %1462 = vmatpush1.bf16.msra.mxu0 0
    %1463 = vmatprep.subr.bf16.mxu0 0
    %1464 = vmatpush1.bf16.msra.mxu0 0
    %1465 = vmatprep.subr.bf16.mxu0 0
    %1466 = vmatpush1.bf16.msra.mxu0 0
    %1467 = vmatprep.subr.bf16.mxu0 0
    %1468 = vmatpush1.bf16.msra.mxu0 0
    %1469 = vmatprep.subr.bf16.mxu0 0
    %1470 = vmatpush1.bf16.msra.mxu0 0
    %1471 = vmatprep.subr.bf16.mxu0 0
    %1472 = vmatpush1.bf16.msra.mxu0 0
    %1473 = vmatprep.subr.bf16.mxu0 0
    %1474 = vmatpush1.bf16.msra.mxu0 0
    %1475 = vmatprep.subr.bf16.mxu0 0
    %1476 = vmatpush1.bf16.msra.mxu0 0
    %1477 = vmatprep.subr.bf16.mxu0 0
    %1478 = vmatpush1.bf16.msra.mxu0 0
    %1479 = vmatprep.mubr.bf16.mxu0 0
    %1480 = vmatmul.mubr.bf16.gmra.mrb[0].mxu0 %v448
    %v1481 = vpop.f32.mrb[0].mxu0
    %v1482 = vadd.f32 %v1433, %v1481
    %v1483 = vpop.f32.mrb[0].mxu0
    %v1484 = vpop.f32.mrb[0].mxu0
    %v1485 = vadd.f32 %v1433, %v1484
    %v1486 = vpop.f32.mrb[0].mxu0
    %1487 = vdwg.mxu0
    %s1488 = scalar_lea.vmem [#allocation14], 32
    %v1489 = vld [vmem:[%s1488] sm:$0xf]
    %v1490 = vld [vmem:[%s1488 + $0x4] sm:$0xf]
    %v1491 = vld [vmem:[%s1488 + $0x8] sm:$0xf]
    %v1492 = vld [vmem:[%s1488 + $0xc] sm:$0xf]
    %s1493 = scalar_lea.vmem [#allocation19], 2
    %v1494 = vld [vmem:[%s1493] sm:$0x1]
    %v1496 = vlaneseq
    %v1497 = vshrl.u32 %v1496, 7
    %v1498 = vsub.s32 0, %v1497
    %v1499 = vrot.slane %v1494, %v1498
    %v1505 = vunpack.c.l.b16 %v1489
    %v1506 = vunpack.c.l.b16 %v1490
    %v1507 = vunpack.c.l.b16 %v1491
    %v1508 = vunpack.c.l.b16 %v1492
    %v1509 = vpack.c.b16 %v1506, %v1505
    %v1510 = vpack.c.b16 %v1508, %v1507
    %1513 = vmatprep.subr.bf16.mxu0 0
    %1514 = vmatpush1.bf16.msra.mxu0 %v1509
    %1515 = vmatprep.subr.bf16.mxu0 0
    %1516 = vmatpush1.bf16.msra.mxu0 %v1510
    %1517 = vmatprep.subr.bf16.mxu0 0
    %1518 = vmatpush1.bf16.msra.mxu0 0
    %1519 = vmatprep.subr.bf16.mxu0 0
    %1520 = vmatpush1.bf16.msra.mxu0 0
    %1521 = vmatprep.subr.bf16.mxu0 0
    %1522 = vmatpush1.bf16.msra.mxu0 0
    %1523 = vmatprep.subr.bf16.mxu0 0
    %1524 = vmatpush1.bf16.msra.mxu0 0
    %1525 = vmatprep.subr.bf16.mxu0 0
    %1526 = vmatpush1.bf16.msra.mxu0 0
    %1527 = vmatprep.subr.bf16.mxu0 0
    %1528 = vmatpush1.bf16.msra.mxu0 0
    %1529 = vmatprep.subr.bf16.mxu0 0
    %1530 = vmatpush1.bf16.msra.mxu0 0
    %1531 = vmatprep.subr.bf16.mxu0 0
    %1532 = vmatpush1.bf16.msra.mxu0 0
    %1533 = vmatprep.subr.bf16.mxu0 0
    %1534 = vmatpush1.bf16.msra.mxu0 0
    %1535 = vmatprep.subr.bf16.mxu0 0
    %1536 = vmatpush1.bf16.msra.mxu0 0
    %1537 = vmatprep.subr.bf16.mxu0 0
    %1538 = vmatpush1.bf16.msra.mxu0 0
    %1539 = vmatprep.subr.bf16.mxu0 0
    %1540 = vmatpush1.bf16.msra.mxu0 0
    %1541 = vmatprep.subr.bf16.mxu0 0
    %1542 = vmatpush1.bf16.msra.mxu0 0
    %1543 = vmatprep.subr.bf16.mxu0 0
    %1544 = vmatpush1.bf16.msra.mxu0 0
    %1545 = vmatprep.mubr.bf16.mxu0 0
    %1546 = vmatmul.mubr.bf16.gmra.mrb[0].mxu0 %v448
    %v1547 = vpop.f32.mrb[0].mxu0
    %v1548 = vadd.f32 %v1499, %v1547
    %v1549 = vpop.f32.mrb[0].mxu0
    %v1550 = vpop.f32.mrb[0].mxu0
    %v1551 = vadd.f32 %v1499, %v1550
    %v1552 = vpop.f32.mrb[0].mxu0
    %1553 = vdwg.mxu0
    %v1554 = vpack.c.bf16 %v1416, %v1416
    %v1555 = vpack.c.bf16 %v1419, %v1419
    %v1556 = vpack.c.bf16 %v1482, %v1482
    %v1557 = vpack.c.bf16 %v1485, %v1485
    %v1558 = vpack.c.bf16 %v1548, %v1548
    %v1559 = vpack.c.bf16 %v1551, %v1551
    %v1561 = vsel %vm625, %v1554, 0
    %v1564 = vsel %vm625, %v1556, 0
    %1566 = vmatprep.subr.bf16.mxu0 0
    %1567 = vmatpush1.bf16.xpose.msra.mxu0 %v1564
    %1568 = vmatprep.subr.bf16.mxu0 0
    %1569 = vmatpush1.bf16.xpose.msra.mxu0 0
    %1570 = vmatprep.subr.bf16.mxu0 0
    %1571 = vmatpush1.bf16.xpose.msra.mxu0 0
    %1572 = vmatprep.subr.bf16.mxu0 0
    %1573 = vmatpush1.bf16.xpose.msra.mxu0 0
    %1574 = vmatprep.subr.bf16.mxu0 0
    %1575 = vmatpush1.bf16.xpose.msra.mxu0 0
    %1576 = vmatprep.subr.bf16.mxu0 0
    %1577 = vmatpush1.bf16.xpose.msra.mxu0 0
    %1578 = vmatprep.subr.bf16.mxu0 0
    %1579 = vmatpush1.bf16.xpose.msra.mxu0 0
    %1580 = vmatprep.subr.bf16.mxu0 0
    %1581 = vmatpush1.bf16.xpose.msra.mxu0 0
    %1582 = vmatprep.subr.bf16.mxu0 0
    %1583 = vmatpush1.bf16.xpose.msra.mxu0 0
    %1584 = vmatprep.subr.bf16.mxu0 0
    %1585 = vmatpush1.bf16.xpose.msra.mxu0 0
    %1586 = vmatprep.subr.bf16.mxu0 0
    %1587 = vmatpush1.bf16.xpose.msra.mxu0 0
    %1588 = vmatprep.subr.bf16.mxu0 0
    %1589 = vmatpush1.bf16.xpose.msra.mxu0 0
    %1590 = vmatprep.subr.bf16.mxu0 0
    %1591 = vmatpush1.bf16.xpose.msra.mxu0 0
    %1592 = vmatprep.subr.bf16.mxu0 0
    %1593 = vmatpush1.bf16.xpose.msra.mxu0 0
    %1594 = vmatprep.subr.bf16.mxu0 0
    %1595 = vmatpush1.bf16.xpose.msra.mxu0 0
    %1596 = vmatprep.subr.bf16.mxu0 0
    %1597 = vmatpush1.bf16.xpose.msra.mxu0 0
    %1598 = vmatprep.mubr.bf16.mxu0 0
    %1599 = vmatmul.mubr.bf16.gmra.mrb[0].mxu0 %v1561
    %v1600 = vpop.f32.mrb[0].mxu0
    %v1601 = vadd.f32 0.0, %v1600
    %v1602 = vpop.f32.mrb[0].mxu0
    %v1603 = vpop.f32.mrb[0].mxu0
    %v1604 = vpop.f32.mrb[0].mxu0
    %1605 = vdwg.mxu0
    %v1607 = vsel %vm625, %v1555, 0
    %v1610 = vsel %vm625, %v1557, 0
    %1612 = vmatprep.subr.bf16.mxu0 0
    %1613 = vmatpush1.bf16.xpose.msra.mxu0 %v1610
    %1614 = vmatprep.subr.bf16.mxu0 0
    %1615 = vmatpush1.bf16.xpose.msra.mxu0 0
    %1616 = vmatprep.subr.bf16.mxu0 0
    %1617 = vmatpush1.bf16.xpose.msra.mxu0 0
    %1618 = vmatprep.subr.bf16.mxu0 0
    %1619 = vmatpush1.bf16.xpose.msra.mxu0 0
    %1620 = vmatprep.subr.bf16.mxu0 0
    %1621 = vmatpush1.bf16.xpose.msra.mxu0 0
    %1622 = vmatprep.subr.bf16.mxu0 0
    %1623 = vmatpush1.bf16.xpose.msra.mxu0 0
    %1624 = vmatprep.subr.bf16.mxu0 0
    %1625 = vmatpush1.bf16.xpose.msra.mxu0 0
    %1626 = vmatprep.subr.bf16.mxu0 0
    %1627 = vmatpush1.bf16.xpose.msra.mxu0 0
    %1628 = vmatprep.subr.bf16.mxu0 0
    %1629 = vmatpush1.bf16.xpose.msra.mxu0 0
    %1630 = vmatprep.subr.bf16.mxu0 0
    %1631 = vmatpush1.bf16.xpose.msra.mxu0 0
    %1632 = vmatprep.subr.bf16.mxu0 0
    %1633 = vmatpush1.bf16.xpose.msra.mxu0 0
    %1634 = vmatprep.subr.bf16.mxu0 0
    %1635 = vmatpush1.bf16.xpose.msra.mxu0 0
    %1636 = vmatprep.subr.bf16.mxu0 0
    %1637 = vmatpush1.bf16.xpose.msra.mxu0 0
    %1638 = vmatprep.subr.bf16.mxu0 0
    %1639 = vmatpush1.bf16.xpose.msra.mxu0 0
    %1640 = vmatprep.subr.bf16.mxu0 0
    %1641 = vmatpush1.bf16.xpose.msra.mxu0 0
    %1642 = vmatprep.subr.bf16.mxu0 0
    %1643 = vmatpush1.bf16.xpose.msra.mxu0 0
    %1644 = vmatprep.mubr.bf16.mxu0 0
    %1645 = vmatmul.mubr.bf16.gmra.mrb[0].mxu0 %v1607
    %v1646 = vpop.f32.mrb[0].mxu0
    %v1647 = vadd.f32 0.0, %v1646
    %v1648 = vpop.f32.mrb[0].mxu0
    %v1649 = vpop.f32.mrb[0].mxu0
    %v1650 = vpop.f32.mrb[0].mxu0
    %1651 = vdwg.mxu0
    %v1652 = vmul.f32 %v1601, 0.35355338
    %v1653 = vmul.f32 %v1647, 0.35355338
    %v1654 = vsel %vm720, -65500.0, %v1652
    %v1655 = vsel %vm721, -65500.0, %v1653
    %v1656 = vsel %vm625, %v1654, -inf
    %1657 = vmax.xlane.f32.xlu0 %v1656
    %v1658 = vpop.xlane.xlu0 %1657
    %v1659 = vsel %vm625, %v1655, -inf
    %1660 = vmax.xlane.f32.xlu0 %v1659
    %v1661 = vpop.xlane.xlu0 %1660
    %v1662 = vsub.f32 %v1654, %v1658
    %v1663 = vsub.f32 %v1655, %v1661
    %v1664 = vmul.f32 %v1662, 1.442695
    %v1665 = vpow.pop %v1664
    %v1666 = vmul.f32 %v1663, 1.442695
    %v1667 = vpow.pop %v1666
    %v1668 = vsel %vm625, %v1665, 0.0
    %1669 = vadd.xlane.f32.xlu0 %v1668
    %v1670 = vpop.xlane.xlu0 %1669
    %v1671 = vsel %vm625, %v1667, 0.0
    %1672 = vadd.xlane.f32.xlu0 %v1671
    %v1673 = vpop.xlane.xlu0 %1672
    %v1674 = vrcp.pop %v1670
    %v1675 = vrcp.pop %v1673
    %v1676 = vmul.f32 %v1665, %v1674
    %v1677 = vmul.f32 %v1667, %v1675
    %v1678 = vpack.c.bf16 %v1676, %v1676
    %v1679 = vpack.c.bf16 %v1677, %v1677
    %v1681 = vsel %vm625, %v1678, 0
    %v1684 = vsel %vm751, %v1558, 0
    %1686 = vmatprep.subr.bf16.mxu0 0
    %1687 = vmatpush1.bf16.msra.mxu0 %v1684
    %1688 = vmatprep.subr.bf16.mxu0 0
    %1689 = vmatpush1.bf16.msra.mxu0 0
    %1690 = vmatprep.subr.bf16.mxu0 0
    %1691 = vmatpush1.bf16.msra.mxu0 0
    %1692 = vmatprep.subr.bf16.mxu0 0
    %1693 = vmatpush1.bf16.msra.mxu0 0
    %1694 = vmatprep.subr.bf16.mxu0 0
    %1695 = vmatpush1.bf16.msra.mxu0 0
    %1696 = vmatprep.subr.bf16.mxu0 0
    %1697 = vmatpush1.bf16.msra.mxu0 0
    %1698 = vmatprep.subr.bf16.mxu0 0
    %1699 = vmatpush1.bf16.msra.mxu0 0
    %1700 = vmatprep.subr.bf16.mxu0 0
    %1701 = vmatpush1.bf16.msra.mxu0 0
    %1702 = vmatprep.subr.bf16.mxu0 0
    %1703 = vmatpush1.bf16.msra.mxu0 0
    %1704 = vmatprep.subr.bf16.mxu0 0
    %1705 = vmatpush1.bf16.msra.mxu0 0
    %1706 = vmatprep.subr.bf16.mxu0 0
    %1707 = vmatpush1.bf16.msra.mxu0 0
    %1708 = vmatprep.subr.bf16.mxu0 0
    %1709 = vmatpush1.bf16.msra.mxu0 0
    %1710 = vmatprep.subr.bf16.mxu0 0
    %1711 = vmatpush1.bf16.msra.mxu0 0
    %1712 = vmatprep.subr.bf16.mxu0 0
    %1713 = vmatpush1.bf16.msra.mxu0 0
    %1714 = vmatprep.subr.bf16.mxu0 0
    %1715 = vmatpush1.bf16.msra.mxu0 0
    %1716 = vmatprep.subr.bf16.mxu0 0
    %1717 = vmatpush1.bf16.msra.mxu0 0
    %1718 = vmatprep.mubr.bf16.mxu0 0
    %1719 = vmatmul.mubr.bf16.gmra.mrb[0].mxu0 %v1681
    %v1720 = vpop.f32.mrb[0].mxu0
    %v1721 = vadd.f32 0.0, %v1720
    %v1722 = vpop.f32.mrb[0].mxu0
    %v1723 = vpop.f32.mrb[0].mxu0
    %v1724 = vpop.f32.mrb[0].mxu0
    %1725 = vdwg.mxu0
    %v1727 = vsel %vm625, %v1679, 0
    %v1730 = vsel %vm751, %v1559, 0
    %1732 = vmatprep.subr.bf16.mxu0 0
    %1733 = vmatpush1.bf16.msra.mxu0 %v1730
    %1734 = vmatprep.subr.bf16.mxu0 0
    %1735 = vmatpush1.bf16.msra.mxu0 0
    %1736 = vmatprep.subr.bf16.mxu0 0
    %1737 = vmatpush1.bf16.msra.mxu0 0
    %1738 = vmatprep.subr.bf16.mxu0 0
    %1739 = vmatpush1.bf16.msra.mxu0 0
    %1740 = vmatprep.subr.bf16.mxu0 0
    %1741 = vmatpush1.bf16.msra.mxu0 0
    %1742 = vmatprep.subr.bf16.mxu0 0
    %1743 = vmatpush1.bf16.msra.mxu0 0
    %1744 = vmatprep.subr.bf16.mxu0 0
    %1745 = vmatpush1.bf16.msra.mxu0 0
    %1746 = vmatprep.subr.bf16.mxu0 0
    %1747 = vmatpush1.bf16.msra.mxu0 0
    %1748 = vmatprep.subr.bf16.mxu0 0
    %1749 = vmatpush1.bf16.msra.mxu0 0
    %1750 = vmatprep.subr.bf16.mxu0 0
    %1751 = vmatpush1.bf16.msra.mxu0 0
    %1752 = vmatprep.subr.bf16.mxu0 0
    %1753 = vmatpush1.bf16.msra.mxu0 0
    %1754 = vmatprep.subr.bf16.mxu0 0
    %1755 = vmatpush1.bf16.msra.mxu0 0
    %1756 = vmatprep.subr.bf16.mxu0 0
    %1757 = vmatpush1.bf16.msra.mxu0 0
    %1758 = vmatprep.subr.bf16.mxu0 0
    %1759 = vmatpush1.bf16.msra.mxu0 0
    %1760 = vmatprep.subr.bf16.mxu0 0
    %1761 = vmatpush1.bf16.msra.mxu0 0
    %1762 = vmatprep.subr.bf16.mxu0 0
    %1763 = vmatpush1.bf16.msra.mxu0 0
    %1764 = vmatprep.mubr.bf16.mxu0 0
    %1765 = vmatmul.mubr.bf16.gmra.mrb[0].mxu0 %v1727
    %v1766 = vpop.f32.mrb[0].mxu0
    %v1767 = vadd.f32 0.0, %v1766
    %v1768 = vpop.f32.mrb[0].mxu0
    %v1769 = vpop.f32.mrb[0].mxu0
    %v1770 = vpop.f32.mrb[0].mxu0
    %1771 = vdwg.mxu0
    %v1772 = vpack.c.bf16 %v1767, %v1721
    %s1773 = scalar_lea.vmem [#allocation20], 8
    %v1774 = vld [vmem:[%s1773] sm:$0xf]
    %v1776 = vsel %vm625, %v1772, 0
    %v1779 = vsel %vm751, %v1774, 0
    %1781 = vmatprep.subr.bf16.mxu0 0
    %1782 = vmatpush1.bf16.msra.mxu0 %v1779
    %1783 = vmatprep.subr.bf16.mxu0 0
    %1784 = vmatpush1.bf16.msra.mxu0 0
    %1785 = vmatprep.subr.bf16.mxu0 0
    %1786 = vmatpush1.bf16.msra.mxu0 0
    %1787 = vmatprep.subr.bf16.mxu0 0
    %1788 = vmatpush1.bf16.msra.mxu0 0
    %1789 = vmatprep.subr.bf16.mxu0 0
    %1790 = vmatpush1.bf16.msra.mxu0 0
    %1791 = vmatprep.subr.bf16.mxu0 0
    %1792 = vmatpush1.bf16.msra.mxu0 0
    %1793 = vmatprep.subr.bf16.mxu0 0
    %1794 = vmatpush1.bf16.msra.mxu0 0
    %1795 = vmatprep.subr.bf16.mxu0 0
    %1796 = vmatpush1.bf16.msra.mxu0 0
    %1797 = vmatprep.subr.bf16.mxu0 0
    %1798 = vmatpush1.bf16.msra.mxu0 0
    %1799 = vmatprep.subr.bf16.mxu0 0
    %1800 = vmatpush1.bf16.msra.mxu0 0
    %1801 = vmatprep.subr.bf16.mxu0 0
    %1802 = vmatpush1.bf16.msra.mxu0 0
    %1803 = vmatprep.subr.bf16.mxu0 0
    %1804 = vmatpush1.bf16.msra.mxu0 0
    %1805 = vmatprep.subr.bf16.mxu0 0
    %1806 = vmatpush1.bf16.msra.mxu0 0
    %1807 = vmatprep.subr.bf16.mxu0 0
    %1808 = vmatpush1.bf16.msra.mxu0 0
    %1809 = vmatprep.subr.bf16.mxu0 0
    %1810 = vmatpush1.bf16.msra.mxu0 0
    %1811 = vmatprep.subr.bf16.mxu0 0
    %1812 = vmatpush1.bf16.msra.mxu0 0
    %1813 = vmatprep.mubr.bf16.mxu0 0
    %1814 = vmatmul.mubr.bf16.gmra.mrb[0].mxu0 %v1776
    %v1815 = vpop.f32.mrb[0].mxu0
    %v1816 = vadd.f32 0.0, %v1815
    %v1817 = vpop.f32.mrb[0].mxu0
    %v1818 = vpop.f32.mrb[0].mxu0
    %v1819 = vadd.f32 0.0, %v1818
    %v1820 = vpop.f32.mrb[0].mxu0
    %1821 = vdwg.mxu0
    %v1822 = vadd.f32 %v1350, %v1816
    %v1823 = vadd.f32 %v1353, %v1819
    %s1824 = scalar_lea.vmem [#allocation11], 48
    %v1825 = vld [vmem:[%s1824] sm:$0xf]
    %v1826 = vld [vmem:[%s1824 + $0x4] sm:$0xf]
    %v1827 = vld [vmem:[%s1824 + $0x8] sm:$0xf]
    %v1828 = vld [vmem:[%s1824 + $0xc] sm:$0xf]
    %s1829 = scalar_lea.vmem [#allocation16], 3
    %v1830 = vld [vmem:[%s1829] sm:$0x1]
    %v1832 = vlaneseq
    %v1833 = vshrl.u32 %v1832, 7
    %v1834 = vsub.s32 0, %v1833
    %v1835 = vrot.slane %v1830, %v1834
    %v1841 = vunpack.c.l.b16 %v1825
    %v1842 = vunpack.c.l.b16 %v1826
    %v1843 = vunpack.c.l.b16 %v1827
    %v1844 = vunpack.c.l.b16 %v1828
    %v1845 = vpack.c.b16 %v1842, %v1841
    %v1846 = vpack.c.b16 %v1844, %v1843
    %1849 = vmatprep.subr.bf16.mxu0 0
    %1850 = vmatpush1.bf16.msra.mxu0 %v1845
    %1851 = vmatprep.subr.bf16.mxu0 0
    %1852 = vmatpush1.bf16.msra.mxu0 %v1846
    %1853 = vmatprep.subr.bf16.mxu0 0
    %1854 = vmatpush1.bf16.msra.mxu0 0
    %1855 = vmatprep.subr.bf16.mxu0 0
    %1856 = vmatpush1.bf16.msra.mxu0 0
    %1857 = vmatprep.subr.bf16.mxu0 0
    %1858 = vmatpush1.bf16.msra.mxu0 0
    %1859 = vmatprep.subr.bf16.mxu0 0
    %1860 = vmatpush1.bf16.msra.mxu0 0
    %1861 = vmatprep.subr.bf16.mxu0 0
    %1862 = vmatpush1.bf16.msra.mxu0 0
    %1863 = vmatprep.subr.bf16.mxu0 0
    %1864 = vmatpush1.bf16.msra.mxu0 0
    %1865 = vmatprep.subr.bf16.mxu0 0
    %1866 = vmatpush1.bf16.msra.mxu0 0
    %1867 = vmatprep.subr.bf16.mxu0 0
    %1868 = vmatpush1.bf16.msra.mxu0 0
    %1869 = vmatprep.subr.bf16.mxu0 0
    %1870 = vmatpush1.bf16.msra.mxu0 0
    %1871 = vmatprep.subr.bf16.mxu0 0
    %1872 = vmatpush1.bf16.msra.mxu0 0
    %1873 = vmatprep.subr.bf16.mxu0 0
    %1874 = vmatpush1.bf16.msra.mxu0 0
    %1875 = vmatprep.subr.bf16.mxu0 0
    %1876 = vmatpush1.bf16.msra.mxu0 0
    %1877 = vmatprep.subr.bf16.mxu0 0
    %1878 = vmatpush1.bf16.msra.mxu0 0
    %1879 = vmatprep.subr.bf16.mxu0 0
    %1880 = vmatpush1.bf16.msra.mxu0 0
    %1881 = vmatprep.mubr.bf16.mxu0 0
    %1882 = vmatmul.mubr.bf16.gmra.mrb[0].mxu0 %v448
    %v1883 = vpop.f32.mrb[0].mxu0
    %v1884 = vadd.f32 %v1835, %v1883
    %v1885 = vpop.f32.mrb[0].mxu0
    %v1886 = vpop.f32.mrb[0].mxu0
    %v1887 = vadd.f32 %v1835, %v1886
    %v1888 = vpop.f32.mrb[0].mxu0
    %1889 = vdwg.mxu0
    %s1890 = scalar_lea.vmem [#allocation13], 48
    %v1891 = vld [vmem:[%s1890] sm:$0xf]
    %v1892 = vld [vmem:[%s1890 + $0x4] sm:$0xf]
    %v1893 = vld [vmem:[%s1890 + $0x8] sm:$0xf]
    %v1894 = vld [vmem:[%s1890 + $0xc] sm:$0xf]
    %s1895 = scalar_lea.vmem [#allocation17], 3
    %v1896 = vld [vmem:[%s1895] sm:$0x1]
    %v1898 = vlaneseq
    %v1899 = vshrl.u32 %v1898, 7
    %v1900 = vsub.s32 0, %v1899
    %v1901 = vrot.slane %v1896, %v1900
    %v1907 = vunpack.c.l.b16 %v1891
    %v1908 = vunpack.c.l.b16 %v1892
    %v1909 = vunpack.c.l.b16 %v1893
    %v1910 = vunpack.c.l.b16 %v1894
    %v1911 = vpack.c.b16 %v1908, %v1907
    %v1912 = vpack.c.b16 %v1910, %v1909
    %1915 = vmatprep.subr.bf16.mxu0 0
    %1916 = vmatpush1.bf16.msra.mxu0 %v1911
    %1917 = vmatprep.subr.bf16.mxu0 0
    %1918 = vmatpush1.bf16.msra.mxu0 %v1912
    %1919 = vmatprep.subr.bf16.mxu0 0
    %1920 = vmatpush1.bf16.msra.mxu0 0
    %1921 = vmatprep.subr.bf16.mxu0 0
    %1922 = vmatpush1.bf16.msra.mxu0 0
    %1923 = vmatprep.subr.bf16.mxu0 0
    %1924 = vmatpush1.bf16.msra.mxu0 0
    %1925 = vmatprep.subr.bf16.mxu0 0
    %1926 = vmatpush1.bf16.msra.mxu0 0
    %1927 = vmatprep.subr.bf16.mxu0 0
    %1928 = vmatpush1.bf16.msra.mxu0 0
    %1929 = vmatprep.subr.bf16.mxu0 0
    %1930 = vmatpush1.bf16.msra.mxu0 0
    %1931 = vmatprep.subr.bf16.mxu0 0
    %1932 = vmatpush1.bf16.msra.mxu0 0
    %1933 = vmatprep.subr.bf16.mxu0 0
    %1934 = vmatpush1.bf16.msra.mxu0 0
    %1935 = vmatprep.subr.bf16.mxu0 0
    %1936 = vmatpush1.bf16.msra.mxu0 0
    %1937 = vmatprep.subr.bf16.mxu0 0
    %1938 = vmatpush1.bf16.msra.mxu0 0
    %1939 = vmatprep.subr.bf16.mxu0 0
    %1940 = vmatpush1.bf16.msra.mxu0 0
    %1941 = vmatprep.subr.bf16.mxu0 0
    %1942 = vmatpush1.bf16.msra.mxu0 0
    %1943 = vmatprep.subr.bf16.mxu0 0
    %1944 = vmatpush1.bf16.msra.mxu0 0
    %1945 = vmatprep.subr.bf16.mxu0 0
    %1946 = vmatpush1.bf16.msra.mxu0 0
    %1947 = vmatprep.mubr.bf16.mxu0 0
    %1948 = vmatmul.mubr.bf16.gmra.mrb[0].mxu0 %v448
    %v1949 = vpop.f32.mrb[0].mxu0
    %v1950 = vadd.f32 %v1901, %v1949
    %v1951 = vpop.f32.mrb[0].mxu0
    %v1952 = vpop.f32.mrb[0].mxu0
    %v1953 = vadd.f32 %v1901, %v1952
    %v1954 = vpop.f32.mrb[0].mxu0
    %1955 = vdwg.mxu0
    %s1956 = scalar_lea.vmem [#allocation14], 48
    %v1957 = vld [vmem:[%s1956] sm:$0xf]
    %v1958 = vld [vmem:[%s1956 + $0x4] sm:$0xf]
    %v1959 = vld [vmem:[%s1956 + $0x8] sm:$0xf]
    %v1960 = vld [vmem:[%s1956 + $0xc] sm:$0xf]
    %s1961 = scalar_lea.vmem [#allocation19], 3
    %v1962 = vld [vmem:[%s1961] sm:$0x1]
    %v1964 = vlaneseq
    %v1965 = vshrl.u32 %v1964, 7
    %v1966 = vsub.s32 0, %v1965
    %v1967 = vrot.slane %v1962, %v1966
    %v1973 = vunpack.c.l.b16 %v1957
    %v1974 = vunpack.c.l.b16 %v1958
    %v1975 = vunpack.c.l.b16 %v1959
    %v1976 = vunpack.c.l.b16 %v1960
    %v1977 = vpack.c.b16 %v1974, %v1973
    %v1978 = vpack.c.b16 %v1976, %v1975
    %1981 = vmatprep.subr.bf16.mxu0 0
    %1982 = vmatpush1.bf16.msra.mxu0 %v1977
    %1983 = vmatprep.subr.bf16.mxu0 0
    %1984 = vmatpush1.bf16.msra.mxu0 %v1978
    %1985 = vmatprep.subr.bf16.mxu0 0
    %1986 = vmatpush1.bf16.msra.mxu0 0
    %1987 = vmatprep.subr.bf16.mxu0 0
    %1988 = vmatpush1.bf16.msra.mxu0 0
    %1989 = vmatprep.subr.bf16.mxu0 0
    %1990 = vmatpush1.bf16.msra.mxu0 0
    %1991 = vmatprep.subr.bf16.mxu0 0
    %1992 = vmatpush1.bf16.msra.mxu0 0
    %1993 = vmatprep.subr.bf16.mxu0 0
    %1994 = vmatpush1.bf16.msra.mxu0 0
    %1995 = vmatprep.subr.bf16.mxu0 0
    %1996 = vmatpush1.bf16.msra.mxu0 0
    %1997 = vmatprep.subr.bf16.mxu0 0
    %1998 = vmatpush1.bf16.msra.mxu0 0
    %1999 = vmatprep.subr.bf16.mxu0 0
    %2000 = vmatpush1.bf16.msra.mxu0 0
    %2001 = vmatprep.subr.bf16.mxu0 0
    %2002 = vmatpush1.bf16.msra.mxu0 0
    %2003 = vmatprep.subr.bf16.mxu0 0
    %2004 = vmatpush1.bf16.msra.mxu0 0
    %2005 = vmatprep.subr.bf16.mxu0 0
    %2006 = vmatpush1.bf16.msra.mxu0 0
    %2007 = vmatprep.subr.bf16.mxu0 0
    %2008 = vmatpush1.bf16.msra.mxu0 0
    %2009 = vmatprep.subr.bf16.mxu0 0
    %2010 = vmatpush1.bf16.msra.mxu0 0
    %2011 = vmatprep.subr.bf16.mxu0 0
    %2012 = vmatpush1.bf16.msra.mxu0 0
    %2013 = vmatprep.mubr.bf16.mxu0 0
    %2014 = vmatmul.mubr.bf16.gmra.mrb[0].mxu0 %v448
    %v2015 = vpop.f32.mrb[0].mxu0
    %v2016 = vadd.f32 %v1967, %v2015
    %v2017 = vpop.f32.mrb[0].mxu0
    %v2018 = vpop.f32.mrb[0].mxu0
    %v2019 = vadd.f32 %v1967, %v2018
    %v2020 = vpop.f32.mrb[0].mxu0
    %2021 = vdwg.mxu0
    %v2022 = vpack.c.bf16 %v1884, %v1884
    %v2023 = vpack.c.bf16 %v1887, %v1887
    %v2024 = vpack.c.bf16 %v1950, %v1950
    %v2025 = vpack.c.bf16 %v1953, %v1953
    %v2026 = vpack.c.bf16 %v2016, %v2016
    %v2027 = vpack.c.bf16 %v2019, %v2019
    %v2029 = vsel %vm625, %v2022, 0
    %v2032 = vsel %vm625, %v2024, 0
    %2034 = vmatprep.subr.bf16.mxu0 0
    %2035 = vmatpush1.bf16.xpose.msra.mxu0 %v2032
    %2036 = vmatprep.subr.bf16.mxu0 0
    %2037 = vmatpush1.bf16.xpose.msra.mxu0 0
    %2038 = vmatprep.subr.bf16.mxu0 0
    %2039 = vmatpush1.bf16.xpose.msra.mxu0 0
    %2040 = vmatprep.subr.bf16.mxu0 0
    %2041 = vmatpush1.bf16.xpose.msra.mxu0 0
    %2042 = vmatprep.subr.bf16.mxu0 0
    %2043 = vmatpush1.bf16.xpose.msra.mxu0 0
    %2044 = vmatprep.subr.bf16.mxu0 0
    %2045 = vmatpush1.bf16.xpose.msra.mxu0 0
    %2046 = vmatprep.subr.bf16.mxu0 0
    %2047 = vmatpush1.bf16.xpose.msra.mxu0 0
    %2048 = vmatprep.subr.bf16.mxu0 0
    %2049 = vmatpush1.bf16.xpose.msra.mxu0 0
    %2050 = vmatprep.subr.bf16.mxu0 0
    %2051 = vmatpush1.bf16.xpose.msra.mxu0 0
    %2052 = vmatprep.subr.bf16.mxu0 0
    %2053 = vmatpush1.bf16.xpose.msra.mxu0 0
    %2054 = vmatprep.subr.bf16.mxu0 0
    %2055 = vmatpush1.bf16.xpose.msra.mxu0 0
    %2056 = vmatprep.subr.bf16.mxu0 0
    %2057 = vmatpush1.bf16.xpose.msra.mxu0 0
    %2058 = vmatprep.subr.bf16.mxu0 0
    %2059 = vmatpush1.bf16.xpose.msra.mxu0 0
    %2060 = vmatprep.subr.bf16.mxu0 0
    %2061 = vmatpush1.bf16.xpose.msra.mxu0 0
    %2062 = vmatprep.subr.bf16.mxu0 0
    %2063 = vmatpush1.bf16.xpose.msra.mxu0 0
    %2064 = vmatprep.subr.bf16.mxu0 0
    %2065 = vmatpush1.bf16.xpose.msra.mxu0 0
    %2066 = vmatprep.mubr.bf16.mxu0 0
    %2067 = vmatmul.mubr.bf16.gmra.mrb[0].mxu0 %v2029
    %v2068 = vpop.f32.mrb[0].mxu0
    %v2069 = vadd.f32 0.0, %v2068
    %v2070 = vpop.f32.mrb[0].mxu0
    %v2071 = vpop.f32.mrb[0].mxu0
    %v2072 = vpop.f32.mrb[0].mxu0
    %2073 = vdwg.mxu0
    %v2075 = vsel %vm625, %v2023, 0
    %v2078 = vsel %vm625, %v2025, 0
    %2080 = vmatprep.subr.bf16.mxu0 0
    %2081 = vmatpush1.bf16.xpose.msra.mxu0 %v2078
    %2082 = vmatprep.subr.bf16.mxu0 0
    %2083 = vmatpush1.bf16.xpose.msra.mxu0 0
    %2084 = vmatprep.subr.bf16.mxu0 0
    %2085 = vmatpush1.bf16.xpose.msra.mxu0 0
    %2086 = vmatprep.subr.bf16.mxu0 0
    %2087 = vmatpush1.bf16.xpose.msra.mxu0 0
    %2088 = vmatprep.subr.bf16.mxu0 0
    %2089 = vmatpush1.bf16.xpose.msra.mxu0 0
    %2090 = vmatprep.subr.bf16.mxu0 0
    %2091 = vmatpush1.bf16.xpose.msra.mxu0 0
    %2092 = vmatprep.subr.bf16.mxu0 0
    %2093 = vmatpush1.bf16.xpose.msra.mxu0 0
    %2094 = vmatprep.subr.bf16.mxu0 0
    %2095 = vmatpush1.bf16.xpose.msra.mxu0 0
    %2096 = vmatprep.subr.bf16.mxu0 0
    %2097 = vmatpush1.bf16.xpose.msra.mxu0 0
    %2098 = vmatprep.subr.bf16.mxu0 0
    %2099 = vmatpush1.bf16.xpose.msra.mxu0 0
    %2100 = vmatprep.subr.bf16.mxu0 0
    %2101 = vmatpush1.bf16.xpose.msra.mxu0 0
    %2102 = vmatprep.subr.bf16.mxu0 0
    %2103 = vmatpush1.bf16.xpose.msra.mxu0 0
    %2104 = vmatprep.subr.bf16.mxu0 0
    %2105 = vmatpush1.bf16.xpose.msra.mxu0 0
    %2106 = vmatprep.subr.bf16.mxu0 0
    %2107 = vmatpush1.bf16.xpose.msra.mxu0 0
    %2108 = vmatprep.subr.bf16.mxu0 0
    %2109 = vmatpush1.bf16.xpose.msra.mxu0 0
    %2110 = vmatprep.subr.bf16.mxu0 0
    %2111 = vmatpush1.bf16.xpose.msra.mxu0 0
    %2112 = vmatprep.mubr.bf16.mxu0 0
    %2113 = vmatmul.mubr.bf16.gmra.mrb[0].mxu0 %v2075
    %v2114 = vpop.f32.mrb[0].mxu0
    %v2115 = vadd.f32 0.0, %v2114
    %v2116 = vpop.f32.mrb[0].mxu0
    %v2117 = vpop.f32.mrb[0].mxu0
    %v2118 = vpop.f32.mrb[0].mxu0
    %2119 = vdwg.mxu0
    %v2120 = vmul.f32 %v2069, 0.35355338
    %v2121 = vmul.f32 %v2115, 0.35355338
    %v2122 = vsel %vm720, -65500.0, %v2120
    %v2123 = vsel %vm721, -65500.0, %v2121
    %v2124 = vsel %vm625, %v2122, -inf
    %2125 = vmax.xlane.f32.xlu0 %v2124
    %v2126 = vpop.xlane.xlu0 %2125
    %v2127 = vsel %vm625, %v2123, -inf
    %2128 = vmax.xlane.f32.xlu0 %v2127
    %v2129 = vpop.xlane.xlu0 %2128
    %v2130 = vsub.f32 %v2122, %v2126
    %v2131 = vsub.f32 %v2123, %v2129
    %v2132 = vmul.f32 %v2130, 1.442695
    %v2133 = vpow.pop %v2132
    %v2134 = vmul.f32 %v2131, 1.442695
    %v2135 = vpow.pop %v2134
    %v2136 = vsel %vm625, %v2133, 0.0
    %2137 = vadd.xlane.f32.xlu0 %v2136
    %v2138 = vpop.xlane.xlu0 %2137
    %v2139 = vsel %vm625, %v2135, 0.0
    %2140 = vadd.xlane.f32.xlu0 %v2139
    %v2141 = vpop.xlane.xlu0 %2140
    %v2142 = vrcp.pop %v2138
    %v2143 = vrcp.pop %v2141
    %v2144 = vmul.f32 %v2133, %v2142
    %v2145 = vmul.f32 %v2135, %v2143
    %v2146 = vpack.c.bf16 %v2144, %v2144
    %v2147 = vpack.c.bf16 %v2145, %v2145
    %v2149 = vsel %vm625, %v2146, 0
    %v2152 = vsel %vm751, %v2026, 0
    %2154 = vmatprep.subr.bf16.mxu0 0
    %2155 = vmatpush1.bf16.msra.mxu0 %v2152
    %2156 = vmatprep.subr.bf16.mxu0 0
    %2157 = vmatpush1.bf16.msra.mxu0 0
    %2158 = vmatprep.subr.bf16.mxu0 0
    %2159 = vmatpush1.bf16.msra.mxu0 0
    %2160 = vmatprep.subr.bf16.mxu0 0
    %2161 = vmatpush1.bf16.msra.mxu0 0
    %2162 = vmatprep.subr.bf16.mxu0 0
    %2163 = vmatpush1.bf16.msra.mxu0 0
    %2164 = vmatprep.subr.bf16.mxu0 0
    %2165 = vmatpush1.bf16.msra.mxu0 0
    %2166 = vmatprep.subr.bf16.mxu0 0
    %2167 = vmatpush1.bf16.msra.mxu0 0
    %2168 = vmatprep.subr.bf16.mxu0 0
    %2169 = vmatpush1.bf16.msra.mxu0 0
    %2170 = vmatprep.subr.bf16.mxu0 0
    %2171 = vmatpush1.bf16.msra.mxu0 0
    %2172 = vmatprep.subr.bf16.mxu0 0
    %2173 = vmatpush1.bf16.msra.mxu0 0
    %2174 = vmatprep.subr.bf16.mxu0 0
    %2175 = vmatpush1.bf16.msra.mxu0 0
    %2176 = vmatprep.subr.bf16.mxu0 0
    %2177 = vmatpush1.bf16.msra.mxu0 0
    %2178 = vmatprep.subr.bf16.mxu0 0
    %2179 = vmatpush1.bf16.msra.mxu0 0
    %2180 = vmatprep.subr.bf16.mxu0 0
    %2181 = vmatpush1.bf16.msra.mxu0 0
    %2182 = vmatprep.subr.bf16.mxu0 0
    %2183 = vmatpush1.bf16.msra.mxu0 0
    %2184 = vmatprep.subr.bf16.mxu0 0
    %2185 = vmatpush1.bf16.msra.mxu0 0
    %2186 = vmatprep.mubr.bf16.mxu0 0
    %2187 = vmatmul.mubr.bf16.gmra.mrb[0].mxu0 %v2149
    %v2188 = vpop.f32.mrb[0].mxu0
    %v2189 = vadd.f32 0.0, %v2188
    %v2190 = vpop.f32.mrb[0].mxu0
    %v2191 = vpop.f32.mrb[0].mxu0
    %v2192 = vpop.f32.mrb[0].mxu0
    %2193 = vdwg.mxu0
    %v2195 = vsel %vm625, %v2147, 0
    %v2198 = vsel %vm751, %v2027, 0
    %2200 = vmatprep.subr.bf16.mxu0 0
    %2201 = vmatpush1.bf16.msra.mxu0 %v2198
    %2202 = vmatprep.subr.bf16.mxu0 0
    %2203 = vmatpush1.bf16.msra.mxu0 0
    %2204 = vmatprep.subr.bf16.mxu0 0
    %2205 = vmatpush1.bf16.msra.mxu0 0
    %2206 = vmatprep.subr.bf16.mxu0 0
    %2207 = vmatpush1.bf16.msra.mxu0 0
    %2208 = vmatprep.subr.bf16.mxu0 0
    %2209 = vmatpush1.bf16.msra.mxu0 0
    %2210 = vmatprep.subr.bf16.mxu0 0
    %2211 = vmatpush1.bf16.msra.mxu0 0
    %2212 = vmatprep.subr.bf16.mxu0 0
    %2213 = vmatpush1.bf16.msra.mxu0 0
    %2214 = vmatprep.subr.bf16.mxu0 0
    %2215 = vmatpush1.bf16.msra.mxu0 0
    %2216 = vmatprep.subr.bf16.mxu0 0
    %2217 = vmatpush1.bf16.msra.mxu0 0
    %2218 = vmatprep.subr.bf16.mxu0 0
    %2219 = vmatpush1.bf16.msra.mxu0 0
    %2220 = vmatprep.subr.bf16.mxu0 0
    %2221 = vmatpush1.bf16.msra.mxu0 0
    %2222 = vmatprep.subr.bf16.mxu0 0
    %2223 = vmatpush1.bf16.msra.mxu0 0
    %2224 = vmatprep.subr.bf16.mxu0 0
    %2225 = vmatpush1.bf16.msra.mxu0 0
    %2226 = vmatprep.subr.bf16.mxu0 0
    %2227 = vmatpush1.bf16.msra.mxu0 0
    %2228 = vmatprep.subr.bf16.mxu0 0
    %2229 = vmatpush1.bf16.msra.mxu0 0
    %2230 = vmatprep.subr.bf16.mxu0 0
    %2231 = vmatpush1.bf16.msra.mxu0 0
    %2232 = vmatprep.mubr.bf16.mxu0 0
    %2233 = vmatmul.mubr.bf16.gmra.mrb[0].mxu0 %v2195
    %v2234 = vpop.f32.mrb[0].mxu0
    %v2235 = vadd.f32 0.0, %v2234
    %v2236 = vpop.f32.mrb[0].mxu0
    %v2237 = vpop.f32.mrb[0].mxu0
    %v2238 = vpop.f32.mrb[0].mxu0
    %2239 = vdwg.mxu0
    %v2240 = vpack.c.bf16 %v2235, %v2189
    %s2241 = scalar_lea.vmem [#allocation20], 12
    %v2242 = vld [vmem:[%s2241] sm:$0xf]
    %v2244 = vsel %vm625, %v2240, 0
    %v2247 = vsel %vm751, %v2242, 0
    %2249 = vmatprep.subr.bf16.mxu0 0
    %2250 = vmatpush1.bf16.msra.mxu0 %v2247
    %2251 = vmatprep.subr.bf16.mxu0 0
    %2252 = vmatpush1.bf16.msra.mxu0 0
    %2253 = vmatprep.subr.bf16.mxu0 0
    %2254 = vmatpush1.bf16.msra.mxu0 0
    %2255 = vmatprep.subr.bf16.mxu0 0
    %2256 = vmatpush1.bf16.msra.mxu0 0
    %2257 = vmatprep.subr.bf16.mxu0 0
    %2258 = vmatpush1.bf16.msra.mxu0 0
    %2259 = vmatprep.subr.bf16.mxu0 0
    %2260 = vmatpush1.bf16.msra.mxu0 0
    %2261 = vmatprep.subr.bf16.mxu0 0
    %2262 = vmatpush1.bf16.msra.mxu0 0
    %2263 = vmatprep.subr.bf16.mxu0 0
    %2264 = vmatpush1.bf16.msra.mxu0 0
    %2265 = vmatprep.subr.bf16.mxu0 0
    %2266 = vmatpush1.bf16.msra.mxu0 0
    %2267 = vmatprep.subr.bf16.mxu0 0
    %2268 = vmatpush1.bf16.msra.mxu0 0
    %2269 = vmatprep.subr.bf16.mxu0 0
    %2270 = vmatpush1.bf16.msra.mxu0 0
    %2271 = vmatprep.subr.bf16.mxu0 0
    %2272 = vmatpush1.bf16.msra.mxu0 0
    %2273 = vmatprep.subr.bf16.mxu0 0
    %2274 = vmatpush1.bf16.msra.mxu0 0
    %2275 = vmatprep.subr.bf16.mxu0 0
    %2276 = vmatpush1.bf16.msra.mxu0 0
    %2277 = vmatprep.subr.bf16.mxu0 0
    %2278 = vmatpush1.bf16.msra.mxu0 0
    %2279 = vmatprep.subr.bf16.mxu0 0
    %2280 = vmatpush1.bf16.msra.mxu0 0
    %2281 = vmatprep.mubr.bf16.mxu0 0
    %2282 = vmatmul.mubr.bf16.gmra.mrb[0].mxu0 %v2244
    %v2283 = vpop.f32.mrb[0].mxu0
    %v2284 = vadd.f32 0.0, %v2283
    %v2285 = vpop.f32.mrb[0].mxu0
    %v2286 = vpop.f32.mrb[0].mxu0
    %v2287 = vadd.f32 0.0, %v2286
    %v2288 = vpop.f32.mrb[0].mxu0
    %2289 = vdwg.mxu0
    %v2290 = vadd.f32 %v1822, %v2284
    %v2291 = vadd.f32 %v1823, %v2287
    %v2292 = vld [vmem:[#allocation22] sm:$0x1]
    %v2294 = vlaneseq
    %v2295 = vshrl.u32 %v2294, 7
    %v2296 = vsub.s32 0, %v2295
    %v2297 = vrot.slane %v2292, %v2296
    %v2299 = vadd.f32 %v2290, %v2297
    %v2300 = vadd.f32 %v2291, %v2297
    %v2301 = vadd.f32 %v375, %v2299
    %v2302 = vadd.f32 %v376, %v2300
    %v2303 = vld [vmem:[#allocation35 + $0x1] sm:$0x1]
    %v2304 = vld [vmem:[#allocation37 + $0x1] sm:$0x1]
    %v2305 = vsel %vm383, %v2301, 0.0
    %2306 = vadd.xlane.f32.xlu0 %v2305
    %v2307 = vpop.xlane.xlu0 %2306
    %v2308 = vsel %vm383, %v2302, 0.0
    %2309 = vadd.xlane.f32.xlu0 %v2308
    %v2310 = vpop.xlane.xlu0 %2309
    %v2311 = vmul.f32 %v2307, %v390
    %v2312 = vmul.f32 %v2310, %v390
    %v2313 = vsub.f32 %v2301, %v2311
    %v2314 = vsub.f32 %v2302, %v2312
    %v2315 = vmul.f32 %v2313, %v2313
    %v2316 = vmul.f32 %v2314, %v2314
    %v2317 = vsel %vm383, %v2315, 0.0
    %2318 = vadd.xlane.f32.xlu0 %v2317
    %v2319 = vpop.xlane.xlu0 %2318
    %v2320 = vsel %vm383, %v2316, 0.0
    %2321 = vadd.xlane.f32.xlu0 %v2320
    %v2322 = vpop.xlane.xlu0 %2321
    %v2323 = vmul.f32 %v2319, %v390
    %v2324 = vmul.f32 %v2322, %v390
    %v2325 = vadd.f32 %v2323, 1e-05
    %v2326 = vadd.f32 %v2324, 1e-05
    %v2327 = vrsqrt.pop %v2325
    %v2328 = vrsqrt.pop %v2326
    %v2329 = vmul.f32 %v2313, %v2327
    %v2330 = vmul.f32 %v2314, %v2328
    %v2331 = vlaneseq
    %v2332 = vshrl.u32 %v2331, 7
    %v2333 = vsub.s32 0, %v2332
    %v2334 = vrot.slane %v2303, %v2333
    %v2335 = vmul.f32 %v2329, %v2334
    %v2336 = vmul.f32 %v2330, %v2334
    %v2337 = vlaneseq
    %v2338 = vshrl.u32 %v2337, 7
    %v2339 = vsub.s32 0, %v2338
    %v2340 = vrot.slane %v2304, %v2339
    %v2341 = vadd.f32 %v2335, %v2340
    %v2342 = vadd.f32 %v2336, %v2340
    %v2343 = vpack.c.bf16 %v2342, %v2341
    %v2344 = vld [vmem:[#allocation23] sm:$0xf]
    %v2345 = vld [vmem:[#allocation23 + $0x4] sm:$0xf]
    %v2346 = vld [vmem:[#allocation23 + $0x8] sm:$0xf]
    %v2347 = vld [vmem:[#allocation23 + $0xc] sm:$0xf]
    %v2348 = vld [vmem:[#allocation25] sm:$0x1]
    %v2350 = vlaneseq
    %v2351 = vshrl.u32 %v2350, 7
    %v2352 = vsub.s32 0, %v2351
    %v2353 = vrot.slane %v2348, %v2352
    %v2359 = vunpack.c.l.b16 %v2344
    %v2360 = vunpack.c.l.b16 %v2345
    %v2361 = vunpack.c.l.b16 %v2346
    %v2362 = vunpack.c.l.b16 %v2347
    %v2363 = vpack.c.b16 %v2360, %v2359
    %v2364 = vpack.c.b16 %v2362, %v2361
    %v2368 = vsel %vm383, %v2343, 0
    %2370 = vmatprep.subr.bf16.mxu0 0
    %2371 = vmatpush1.bf16.msra.mxu0 %v2363
    %2372 = vmatprep.subr.bf16.mxu0 0
    %2373 = vmatpush1.bf16.msra.mxu0 %v2364
    %2374 = vmatprep.subr.bf16.mxu0 0
    %2375 = vmatpush1.bf16.msra.mxu0 0
    %2376 = vmatprep.subr.bf16.mxu0 0
    %2377 = vmatpush1.bf16.msra.mxu0 0
    %2378 = vmatprep.subr.bf16.mxu0 0
    %2379 = vmatpush1.bf16.msra.mxu0 0
    %2380 = vmatprep.subr.bf16.mxu0 0
    %2381 = vmatpush1.bf16.msra.mxu0 0
    %2382 = vmatprep.subr.bf16.mxu0 0
    %2383 = vmatpush1.bf16.msra.mxu0 0
    %2384 = vmatprep.subr.bf16.mxu0 0
    %2385 = vmatpush1.bf16.msra.mxu0 0
    %2386 = vmatprep.subr.bf16.mxu0 0
    %2387 = vmatpush1.bf16.msra.mxu0 0
    %2388 = vmatprep.subr.bf16.mxu0 0
    %2389 = vmatpush1.bf16.msra.mxu0 0
    %2390 = vmatprep.subr.bf16.mxu0 0
    %2391 = vmatpush1.bf16.msra.mxu0 0
    %2392 = vmatprep.subr.bf16.mxu0 0
    %2393 = vmatpush1.bf16.msra.mxu0 0
    %2394 = vmatprep.subr.bf16.mxu0 0
    %2395 = vmatpush1.bf16.msra.mxu0 0
    %2396 = vmatprep.subr.bf16.mxu0 0
    %2397 = vmatpush1.bf16.msra.mxu0 0
    %2398 = vmatprep.subr.bf16.mxu0 0
    %2399 = vmatpush1.bf16.msra.mxu0 0
    %2400 = vmatprep.subr.bf16.mxu0 0
    %2401 = vmatpush1.bf16.msra.mxu0 0
    %2402 = vmatprep.mubr.bf16.mxu0 0
    %2403 = vmatmul.mubr.bf16.gmra.mrb[0].mxu0 %v2368
    %v2404 = vpop.f32.mrb[0].mxu0
    %v2405 = vadd.f32 %v2353, %v2404
    %v2406 = vpop.f32.mrb[0].mxu0
    %v2407 = vpop.f32.mrb[0].mxu0
    %v2408 = vadd.f32 %v2353, %v2407
    %v2409 = vpop.f32.mrb[0].mxu0
    %2410 = vdwg.mxu0
    %v2411 = vld [vmem:[#allocation8] sm:$0xf]
    %v2412 = vld [vmem:[#allocation8 + $0x4] sm:$0xf]
    %v2413 = vld [vmem:[#allocation10] sm:$0xf]
    %v2414 = vld [vmem:[#allocation10 + $0x4] sm:$0xf]
    %v2415 = vpack.c.bf16 %v2408, %v2405
    %v2418 = vunpack.c.l.b16 %v2411
    %v2419 = vunpack.c.l.b16 %v2412
    %v2420 = vpack.c.b16 %v2419, %v2418
    %v2422 = vsel %vm625, %v2415, 0
    %v2425 = vsel %vm625, %v2420, 0
    %2427 = vmatprep.subr.bf16.mxu0 0
    %2428 = vmatpush1.bf16.xpose.msra.mxu0 %v2425
    %2429 = vmatprep.subr.bf16.mxu0 0
    %2430 = vmatpush1.bf16.xpose.msra.mxu0 0
    %2431 = vmatprep.subr.bf16.mxu0 0
    %2432 = vmatpush1.bf16.xpose.msra.mxu0 0
    %2433 = vmatprep.subr.bf16.mxu0 0
    %2434 = vmatpush1.bf16.xpose.msra.mxu0 0
    %2435 = vmatprep.subr.bf16.mxu0 0
    %2436 = vmatpush1.bf16.xpose.msra.mxu0 0
    %2437 = vmatprep.subr.bf16.mxu0 0
    %2438 = vmatpush1.bf16.xpose.msra.mxu0 0
    %2439 = vmatprep.subr.bf16.mxu0 0
    %2440 = vmatpush1.bf16.xpose.msra.mxu0 0
    %2441 = vmatprep.subr.bf16.mxu0 0
    %2442 = vmatpush1.bf16.xpose.msra.mxu0 0
    %2443 = vmatprep.subr.bf16.mxu0 0
    %2444 = vmatpush1.bf16.xpose.msra.mxu0 0
    %2445 = vmatprep.subr.bf16.mxu0 0
    %2446 = vmatpush1.bf16.xpose.msra.mxu0 0
    %2447 = vmatprep.subr.bf16.mxu0 0
    %2448 = vmatpush1.bf16.xpose.msra.mxu0 0
    %2449 = vmatprep.subr.bf16.mxu0 0
    %2450 = vmatpush1.bf16.xpose.msra.mxu0 0
    %2451 = vmatprep.subr.bf16.mxu0 0
    %2452 = vmatpush1.bf16.xpose.msra.mxu0 0
    %2453 = vmatprep.subr.bf16.mxu0 0
    %2454 = vmatpush1.bf16.xpose.msra.mxu0 0
    %2455 = vmatprep.subr.bf16.mxu0 0
    %2456 = vmatpush1.bf16.xpose.msra.mxu0 0
    %2457 = vmatprep.subr.bf16.mxu0 0
    %2458 = vmatpush1.bf16.xpose.msra.mxu0 0
    %2459 = vmatprep.mubr.bf16.mxu0 0
    %2460 = vmatmul.mubr.bf16.gmra.mrb[0].mxu0 %v2422
    %v2461 = vpop.f32.mrb[0].mxu0
    %v2462 = vadd.f32 0.0, %v2461
    %v2463 = vpop.f32.mrb[0].mxu0
    %v2464 = vpop.f32.mrb[0].mxu0
    %v2465 = vadd.f32 0.0, %v2464
    %v2466 = vpop.f32.mrb[0].mxu0
    %2467 = vdwg.mxu0
    %v2468 = vmul.f32 %v2462, 0.35355338
    %v2469 = vmul.f32 %v2465, 0.35355338
    %vm2470 = vcmp.eq.f32.partialorder %v379, 0.0
    %vm2471 = vcmp.eq.f32.partialorder %v380, 0.0
    %v2472 = vsel %vm2470, 1, 0
    %v2473 = vsel %vm2471, 1, 0
    %v2474 = vlaneseq
    %v2475 = vshrl.u32 %v2474, 7
    %v2476 = vsub.s32 0, %v2475
    %v2477 = vrot.slane %v2472, %v2476
    %v2478 = vlaneseq
    %v2479 = vshrl.u32 %v2478, 7
    %v2480 = vsub.s32 0, %v2479
    %v2481 = vrot.slane %v2473, %v2480
    %vm2482 = vcmp.eq.s32.totalorder %v2477, 1
    %vm2483 = vcmp.eq.s32.totalorder %v2481, 1
    %v2484 = vsel %vm2482, -65500.0, %v2468
    %v2485 = vsel %vm2483, -65500.0, %v2469
    %vm2486 = vcmask 130048
    %v2487 = vsel %vm2486, %v2484, -inf
    %2488 = vmax.xlane.f32.xlu0 %v2487
    %v2489 = vpop.xlane.xlu0 %2488
    %v2490 = vsel %vm2486, %v2485, -inf
    %2491 = vmax.xlane.f32.xlu0 %v2490
    %v2492 = vpop.xlane.xlu0 %2491
    %v2493 = vsub.f32 %v2484, %v2489
    %v2494 = vsub.f32 %v2485, %v2492
    %v2495 = vmul.f32 %v2493, 1.442695
    %v2496 = vpow.pop %v2495
    %v2497 = vmul.f32 %v2494, 1.442695
    %v2498 = vpow.pop %v2497
    %v2499 = vsel %vm2486, %v2496, 0.0
    %2500 = vadd.xlane.f32.xlu0 %v2499
    %v2501 = vpop.xlane.xlu0 %2500
    %v2502 = vsel %vm2486, %v2498, 0.0
    %2503 = vadd.xlane.f32.xlu0 %v2502
    %v2504 = vpop.xlane.xlu0 %2503
    %v2505 = vrcp.pop %v2501
    %v2506 = vrcp.pop %v2504
    %v2507 = vmul.f32 %v2496, %v2505
    %v2508 = vmul.f32 %v2498, %v2506
    %v2509 = vpack.c.bf16 %v2508, %v2507
    %v2512 = vunpack.c.l.b16 %v2413
    %v2513 = vunpack.c.l.b16 %v2414
    %v2514 = vpack.c.b16 %v2513, %v2512
    %v2517 = vsel %vm2486, %v2509, 0
    %2519 = vmatprep.subr.bf16.mxu0 0
    %2520 = vmatpush1.bf16.msra.mxu0 %v2514
    %2521 = vmatprep.subr.bf16.mxu0 0
    %2522 = vmatpush1.bf16.msra.mxu0 0
    %2523 = vmatprep.subr.bf16.mxu0 0
    %2524 = vmatpush1.bf16.msra.mxu0 0
    %2525 = vmatprep.subr.bf16.mxu0 0
    %2526 = vmatpush1.bf16.msra.mxu0 0
    %2527 = vmatprep.subr.bf16.mxu0 0
    %2528 = vmatpush1.bf16.msra.mxu0 0
    %2529 = vmatprep.subr.bf16.mxu0 0
    %2530 = vmatpush1.bf16.msra.mxu0 0
    %2531 = vmatprep.subr.bf16.mxu0 0
    %2532 = vmatpush1.bf16.msra.mxu0 0
    %2533 = vmatprep.subr.bf16.mxu0 0
    %2534 = vmatpush1.bf16.msra.mxu0 0
    %2535 = vmatprep.subr.bf16.mxu0 0
    %2536 = vmatpush1.bf16.msra.mxu0 0
    %2537 = vmatprep.subr.bf16.mxu0 0
    %2538 = vmatpush1.bf16.msra.mxu0 0
    %2539 = vmatprep.subr.bf16.mxu0 0
    %2540 = vmatpush1.bf16.msra.mxu0 0
    %2541 = vmatprep.subr.bf16.mxu0 0
    %2542 = vmatpush1.bf16.msra.mxu0 0
    %2543 = vmatprep.subr.bf16.mxu0 0
    %2544 = vmatpush1.bf16.msra.mxu0 0
    %2545 = vmatprep.subr.bf16.mxu0 0
    %2546 = vmatpush1.bf16.msra.mxu0 0
    %2547 = vmatprep.subr.bf16.mxu0 0
    %2548 = vmatpush1.bf16.msra.mxu0 0
    %2549 = vmatprep.subr.bf16.mxu0 0
    %2550 = vmatpush1.bf16.msra.mxu0 0
    %2551 = vmatprep.mubr.bf16.mxu0 0
    %2552 = vmatmul.mubr.bf16.gmra.mrb[0].mxu0 %v2517
    %v2553 = vpop.f32.mrb[0].mxu0
    %v2554 = vadd.f32 0.0, %v2553
    %v2555 = vpop.f32.mrb[0].mxu0
    %v2556 = vpop.f32.mrb[0].mxu0
    %v2557 = vadd.f32 0.0, %v2556
    %v2558 = vpop.f32.mrb[0].mxu0
    %2559 = vdwg.mxu0
    %v2560 = vpack.c.bf16 %v2557, %v2554
    %v2561 = vld [vmem:[#allocation26] sm:$0xf]
    %s2562 = scalar_lea.vmem [#allocation23], 16
    %v2563 = vld [vmem:[%s2562] sm:$0xf]
    %v2564 = vld [vmem:[%s2562 + $0x4] sm:$0xf]
    %v2565 = vld [vmem:[%s2562 + $0x8] sm:$0xf]
    %v2566 = vld [vmem:[%s2562 + $0xc] sm:$0xf]
    %s2567 = scalar_lea.vmem [#allocation25], 1
    %v2568 = vld [vmem:[%s2567] sm:$0x1]
    %v2570 = vlaneseq
    %v2571 = vshrl.u32 %v2570, 7
    %v2572 = vsub.s32 0, %v2571
    %v2573 = vrot.slane %v2568, %v2572
    %v2579 = vunpack.c.l.b16 %v2563
    %v2580 = vunpack.c.l.b16 %v2564
    %v2581 = vunpack.c.l.b16 %v2565
    %v2582 = vunpack.c.l.b16 %v2566
    %v2583 = vpack.c.b16 %v2580, %v2579
    %v2584 = vpack.c.b16 %v2582, %v2581
    %2587 = vmatprep.subr.bf16.mxu0 0
    %2588 = vmatpush1.bf16.msra.mxu0 %v2583
    %2589 = vmatprep.subr.bf16.mxu0 0
    %2590 = vmatpush1.bf16.msra.mxu0 %v2584
    %2591 = vmatprep.subr.bf16.mxu0 0
    %2592 = vmatpush1.bf16.msra.mxu0 0
    %2593 = vmatprep.subr.bf16.mxu0 0
    %2594 = vmatpush1.bf16.msra.mxu0 0
    %2595 = vmatprep.subr.bf16.mxu0 0
    %2596 = vmatpush1.bf16.msra.mxu0 0
    %2597 = vmatprep.subr.bf16.mxu0 0
    %2598 = vmatpush1.bf16.msra.mxu0 0
    %2599 = vmatprep.subr.bf16.mxu0 0
    %2600 = vmatpush1.bf16.msra.mxu0 0
    %2601 = vmatprep.subr.bf16.mxu0 0
    %2602 = vmatpush1.bf16.msra.mxu0 0
    %2603 = vmatprep.subr.bf16.mxu0 0
    %2604 = vmatpush1.bf16.msra.mxu0 0
    %2605 = vmatprep.subr.bf16.mxu0 0
    %2606 = vmatpush1.bf16.msra.mxu0 0
    %2607 = vmatprep.subr.bf16.mxu0 0
    %2608 = vmatpush1.bf16.msra.mxu0 0
    %2609 = vmatprep.subr.bf16.mxu0 0
    %2610 = vmatpush1.bf16.msra.mxu0 0
    %2611 = vmatprep.subr.bf16.mxu0 0
    %2612 = vmatpush1.bf16.msra.mxu0 0
    %2613 = vmatprep.subr.bf16.mxu0 0
    %2614 = vmatpush1.bf16.msra.mxu0 0
    %2615 = vmatprep.subr.bf16.mxu0 0
    %2616 = vmatpush1.bf16.msra.mxu0 0
    %2617 = vmatprep.subr.bf16.mxu0 0
    %2618 = vmatpush1.bf16.msra.mxu0 0
    %2619 = vmatprep.mubr.bf16.mxu0 0
    %2620 = vmatmul.mubr.bf16.gmra.mrb[0].mxu0 %v2368
    %v2621 = vpop.f32.mrb[0].mxu0
    %v2622 = vadd.f32 %v2573, %v2621
    %v2623 = vpop.f32.mrb[0].mxu0
    %v2624 = vpop.f32.mrb[0].mxu0
    %v2625 = vadd.f32 %v2573, %v2624
    %v2626 = vpop.f32.mrb[0].mxu0
    %2627 = vdwg.mxu0
    %s2628 = scalar_lea.vmem [#allocation8], 8
    %v2629 = vld [vmem:[%s2628] sm:$0xf]
    %v2630 = vld [vmem:[%s2628 + $0x4] sm:$0xf]
    %s2631 = scalar_lea.vmem [#allocation10], 8
    %v2632 = vld [vmem:[%s2631] sm:$0xf]
    %v2633 = vld [vmem:[%s2631 + $0x4] sm:$0xf]
    %v2634 = vpack.c.bf16 %v2625, %v2622
    %v2637 = vunpack.c.l.b16 %v2629
    %v2638 = vunpack.c.l.b16 %v2630
    %v2639 = vpack.c.b16 %v2638, %v2637
    %v2641 = vsel %vm625, %v2634, 0
    %v2644 = vsel %vm625, %v2639, 0
    %2646 = vmatprep.subr.bf16.mxu0 0
    %2647 = vmatpush1.bf16.xpose.msra.mxu0 %v2644
    %2648 = vmatprep.subr.bf16.mxu0 0
    %2649 = vmatpush1.bf16.xpose.msra.mxu0 0
    %2650 = vmatprep.subr.bf16.mxu0 0
    %2651 = vmatpush1.bf16.xpose.msra.mxu0 0
    %2652 = vmatprep.subr.bf16.mxu0 0
    %2653 = vmatpush1.bf16.xpose.msra.mxu0 0
    %2654 = vmatprep.subr.bf16.mxu0 0
    %2655 = vmatpush1.bf16.xpose.msra.mxu0 0
    %2656 = vmatprep.subr.bf16.mxu0 0
    %2657 = vmatpush1.bf16.xpose.msra.mxu0 0
    %2658 = vmatprep.subr.bf16.mxu0 0
    %2659 = vmatpush1.bf16.xpose.msra.mxu0 0
    %2660 = vmatprep.subr.bf16.mxu0 0
    %2661 = vmatpush1.bf16.xpose.msra.mxu0 0
    %2662 = vmatprep.subr.bf16.mxu0 0
    %2663 = vmatpush1.bf16.xpose.msra.mxu0 0
    %2664 = vmatprep.subr.bf16.mxu0 0
    %2665 = vmatpush1.bf16.xpose.msra.mxu0 0
    %2666 = vmatprep.subr.bf16.mxu0 0
    %2667 = vmatpush1.bf16.xpose.msra.mxu0 0
    %2668 = vmatprep.subr.bf16.mxu0 0
    %2669 = vmatpush1.bf16.xpose.msra.mxu0 0
    %2670 = vmatprep.subr.bf16.mxu0 0
    %2671 = vmatpush1.bf16.xpose.msra.mxu0 0
    %2672 = vmatprep.subr.bf16.mxu0 0
    %2673 = vmatpush1.bf16.xpose.msra.mxu0 0
    %2674 = vmatprep.subr.bf16.mxu0 0
    %2675 = vmatpush1.bf16.xpose.msra.mxu0 0
    %2676 = vmatprep.subr.bf16.mxu0 0
    %2677 = vmatpush1.bf16.xpose.msra.mxu0 0
    %2678 = vmatprep.mubr.bf16.mxu0 0
    %2679 = vmatmul.mubr.bf16.gmra.mrb[0].mxu0 %v2641
    %v2680 = vpop.f32.mrb[0].mxu0
    %v2681 = vadd.f32 0.0, %v2680
    %v2682 = vpop.f32.mrb[0].mxu0
    %v2683 = vpop.f32.mrb[0].mxu0
    %v2684 = vadd.f32 0.0, %v2683
    %v2685 = vpop.f32.mrb[0].mxu0
    %2686 = vdwg.mxu0
    %v2687 = vmul.f32 %v2681, 0.35355338
    %v2688 = vmul.f32 %v2684, 0.35355338
    %v2689 = vsel %vm2482, -65500.0, %v2687
    %v2690 = vsel %vm2483, -65500.0, %v2688
    %v2691 = vsel %vm2486, %v2689, -inf
    %2692 = vmax.xlane.f32.xlu0 %v2691
    %v2693 = vpop.xlane.xlu0 %2692
    %v2694 = vsel %vm2486, %v2690, -inf
    %2695 = vmax.xlane.f32.xlu0 %v2694
    %v2696 = vpop.xlane.xlu0 %2695
    %v2697 = vsub.f32 %v2689, %v2693
    %v2698 = vsub.f32 %v2690, %v2696
    %v2699 = vmul.f32 %v2697, 1.442695
    %v2700 = vpow.pop %v2699
    %v2701 = vmul.f32 %v2698, 1.442695
    %v2702 = vpow.pop %v2701
    %v2703 = vsel %vm2486, %v2700, 0.0
    %2704 = vadd.xlane.f32.xlu0 %v2703
    %v2705 = vpop.xlane.xlu0 %2704
    %v2706 = vsel %vm2486, %v2702, 0.0
    %2707 = vadd.xlane.f32.xlu0 %v2706
    %v2708 = vpop.xlane.xlu0 %2707
    %v2709 = vrcp.pop %v2705
    %v2710 = vrcp.pop %v2708
    %v2711 = vmul.f32 %v2700, %v2709
    %v2712 = vmul.f32 %v2702, %v2710
    %v2713 = vpack.c.bf16 %v2712, %v2711
    %v2716 = vunpack.c.l.b16 %v2632
    %v2717 = vunpack.c.l.b16 %v2633
    %v2718 = vpack.c.b16 %v2717, %v2716
    %v2721 = vsel %vm2486, %v2713, 0
    %2723 = vmatprep.subr.bf16.mxu0 0
    %2724 = vmatpush1.bf16.msra.mxu0 %v2718
    %2725 = vmatprep.subr.bf16.mxu0 0
    %2726 = vmatpush1.bf16.msra.mxu0 0
    %2727 = vmatprep.subr.bf16.mxu0 0
    %2728 = vmatpush1.bf16.msra.mxu0 0
    %2729 = vmatprep.subr.bf16.mxu0 0
    %2730 = vmatpush1.bf16.msra.mxu0 0
    %2731 = vmatprep.subr.bf16.mxu0 0
    %2732 = vmatpush1.bf16.msra.mxu0 0
    %2733 = vmatprep.subr.bf16.mxu0 0
    %2734 = vmatpush1.bf16.msra.mxu0 0
    %2735 = vmatprep.subr.bf16.mxu0 0
    %2736 = vmatpush1.bf16.msra.mxu0 0
    %2737 = vmatprep.subr.bf16.mxu0 0
    %2738 = vmatpush1.bf16.msra.mxu0 0
    %2739 = vmatprep.subr.bf16.mxu0 0
    %2740 = vmatpush1.bf16.msra.mxu0 0
    %2741 = vmatprep.subr.bf16.mxu0 0
    %2742 = vmatpush1.bf16.msra.mxu0 0
    %2743 = vmatprep.subr.bf16.mxu0 0
    %2744 = vmatpush1.bf16.msra.mxu0 0
    %2745 = vmatprep.subr.bf16.mxu0 0
    %2746 = vmatpush1.bf16.msra.mxu0 0
    %2747 = vmatprep.subr.bf16.mxu0 0
    %2748 = vmatpush1.bf16.msra.mxu0 0
    %2749 = vmatprep.subr.bf16.mxu0 0
    %2750 = vmatpush1.bf16.msra.mxu0 0
    %2751 = vmatprep.subr.bf16.mxu0 0
    %2752 = vmatpush1.bf16.msra.mxu0 0
    %2753 = vmatprep.subr.bf16.mxu0 0
    %2754 = vmatpush1.bf16.msra.mxu0 0
    %2755 = vmatprep.mubr.bf16.mxu0 0
    %2756 = vmatmul.mubr.bf16.gmra.mrb[0].mxu0 %v2721
    %v2757 = vpop.f32.mrb[0].mxu0
    %v2758 = vadd.f32 0.0, %v2757
    %v2759 = vpop.f32.mrb[0].mxu0
    %v2760 = vpop.f32.mrb[0].mxu0
    %v2761 = vadd.f32 0.0, %v2760
    %v2762 = vpop.f32.mrb[0].mxu0
    %2763 = vdwg.mxu0
    %v2764 = vpack.c.bf16 %v2761, %v2758
    %s2765 = scalar_lea.vmem [#allocation26], 4
    %v2766 = vld [vmem:[%s2765] sm:$0xf]
    %v2768 = vsel %vm625, %v2764, 0
    %v2771 = vsel %vm751, %v2766, 0
    %2773 = vmatprep.subr.bf16.mxu0 0
    %2774 = vmatpush1.bf16.msra.mxu0 %v2771
    %2775 = vmatprep.subr.bf16.mxu0 0
    %2776 = vmatpush1.bf16.msra.mxu0 0
    %2777 = vmatprep.subr.bf16.mxu0 0
    %2778 = vmatpush1.bf16.msra.mxu0 0
    %2779 = vmatprep.subr.bf16.mxu0 0
    %2780 = vmatpush1.bf16.msra.mxu0 0
    %2781 = vmatprep.subr.bf16.mxu0 0
    %2782 = vmatpush1.bf16.msra.mxu0 0
    %2783 = vmatprep.subr.bf16.mxu0 0
    %2784 = vmatpush1.bf16.msra.mxu0 0
    %2785 = vmatprep.subr.bf16.mxu0 0
    %2786 = vmatpush1.bf16.msra.mxu0 0
    %2787 = vmatprep.subr.bf16.mxu0 0
    %2788 = vmatpush1.bf16.msra.mxu0 0
    %2789 = vmatprep.subr.bf16.mxu0 0
    %2790 = vmatpush1.bf16.msra.mxu0 0
    %2791 = vmatprep.subr.bf16.mxu0 0
    %2792 = vmatpush1.bf16.msra.mxu0 0
    %2793 = vmatprep.subr.bf16.mxu0 0
    %2794 = vmatpush1.bf16.msra.mxu0 0
    %2795 = vmatprep.subr.bf16.mxu0 0
    %2796 = vmatpush1.bf16.msra.mxu0 0
    %2797 = vmatprep.subr.bf16.mxu0 0
    %2798 = vmatpush1.bf16.msra.mxu0 0
    %2799 = vmatprep.subr.bf16.mxu0 0
    %2800 = vmatpush1.bf16.msra.mxu0 0
    %2801 = vmatprep.subr.bf16.mxu0 0
    %2802 = vmatpush1.bf16.msra.mxu0 0
    %2803 = vmatprep.subr.bf16.mxu0 0
    %2804 = vmatpush1.bf16.msra.mxu0 0
    %2805 = vmatprep.mubr.bf16.mxu0 0
    %2806 = vmatmul.mubr.bf16.gmra.mrb[0].mxu0 %v2768
    %v2807 = vpop.f32.mrb[0].mxu0
    %v2808 = vadd.f32 0.0, %v2807
    %v2809 = vpop.f32.mrb[0].mxu0
    %v2810 = vpop.f32.mrb[0].mxu0
    %v2811 = vadd.f32 0.0, %v2810
    %v2812 = vpop.f32.mrb[0].mxu0
    %2813 = vdwg.mxu0
    %v2815 = vsel %vm625, %v2560, 0
    %v2818 = vsel %vm751, %v2561, 0
    %2820 = vmatprep.subr.bf16.mxu0 0
    %2821 = vmatpush1.bf16.msra.mxu0 %v2818
    %2822 = vmatprep.subr.bf16.mxu0 0
    %2823 = vmatpush1.bf16.msra.mxu0 0
    %2824 = vmatprep.subr.bf16.mxu0 0
    %2825 = vmatpush1.bf16.msra.mxu0 0
    %2826 = vmatprep.subr.bf16.mxu0 0
    %2827 = vmatpush1.bf16.msra.mxu0 0
    %2828 = vmatprep.subr.bf16.mxu0 0
    %2829 = vmatpush1.bf16.msra.mxu0 0
    %2830 = vmatprep.subr.bf16.mxu0 0
    %2831 = vmatpush1.bf16.msra.mxu0 0
    %2832 = vmatprep.subr.bf16.mxu0 0
    %2833 = vmatpush1.bf16.msra.mxu0 0
    %2834 = vmatprep.subr.bf16.mxu0 0
    %2835 = vmatpush1.bf16.msra.mxu0 0
    %2836 = vmatprep.subr.bf16.mxu0 0
    %2837 = vmatpush1.bf16.msra.mxu0 0
    %2838 = vmatprep.subr.bf16.mxu0 0
    %2839 = vmatpush1.bf16.msra.mxu0 0
    %2840 = vmatprep.subr.bf16.mxu0 0
    %2841 = vmatpush1.bf16.msra.mxu0 0
    %2842 = vmatprep.subr.bf16.mxu0 0
    %2843 = vmatpush1.bf16.msra.mxu0 0
    %2844 = vmatprep.subr.bf16.mxu0 0
    %2845 = vmatpush1.bf16.msra.mxu0 0
    %2846 = vmatprep.subr.bf16.mxu0 0
    %2847 = vmatpush1.bf16.msra.mxu0 0
    %2848 = vmatprep.subr.bf16.mxu0 0
    %2849 = vmatpush1.bf16.msra.mxu0 0
    %2850 = vmatprep.subr.bf16.mxu0 0
    %2851 = vmatpush1.bf16.msra.mxu0 0
    %2852 = vmatprep.mubr.bf16.mxu0 0
    %2853 = vmatmul.mubr.bf16.gmra.mrb[0].mxu0 %v2815
    %v2854 = vpop.f32.mrb[0].mxu0
    %v2855 = vadd.f32 %v2808, %v2854
    %v2856 = vpop.f32.mrb[0].mxu0
    %v2857 = vpop.f32.mrb[0].mxu0
    %v2858 = vadd.f32 %v2811, %v2857
    %v2859 = vpop.f32.mrb[0].mxu0
    %2860 = vdwg.mxu0
    %s2861 = scalar_lea.vmem [#allocation23], 32
    %v2862 = vld [vmem:[%s2861] sm:$0xf]
    %v2863 = vld [vmem:[%s2861 + $0x4] sm:$0xf]
    %v2864 = vld [vmem:[%s2861 + $0x8] sm:$0xf]
    %v2865 = vld [vmem:[%s2861 + $0xc] sm:$0xf]
    %s2866 = scalar_lea.vmem [#allocation25], 2
    %v2867 = vld [vmem:[%s2866] sm:$0x1]
    %v2869 = vlaneseq
    %v2870 = vshrl.u32 %v2869, 7
    %v2871 = vsub.s32 0, %v2870
    %v2872 = vrot.slane %v2867, %v2871
    %v2878 = vunpack.c.l.b16 %v2862
    %v2879 = vunpack.c.l.b16 %v2863
    %v2880 = vunpack.c.l.b16 %v2864
    %v2881 = vunpack.c.l.b16 %v2865
    %v2882 = vpack.c.b16 %v2879, %v2878
    %v2883 = vpack.c.b16 %v2881, %v2880
    %2886 = vmatprep.subr.bf16.mxu0 0
    %2887 = vmatpush1.bf16.msra.mxu0 %v2882
    %2888 = vmatprep.subr.bf16.mxu0 0
    %2889 = vmatpush1.bf16.msra.mxu0 %v2883
    %2890 = vmatprep.subr.bf16.mxu0 0
    %2891 = vmatpush1.bf16.msra.mxu0 0
    %2892 = vmatprep.subr.bf16.mxu0 0
    %2893 = vmatpush1.bf16.msra.mxu0 0
    %2894 = vmatprep.subr.bf16.mxu0 0
    %2895 = vmatpush1.bf16.msra.mxu0 0
    %2896 = vmatprep.subr.bf16.mxu0 0
    %2897 = vmatpush1.bf16.msra.mxu0 0
    %2898 = vmatprep.subr.bf16.mxu0 0
    %2899 = vmatpush1.bf16.msra.mxu0 0
    %2900 = vmatprep.subr.bf16.mxu0 0
    %2901 = vmatpush1.bf16.msra.mxu0 0
    %2902 = vmatprep.subr.bf16.mxu0 0
    %2903 = vmatpush1.bf16.msra.mxu0 0
    %2904 = vmatprep.subr.bf16.mxu0 0
    %2905 = vmatpush1.bf16.msra.mxu0 0
    %2906 = vmatprep.subr.bf16.mxu0 0
    %2907 = vmatpush1.bf16.msra.mxu0 0
    %2908 = vmatprep.subr.bf16.mxu0 0
    %2909 = vmatpush1.bf16.msra.mxu0 0
    %2910 = vmatprep.subr.bf16.mxu0 0
    %2911 = vmatpush1.bf16.msra.mxu0 0
    %2912 = vmatprep.subr.bf16.mxu0 0
    %2913 = vmatpush1.bf16.msra.mxu0 0
    %2914 = vmatprep.subr.bf16.mxu0 0
    %2915 = vmatpush1.bf16.msra.mxu0 0
    %2916 = vmatprep.subr.bf16.mxu0 0
    %2917 = vmatpush1.bf16.msra.mxu0 0
    %2918 = vmatprep.mubr.bf16.mxu0 0
    %2919 = vmatmul.mubr.bf16.gmra.mrb[0].mxu0 %v2368
    %v2920 = vpop.f32.mrb[0].mxu0
    %v2921 = vadd.f32 %v2872, %v2920
    %v2922 = vpop.f32.mrb[0].mxu0
    %v2923 = vpop.f32.mrb[0].mxu0
    %v2924 = vadd.f32 %v2872, %v2923
    %v2925 = vpop.f32.mrb[0].mxu0
    %2926 = vdwg.mxu0
    %s2927 = scalar_lea.vmem [#allocation8], 16
    %v2928 = vld [vmem:[%s2927] sm:$0xf]
    %v2929 = vld [vmem:[%s2927 + $0x4] sm:$0xf]
    %s2930 = scalar_lea.vmem [#allocation10], 16
    %v2931 = vld [vmem:[%s2930] sm:$0xf]
    %v2932 = vld [vmem:[%s2930 + $0x4] sm:$0xf]
    %v2933 = vpack.c.bf16 %v2924, %v2921
    %v2936 = vunpack.c.l.b16 %v2928
    %v2937 = vunpack.c.l.b16 %v2929
    %v2938 = vpack.c.b16 %v2937, %v2936
    %v2940 = vsel %vm625, %v2933, 0
    %v2943 = vsel %vm625, %v2938, 0
    %2945 = vmatprep.subr.bf16.mxu0 0
    %2946 = vmatpush1.bf16.xpose.msra.mxu0 %v2943
    %2947 = vmatprep.subr.bf16.mxu0 0
    %2948 = vmatpush1.bf16.xpose.msra.mxu0 0
    %2949 = vmatprep.subr.bf16.mxu0 0
    %2950 = vmatpush1.bf16.xpose.msra.mxu0 0
    %2951 = vmatprep.subr.bf16.mxu0 0
    %2952 = vmatpush1.bf16.xpose.msra.mxu0 0
    %2953 = vmatprep.subr.bf16.mxu0 0
    %2954 = vmatpush1.bf16.xpose.msra.mxu0 0
    %2955 = vmatprep.subr.bf16.mxu0 0
    %2956 = vmatpush1.bf16.xpose.msra.mxu0 0
    %2957 = vmatprep.subr.bf16.mxu0 0
    %2958 = vmatpush1.bf16.xpose.msra.mxu0 0
    %2959 = vmatprep.subr.bf16.mxu0 0
    %2960 = vmatpush1.bf16.xpose.msra.mxu0 0
    %2961 = vmatprep.subr.bf16.mxu0 0
    %2962 = vmatpush1.bf16.xpose.msra.mxu0 0
    %2963 = vmatprep.subr.bf16.mxu0 0
    %2964 = vmatpush1.bf16.xpose.msra.mxu0 0
    %2965 = vmatprep.subr.bf16.mxu0 0
    %2966 = vmatpush1.bf16.xpose.msra.mxu0 0
    %2967 = vmatprep.subr.bf16.mxu0 0
    %2968 = vmatpush1.bf16.xpose.msra.mxu0 0
    %2969 = vmatprep.subr.bf16.mxu0 0
    %2970 = vmatpush1.bf16.xpose.msra.mxu0 0
    %2971 = vmatprep.subr.bf16.mxu0 0
    %2972 = vmatpush1.bf16.xpose.msra.mxu0 0
    %2973 = vmatprep.subr.bf16.mxu0 0
    %2974 = vmatpush1.bf16.xpose.msra.mxu0 0
    %2975 = vmatprep.subr.bf16.mxu0 0
    %2976 = vmatpush1.bf16.xpose.msra.mxu0 0
    %2977 = vmatprep.mubr.bf16.mxu0 0
    %2978 = vmatmul.mubr.bf16.gmra.mrb[0].mxu0 %v2940
    %v2979 = vpop.f32.mrb[0].mxu0
    %v2980 = vadd.f32 0.0, %v2979
    %v2981 = vpop.f32.mrb[0].mxu0
    %v2982 = vpop.f32.mrb[0].mxu0
    %v2983 = vadd.f32 0.0, %v2982
    %v2984 = vpop.f32.mrb[0].mxu0
    %2985 = vdwg.mxu0
    %v2986 = vmul.f32 %v2980, 0.35355338
    %v2987 = vmul.f32 %v2983, 0.35355338
    %v2988 = vsel %vm2482, -65500.0, %v2986
    %v2989 = vsel %vm2483, -65500.0, %v2987
    %v2990 = vsel %vm2486, %v2988, -inf
    %2991 = vmax.xlane.f32.xlu0 %v2990
    %v2992 = vpop.xlane.xlu0 %2991
    %v2993 = vsel %vm2486, %v2989, -inf
    %2994 = vmax.xlane.f32.xlu0 %v2993
    %v2995 = vpop.xlane.xlu0 %2994
    %v2996 = vsub.f32 %v2988, %v2992
    %v2997 = vsub.f32 %v2989, %v2995
    %v2998 = vmul.f32 %v2996, 1.442695
    %v2999 = vpow.pop %v2998
    %v3000 = vmul.f32 %v2997, 1.442695
    %v3001 = vpow.pop %v3000
    %v3002 = vsel %vm2486, %v2999, 0.0
    %3003 = vadd.xlane.f32.xlu0 %v3002
    %v3004 = vpop.xlane.xlu0 %3003
    %v3005 = vsel %vm2486, %v3001, 0.0
    %3006 = vadd.xlane.f32.xlu0 %v3005
    %v3007 = vpop.xlane.xlu0 %3006
    %v3008 = vrcp.pop %v3004
    %v3009 = vrcp.pop %v3007
    %v3010 = vmul.f32 %v2999, %v3008
    %v3011 = vmul.f32 %v3001, %v3009
    %v3012 = vpack.c.bf16 %v3011, %v3010
    %v3015 = vunpack.c.l.b16 %v2931
    %v3016 = vunpack.c.l.b16 %v2932
    %v3017 = vpack.c.b16 %v3016, %v3015
    %v3020 = vsel %vm2486, %v3012, 0
    %3022 = vmatprep.subr.bf16.mxu0 0
    %3023 = vmatpush1.bf16.msra.mxu0 %v3017
    %3024 = vmatprep.subr.bf16.mxu0 0
    %3025 = vmatpush1.bf16.msra.mxu0 0
    %3026 = vmatprep.subr.bf16.mxu0 0
    %3027 = vmatpush1.bf16.msra.mxu0 0
    %3028 = vmatprep.subr.bf16.mxu0 0
    %3029 = vmatpush1.bf16.msra.mxu0 0
    %3030 = vmatprep.subr.bf16.mxu0 0
    %3031 = vmatpush1.bf16.msra.mxu0 0
    %3032 = vmatprep.subr.bf16.mxu0 0
    %3033 = vmatpush1.bf16.msra.mxu0 0
    %3034 = vmatprep.subr.bf16.mxu0 0
    %3035 = vmatpush1.bf16.msra.mxu0 0
    %3036 = vmatprep.subr.bf16.mxu0 0
    %3037 = vmatpush1.bf16.msra.mxu0 0
    %3038 = vmatprep.subr.bf16.mxu0 0
    %3039 = vmatpush1.bf16.msra.mxu0 0
    %3040 = vmatprep.subr.bf16.mxu0 0
    %3041 = vmatpush1.bf16.msra.mxu0 0
    %3042 = vmatprep.subr.bf16.mxu0 0
    %3043 = vmatpush1.bf16.msra.mxu0 0
    %3044 = vmatprep.subr.bf16.mxu0 0
    %3045 = vmatpush1.bf16.msra.mxu0 0
    %3046 = vmatprep.subr.bf16.mxu0 0
    %3047 = vmatpush1.bf16.msra.mxu0 0
    %3048 = vmatprep.subr.bf16.mxu0 0
    %3049 = vmatpush1.bf16.msra.mxu0 0
    %3050 = vmatprep.subr.bf16.mxu0 0
    %3051 = vmatpush1.bf16.msra.mxu0 0
    %3052 = vmatprep.subr.bf16.mxu0 0
    %3053 = vmatpush1.bf16.msra.mxu0 0
    %3054 = vmatprep.mubr.bf16.mxu0 0
    %3055 = vmatmul.mubr.bf16.gmra.mrb[0].mxu0 %v3020
    %v3056 = vpop.f32.mrb[0].mxu0
    %v3057 = vadd.f32 0.0, %v3056
    %v3058 = vpop.f32.mrb[0].mxu0
    %v3059 = vpop.f32.mrb[0].mxu0
    %v3060 = vadd.f32 0.0, %v3059
    %v3061 = vpop.f32.mrb[0].mxu0
    %3062 = vdwg.mxu0
    %v3063 = vpack.c.bf16 %v3060, %v3057
    %s3064 = scalar_lea.vmem [#allocation26], 8
    %v3065 = vld [vmem:[%s3064] sm:$0xf]
    %v3067 = vsel %vm625, %v3063, 0
    %v3070 = vsel %vm751, %v3065, 0
    %3072 = vmatprep.subr.bf16.mxu0 0
    %3073 = vmatpush1.bf16.msra.mxu0 %v3070
    %3074 = vmatprep.subr.bf16.mxu0 0
    %3075 = vmatpush1.bf16.msra.mxu0 0
    %3076 = vmatprep.subr.bf16.mxu0 0
    %3077 = vmatpush1.bf16.msra.mxu0 0
    %3078 = vmatprep.subr.bf16.mxu0 0
    %3079 = vmatpush1.bf16.msra.mxu0 0
    %3080 = vmatprep.subr.bf16.mxu0 0
    %3081 = vmatpush1.bf16.msra.mxu0 0
    %3082 = vmatprep.subr.bf16.mxu0 0
    %3083 = vmatpush1.bf16.msra.mxu0 0
    %3084 = vmatprep.subr.bf16.mxu0 0
    %3085 = vmatpush1.bf16.msra.mxu0 0
    %3086 = vmatprep.subr.bf16.mxu0 0
    %3087 = vmatpush1.bf16.msra.mxu0 0
    %3088 = vmatprep.subr.bf16.mxu0 0
    %3089 = vmatpush1.bf16.msra.mxu0 0
    %3090 = vmatprep.subr.bf16.mxu0 0
    %3091 = vmatpush1.bf16.msra.mxu0 0
    %3092 = vmatprep.subr.bf16.mxu0 0
    %3093 = vmatpush1.bf16.msra.mxu0 0
    %3094 = vmatprep.subr.bf16.mxu0 0
    %3095 = vmatpush1.bf16.msra.mxu0 0
    %3096 = vmatprep.subr.bf16.mxu0 0
    %3097 = vmatpush1.bf16.msra.mxu0 0
    %3098 = vmatprep.subr.bf16.mxu0 0
    %3099 = vmatpush1.bf16.msra.mxu0 0
    %3100 = vmatprep.subr.bf16.mxu0 0
    %3101 = vmatpush1.bf16.msra.mxu0 0
    %3102 = vmatprep.subr.bf16.mxu0 0
    %3103 = vmatpush1.bf16.msra.mxu0 0
    %3104 = vmatprep.mubr.bf16.mxu0 0
    %3105 = vmatmul.mubr.bf16.gmra.mrb[0].mxu0 %v3067
    %v3106 = vpop.f32.mrb[0].mxu0
    %v3107 = vadd.f32 0.0, %v3106
    %v3108 = vpop.f32.mrb[0].mxu0
    %v3109 = vpop.f32.mrb[0].mxu0
    %v3110 = vadd.f32 0.0, %v3109
    %v3111 = vpop.f32.mrb[0].mxu0
    %3112 = vdwg.mxu0
    %v3113 = vadd.f32 %v2855, %v3107
    %v3114 = vadd.f32 %v2858, %v3110
    %s3115 = scalar_lea.vmem [#allocation23], 48
    %v3116 = vld [vmem:[%s3115] sm:$0xf]
    %v3117 = vld [vmem:[%s3115 + $0x4] sm:$0xf]
    %v3118 = vld [vmem:[%s3115 + $0x8] sm:$0xf]
    %v3119 = vld [vmem:[%s3115 + $0xc] sm:$0xf]
    %s3120 = scalar_lea.vmem [#allocation25], 3
    %v3121 = vld [vmem:[%s3120] sm:$0x1]
    %v3123 = vlaneseq
    %v3124 = vshrl.u32 %v3123, 7
    %v3125 = vsub.s32 0, %v3124
    %v3126 = vrot.slane %v3121, %v3125
    %v3132 = vunpack.c.l.b16 %v3116
    %v3133 = vunpack.c.l.b16 %v3117
    %v3134 = vunpack.c.l.b16 %v3118
    %v3135 = vunpack.c.l.b16 %v3119
    %v3136 = vpack.c.b16 %v3133, %v3132
    %v3137 = vpack.c.b16 %v3135, %v3134
    %3140 = vmatprep.subr.bf16.mxu0 0
    %3141 = vmatpush1.bf16.msra.mxu0 %v3136
    %3142 = vmatprep.subr.bf16.mxu0 0
    %3143 = vmatpush1.bf16.msra.mxu0 %v3137
    %3144 = vmatprep.subr.bf16.mxu0 0
    %3145 = vmatpush1.bf16.msra.mxu0 0
    %3146 = vmatprep.subr.bf16.mxu0 0
    %3147 = vmatpush1.bf16.msra.mxu0 0
    %3148 = vmatprep.subr.bf16.mxu0 0
    %3149 = vmatpush1.bf16.msra.mxu0 0
    %3150 = vmatprep.subr.bf16.mxu0 0
    %3151 = vmatpush1.bf16.msra.mxu0 0
    %3152 = vmatprep.subr.bf16.mxu0 0
    %3153 = vmatpush1.bf16.msra.mxu0 0
    %3154 = vmatprep.subr.bf16.mxu0 0
    %3155 = vmatpush1.bf16.msra.mxu0 0
    %3156 = vmatprep.subr.bf16.mxu0 0
    %3157 = vmatpush1.bf16.msra.mxu0 0
    %3158 = vmatprep.subr.bf16.mxu0 0
    %3159 = vmatpush1.bf16.msra.mxu0 0
    %3160 = vmatprep.subr.bf16.mxu0 0
    %3161 = vmatpush1.bf16.msra.mxu0 0
    %3162 = vmatprep.subr.bf16.mxu0 0
    %3163 = vmatpush1.bf16.msra.mxu0 0
    %3164 = vmatprep.subr.bf16.mxu0 0
    %3165 = vmatpush1.bf16.msra.mxu0 0
    %3166 = vmatprep.subr.bf16.mxu0 0
    %3167 = vmatpush1.bf16.msra.mxu0 0
    %3168 = vmatprep.subr.bf16.mxu0 0
    %3169 = vmatpush1.bf16.msra.mxu0 0
    %3170 = vmatprep.subr.bf16.mxu0 0
    %3171 = vmatpush1.bf16.msra.mxu0 0
    %3172 = vmatprep.mubr.bf16.mxu0 0
    %3173 = vmatmul.mubr.bf16.gmra.mrb[0].mxu0 %v2368
    %v3174 = vpop.f32.mrb[0].mxu0
    %v3175 = vadd.f32 %v3126, %v3174
    %v3176 = vpop.f32.mrb[0].mxu0
    %v3177 = vpop.f32.mrb[0].mxu0
    %v3178 = vadd.f32 %v3126, %v3177
    %v3179 = vpop.f32.mrb[0].mxu0
    %3180 = vdwg.mxu0
    %s3181 = scalar_lea.vmem [#allocation8], 24
    %v3182 = vld [vmem:[%s3181] sm:$0xf]
    %v3183 = vld [vmem:[%s3181 + $0x4] sm:$0xf]
    %s3184 = scalar_lea.vmem [#allocation10], 24
    %v3185 = vld [vmem:[%s3184] sm:$0xf]
    %v3186 = vld [vmem:[%s3184 + $0x4] sm:$0xf]
    %v3187 = vpack.c.bf16 %v3178, %v3175
    %v3190 = vunpack.c.l.b16 %v3182
    %v3191 = vunpack.c.l.b16 %v3183
    %v3192 = vpack.c.b16 %v3191, %v3190
    %v3194 = vsel %vm625, %v3187, 0
    %v3197 = vsel %vm625, %v3192, 0
    %3199 = vmatprep.subr.bf16.mxu0 0
    %3200 = vmatpush1.bf16.xpose.msra.mxu0 %v3197
    %3201 = vmatprep.subr.bf16.mxu0 0
    %3202 = vmatpush1.bf16.xpose.msra.mxu0 0
    %3203 = vmatprep.subr.bf16.mxu0 0
    %3204 = vmatpush1.bf16.xpose.msra.mxu0 0
    %3205 = vmatprep.subr.bf16.mxu0 0
    %3206 = vmatpush1.bf16.xpose.msra.mxu0 0
    %3207 = vmatprep.subr.bf16.mxu0 0
    %3208 = vmatpush1.bf16.xpose.msra.mxu0 0
    %3209 = vmatprep.subr.bf16.mxu0 0
    %3210 = vmatpush1.bf16.xpose.msra.mxu0 0
    %3211 = vmatprep.subr.bf16.mxu0 0
    %3212 = vmatpush1.bf16.xpose.msra.mxu0 0
    %3213 = vmatprep.subr.bf16.mxu0 0
    %3214 = vmatpush1.bf16.xpose.msra.mxu0 0
    %3215 = vmatprep.subr.bf16.mxu0 0
    %3216 = vmatpush1.bf16.xpose.msra.mxu0 0
    %3217 = vmatprep.subr.bf16.mxu0 0
    %3218 = vmatpush1.bf16.xpose.msra.mxu0 0
    %3219 = vmatprep.subr.bf16.mxu0 0
    %3220 = vmatpush1.bf16.xpose.msra.mxu0 0
    %3221 = vmatprep.subr.bf16.mxu0 0
    %3222 = vmatpush1.bf16.xpose.msra.mxu0 0
    %3223 = vmatprep.subr.bf16.mxu0 0
    %3224 = vmatpush1.bf16.xpose.msra.mxu0 0
    %3225 = vmatprep.subr.bf16.mxu0 0
    %3226 = vmatpush1.bf16.xpose.msra.mxu0 0
    %3227 = vmatprep.subr.bf16.mxu0 0
    %3228 = vmatpush1.bf16.xpose.msra.mxu0 0
    %3229 = vmatprep.subr.bf16.mxu0 0
    %3230 = vmatpush1.bf16.xpose.msra.mxu0 0
    %3231 = vmatprep.mubr.bf16.mxu0 0
    %3232 = vmatmul.mubr.bf16.gmra.mrb[0].mxu0 %v3194
    %v3233 = vpop.f32.mrb[0].mxu0
    %v3234 = vadd.f32 0.0, %v3233
    %v3235 = vpop.f32.mrb[0].mxu0
    %v3236 = vpop.f32.mrb[0].mxu0
    %v3237 = vadd.f32 0.0, %v3236
    %v3238 = vpop.f32.mrb[0].mxu0
    %3239 = vdwg.mxu0
    %v3240 = vmul.f32 %v3234, 0.35355338
    %v3241 = vmul.f32 %v3237, 0.35355338
    %v3242 = vsel %vm2482, -65500.0, %v3240
    %v3243 = vsel %vm2483, -65500.0, %v3241
    %v3244 = vsel %vm2486, %v3242, -inf
    %3245 = vmax.xlane.f32.xlu0 %v3244
    %v3246 = vpop.xlane.xlu0 %3245
    %v3247 = vsel %vm2486, %v3243, -inf
    %3248 = vmax.xlane.f32.xlu0 %v3247
    %v3249 = vpop.xlane.xlu0 %3248
    %v3250 = vsub.f32 %v3242, %v3246
    %v3251 = vsub.f32 %v3243, %v3249
    %v3252 = vmul.f32 %v3250, 1.442695
    %v3253 = vpow.pop %v3252
    %v3254 = vmul.f32 %v3251, 1.442695
    %v3255 = vpow.pop %v3254
    %v3256 = vsel %vm2486, %v3253, 0.0
    %3257 = vadd.xlane.f32.xlu0 %v3256
    %v3258 = vpop.xlane.xlu0 %3257
    %v3259 = vsel %vm2486, %v3255, 0.0
    %3260 = vadd.xlane.f32.xlu0 %v3259
    %v3261 = vpop.xlane.xlu0 %3260
    %v3262 = vrcp.pop %v3258
    %v3263 = vrcp.pop %v3261
    %v3264 = vmul.f32 %v3253, %v3262
    %v3265 = vmul.f32 %v3255, %v3263
    %v3266 = vpack.c.bf16 %v3265, %v3264
    %v3269 = vunpack.c.l.b16 %v3185
    %v3270 = vunpack.c.l.b16 %v3186
    %v3271 = vpack.c.b16 %v3270, %v3269
    %v3274 = vsel %vm2486, %v3266, 0
    %3276 = vmatprep.subr.bf16.mxu0 0
    %3277 = vmatpush1.bf16.msra.mxu0 %v3271
    %3278 = vmatprep.subr.bf16.mxu0 0
    %3279 = vmatpush1.bf16.msra.mxu0 0
    %3280 = vmatprep.subr.bf16.mxu0 0
    %3281 = vmatpush1.bf16.msra.mxu0 0
    %3282 = vmatprep.subr.bf16.mxu0 0
    %3283 = vmatpush1.bf16.msra.mxu0 0
    %3284 = vmatprep.subr.bf16.mxu0 0
    %3285 = vmatpush1.bf16.msra.mxu0 0
    %3286 = vmatprep.subr.bf16.mxu0 0
    %3287 = vmatpush1.bf16.msra.mxu0 0
    %3288 = vmatprep.subr.bf16.mxu0 0
    %3289 = vmatpush1.bf16.msra.mxu0 0
    %3290 = vmatprep.subr.bf16.mxu0 0
    %3291 = vmatpush1.bf16.msra.mxu0 0
    %3292 = vmatprep.subr.bf16.mxu0 0
    %3293 = vmatpush1.bf16.msra.mxu0 0
    %3294 = vmatprep.subr.bf16.mxu0 0
    %3295 = vmatpush1.bf16.msra.mxu0 0
    %3296 = vmatprep.subr.bf16.mxu0 0
    %3297 = vmatpush1.bf16.msra.mxu0 0
    %3298 = vmatprep.subr.bf16.mxu0 0
    %3299 = vmatpush1.bf16.msra.mxu0 0
    %3300 = vmatprep.subr.bf16.mxu0 0
    %3301 = vmatpush1.bf16.msra.mxu0 0
    %3302 = vmatprep.subr.bf16.mxu0 0
    %3303 = vmatpush1.bf16.msra.mxu0 0
    %3304 = vmatprep.subr.bf16.mxu0 0
    %3305 = vmatpush1.bf16.msra.mxu0 0
    %3306 = vmatprep.subr.bf16.mxu0 0
    %3307 = vmatpush1.bf16.msra.mxu0 0
    %3308 = vmatprep.mubr.bf16.mxu0 0
    %3309 = vmatmul.mubr.bf16.gmra.mrb[0].mxu0 %v3274
    %v3310 = vpop.f32.mrb[0].mxu0
    %v3311 = vadd.f32 0.0, %v3310
    %v3312 = vpop.f32.mrb[0].mxu0
    %v3313 = vpop.f32.mrb[0].mxu0
    %v3314 = vadd.f32 0.0, %v3313
    %v3315 = vpop.f32.mrb[0].mxu0
    %3316 = vdwg.mxu0
    %v3317 = vpack.c.bf16 %v3314, %v3311
    %s3318 = scalar_lea.vmem [#allocation26], 12
    %v3319 = vld [vmem:[%s3318] sm:$0xf]
    %v3321 = vsel %vm625, %v3317, 0
    %v3324 = vsel %vm751, %v3319, 0
    %3326 = vmatprep.subr.bf16.mxu0 0
    %3327 = vmatpush1.bf16.msra.mxu0 %v3324
    %3328 = vmatprep.subr.bf16.mxu0 0
    %3329 = vmatpush1.bf16.msra.mxu0 0
    %3330 = vmatprep.subr.bf16.mxu0 0
    %3331 = vmatpush1.bf16.msra.mxu0 0
    %3332 = vmatprep.subr.bf16.mxu0 0
    %3333 = vmatpush1.bf16.msra.mxu0 0
    %3334 = vmatprep.subr.bf16.mxu0 0
    %3335 = vmatpush1.bf16.msra.mxu0 0
    %3336 = vmatprep.subr.bf16.mxu0 0
    %3337 = vmatpush1.bf16.msra.mxu0 0
    %3338 = vmatprep.subr.bf16.mxu0 0
    %3339 = vmatpush1.bf16.msra.mxu0 0
    %3340 = vmatprep.subr.bf16.mxu0 0
    %3341 = vmatpush1.bf16.msra.mxu0 0
    %3342 = vmatprep.subr.bf16.mxu0 0
    %3343 = vmatpush1.bf16.msra.mxu0 0
    %3344 = vmatprep.subr.bf16.mxu0 0
    %3345 = vmatpush1.bf16.msra.mxu0 0
    %3346 = vmatprep.subr.bf16.mxu0 0
    %3347 = vmatpush1.bf16.msra.mxu0 0
    %3348 = vmatprep.subr.bf16.mxu0 0
    %3349 = vmatpush1.bf16.msra.mxu0 0
    %3350 = vmatprep.subr.bf16.mxu0 0
    %3351 = vmatpush1.bf16.msra.mxu0 0
    %3352 = vmatprep.subr.bf16.mxu0 0
    %3353 = vmatpush1.bf16.msra.mxu0 0
    %3354 = vmatprep.subr.bf16.mxu0 0
    %3355 = vmatpush1.bf16.msra.mxu0 0
    %3356 = vmatprep.subr.bf16.mxu0 0
    %3357 = vmatpush1.bf16.msra.mxu0 0
    %3358 = vmatprep.mubr.bf16.mxu0 0
    %3359 = vmatmul.mubr.bf16.gmra.mrb[0].mxu0 %v3321
    %v3360 = vpop.f32.mrb[0].mxu0
    %v3361 = vadd.f32 0.0, %v3360
    %v3362 = vpop.f32.mrb[0].mxu0
    %v3363 = vpop.f32.mrb[0].mxu0
    %v3364 = vadd.f32 0.0, %v3363
    %v3365 = vpop.f32.mrb[0].mxu0
    %3366 = vdwg.mxu0
    %v3367 = vadd.f32 %v3113, %v3361
    %v3368 = vadd.f32 %v3114, %v3364
    %v3369 = vld [vmem:[#allocation28] sm:$0x1]
    %v3371 = vlaneseq
    %v3372 = vshrl.u32 %v3371, 7
    %v3373 = vsub.s32 0, %v3372
    %v3374 = vrot.slane %v3369, %v3373
    %v3376 = vadd.f32 %v3367, %v3374
    %v3377 = vadd.f32 %v3368, %v3374
    %v3378 = vadd.f32 %v2301, %v3376
    %v3379 = vadd.f32 %v2302, %v3377
    %v3380 = vld [vmem:[#allocation35 + $0x2] sm:$0x1]
    %v3381 = vld [vmem:[#allocation37 + $0x2] sm:$0x1]
    %v3382 = vsel %vm383, %v3378, 0.0
    %3383 = vadd.xlane.f32.xlu0 %v3382
    %v3384 = vpop.xlane.xlu0 %3383
    %v3385 = vsel %vm383, %v3379, 0.0
    %3386 = vadd.xlane.f32.xlu0 %v3385
    %v3387 = vpop.xlane.xlu0 %3386
    %v3388 = vmul.f32 %v3384, %v390
    %v3389 = vmul.f32 %v3387, %v390
    %v3390 = vsub.f32 %v3378, %v3388
    %v3391 = vsub.f32 %v3379, %v3389
    %v3392 = vmul.f32 %v3390, %v3390
    %v3393 = vmul.f32 %v3391, %v3391
    %v3394 = vsel %vm383, %v3392, 0.0
    %3395 = vadd.xlane.f32.xlu0 %v3394
    %v3396 = vpop.xlane.xlu0 %3395
    %v3397 = vsel %vm383, %v3393, 0.0
    %3398 = vadd.xlane.f32.xlu0 %v3397
    %v3399 = vpop.xlane.xlu0 %3398
    %v3400 = vmul.f32 %v3396, %v390
    %v3401 = vmul.f32 %v3399, %v390
    %v3402 = vadd.f32 %v3400, 1e-05
    %v3403 = vadd.f32 %v3401, 1e-05
    %v3404 = vrsqrt.pop %v3402
    %v3405 = vrsqrt.pop %v3403
    %v3406 = vmul.f32 %v3390, %v3404
    %v3407 = vmul.f32 %v3391, %v3405
    %v3408 = vlaneseq
    %v3409 = vshrl.u32 %v3408, 7
    %v3410 = vsub.s32 0, %v3409
    %v3411 = vrot.slane %v3380, %v3410
    %v3412 = vmul.f32 %v3406, %v3411
    %v3413 = vmul.f32 %v3407, %v3411
    %v3414 = vlaneseq
    %v3415 = vshrl.u32 %v3414, 7
    %v3416 = vsub.s32 0, %v3415
    %v3417 = vrot.slane %v3381, %v3416
    %v3418 = vadd.f32 %v3412, %v3417
    %v3419 = vadd.f32 %v3413, %v3417
    %v3420 = vpack.c.bf16 %v3419, %v3418
    %v3421 = vld [vmem:[#allocation29] sm:$0xf]
    %v3422 = vld [vmem:[#allocation29 + $0x4] sm:$0xf]
    %v3423 = vld [vmem:[#allocation29 + $0x8] sm:$0xf]
    %v3424 = vld [vmem:[#allocation29 + $0xc] sm:$0xf]
    %v3425 = vld [vmem:[#allocation31] sm:$0x1]
    %v3427 = vlaneseq
    %v3428 = vshrl.u32 %v3427, 7
    %v3429 = vsub.s32 0, %v3428
    %v3430 = vrot.slane %v3425, %v3429
    %v3436 = vunpack.c.l.b16 %v3421
    %v3437 = vunpack.c.l.b16 %v3422
    %v3438 = vunpack.c.l.b16 %v3423
    %v3439 = vunpack.c.l.b16 %v3424
    %v3440 = vpack.c.b16 %v3437, %v3436
    %v3441 = vpack.c.b16 %v3439, %v3438
    %v3445 = vsel %vm383, %v3420, 0
    %3447 = vmatprep.subr.bf16.mxu0 0
    %3448 = vmatpush1.bf16.msra.mxu0 %v3440
    %3449 = vmatprep.subr.bf16.mxu0 0
    %3450 = vmatpush1.bf16.msra.mxu0 %v3441
    %3451 = vmatprep.subr.bf16.mxu0 0
    %3452 = vmatpush1.bf16.msra.mxu0 0
    %3453 = vmatprep.subr.bf16.mxu0 0
    %3454 = vmatpush1.bf16.msra.mxu0 0
    %3455 = vmatprep.subr.bf16.mxu0 0
    %3456 = vmatpush1.bf16.msra.mxu0 0
    %3457 = vmatprep.subr.bf16.mxu0 0
    %3458 = vmatpush1.bf16.msra.mxu0 0
    %3459 = vmatprep.subr.bf16.mxu0 0
    %3460 = vmatpush1.bf16.msra.mxu0 0
    %3461 = vmatprep.subr.bf16.mxu0 0
    %3462 = vmatpush1.bf16.msra.mxu0 0
    %3463 = vmatprep.subr.bf16.mxu0 0
    %3464 = vmatpush1.bf16.msra.mxu0 0
    %3465 = vmatprep.subr.bf16.mxu0 0
    %3466 = vmatpush1.bf16.msra.mxu0 0
    %3467 = vmatprep.subr.bf16.mxu0 0
    %3468 = vmatpush1.bf16.msra.mxu0 0
    %3469 = vmatprep.subr.bf16.mxu0 0
    %3470 = vmatpush1.bf16.msra.mxu0 0
    %3471 = vmatprep.subr.bf16.mxu0 0
    %3472 = vmatpush1.bf16.msra.mxu0 0
    %3473 = vmatprep.subr.bf16.mxu0 0
    %3474 = vmatpush1.bf16.msra.mxu0 0
    %3475 = vmatprep.subr.bf16.mxu0 0
    %3476 = vmatpush1.bf16.msra.mxu0 0
    %3477 = vmatprep.subr.bf16.mxu0 0
    %3478 = vmatpush1.bf16.msra.mxu0 0
    %3479 = vmatprep.mubr.bf16.mxu0 0
    %3480 = vmatmul.mubr.bf16.gmra.mrb[0].mxu0 %v3445
    %v3481 = vpop.f32.mrb[0].mxu0
    %v3482 = vadd.f32 %v3430, %v3481
    %v3483 = vpop.f32.mrb[0].mxu0
    %v3484 = vpop.f32.mrb[0].mxu0
    %v3485 = vadd.f32 %v3430, %v3484
    %v3486 = vpop.f32.mrb[0].mxu0
    %3487 = vdwg.mxu0
    %v3488 = vmax.f32 %v3482, 0.0
    %v3489 = vmax.f32 %v3485, 0.0
    %v3490 = vpack.c.bf16 %v3489, %v3488
    %v3491 = vld [vmem:[#allocation32] sm:$0xf]
    %v3492 = vld [vmem:[#allocation32 + $0x4] sm:$0xf]
    %v3493 = vld [vmem:[#allocation32 + $0x8] sm:$0xf]
    %v3494 = vld [vmem:[#allocation32 + $0xc] sm:$0xf]
    %v3495 = vld [vmem:[#allocation32 + $0x10] sm:$0xf]
    %v3496 = vld [vmem:[#allocation32 + $0x14] sm:$0xf]
    %v3497 = vld [vmem:[#allocation32 + $0x18] sm:$0xf]
    %v3498 = vld [vmem:[#allocation32 + $0x1c] sm:$0xf]
    %v3499 = vld [vmem:[#allocation34] sm:$0x1]
    %v3501 = vlaneseq
    %v3502 = vshrl.u32 %v3501, 7
    %v3503 = vsub.s32 0, %v3502
    %v3504 = vrot.slane %v3499, %v3503
    %v3514 = vunpack.c.l.b16 %v3491
    %v3515 = vunpack.c.l.b16 %v3492
    %v3516 = vunpack.c.l.b16 %v3493
    %v3517 = vunpack.c.l.b16 %v3494
    %v3518 = vunpack.c.l.b16 %v3495
    %v3519 = vunpack.c.l.b16 %v3496
    %v3520 = vunpack.c.l.b16 %v3497
    %v3521 = vunpack.c.l.b16 %v3498
    %v3522 = vpack.c.b16 %v3515, %v3514
    %v3523 = vpack.c.b16 %v3517, %v3516
    %v3524 = vpack.c.b16 %v3519, %v3518
    %v3525 = vpack.c.b16 %v3521, %v3520
    %vm3530 = vcmask 523264
    %v3532 = vsel %vm3530, %v3490, 0
    %3534 = vmatprep.subr.bf16.mxu0 0
    %3535 = vmatpush1.bf16.msra.mxu0 %v3522
    %3536 = vmatprep.subr.bf16.mxu0 0
    %3537 = vmatpush1.bf16.msra.mxu0 %v3523
    %3538 = vmatprep.subr.bf16.mxu0 0
    %3539 = vmatpush1.bf16.msra.mxu0 %v3524
    %3540 = vmatprep.subr.bf16.mxu0 0
    %3541 = vmatpush1.bf16.msra.mxu0 %v3525
    %3542 = vmatprep.subr.bf16.mxu0 0
    %3543 = vmatpush1.bf16.msra.mxu0 0
    %3544 = vmatprep.subr.bf16.mxu0 0
    %3545 = vmatpush1.bf16.msra.mxu0 0
    %3546 = vmatprep.subr.bf16.mxu0 0
    %3547 = vmatpush1.bf16.msra.mxu0 0
    %3548 = vmatprep.subr.bf16.mxu0 0
    %3549 = vmatpush1.bf16.msra.mxu0 0
    %3550 = vmatprep.subr.bf16.mxu0 0
    %3551 = vmatpush1.bf16.msra.mxu0 0
    %3552 = vmatprep.subr.bf16.mxu0 0
    %3553 = vmatpush1.bf16.msra.mxu0 0
    %3554 = vmatprep.subr.bf16.mxu0 0
    %3555 = vmatpush1.bf16.msra.mxu0 0
    %3556 = vmatprep.subr.bf16.mxu0 0
    %3557 = vmatpush1.bf16.msra.mxu0 0
    %3558 = vmatprep.subr.bf16.mxu0 0
    %3559 = vmatpush1.bf16.msra.mxu0 0
    %3560 = vmatprep.subr.bf16.mxu0 0
    %3561 = vmatpush1.bf16.msra.mxu0 0
    %3562 = vmatprep.subr.bf16.mxu0 0
    %3563 = vmatpush1.bf16.msra.mxu0 0
    %3564 = vmatprep.subr.bf16.mxu0 0
    %3565 = vmatpush1.bf16.msra.mxu0 0
    %3566 = vmatprep.mubr.bf16.mxu0 0
    %3567 = vmatmul.mubr.bf16.gmra.mrb[0].mxu0 %v3532
    %v3568 = vpop.f32.mrb[0].mxu0
    %v3569 = vadd.f32 %v3504, %v3568
    %v3570 = vpop.f32.mrb[0].mxu0
    %v3571 = vpop.f32.mrb[0].mxu0
    %v3572 = vadd.f32 %v3504, %v3571
    %v3573 = vpop.f32.mrb[0].mxu0
    %3574 = vdwg.mxu0
    %v3575 = vadd.f32 %v3378, %v3569
    %v3576 = vadd.f32 %v3379, %v3572
    %3577 = vst.msk [vmem:[#allocation38] sm:$0xff] %vm383, %v3575
    %3578 = vst.msk [vmem:[#allocation38 + $0x8] sm:$0xff] %vm383, %v3576
    // Predicated region
    $region186: #{tpu_custom_call.1} parent=1 // pred_check
      _
    $region187: #{tpu_custom_call.1} parent=1 // pred_check_branch
      %3580 = sbr.rel (0) target = $region189
    $region188: #{tpu_custom_call.1} parent=1 // pred_region
      %s3582 = ssub.s32 256, 256
      %3583 = vsyncadd [#allocation4], %s3582
      %s3584 = sshll.u32 [#allocation38], 4
      %s3585 = int_to_ptr.vmem [resolvable:$true] %s3584
      %3590 = dma.vmem_to_hbm [thread:$0]  %s3585, 256, %s23, [#allocation4], 128, 128, 8
    $region189: #{tpu_custom_call.1} parent=1 // pred_fallthru
      _
    // Predicated region
    $region190: #{tpu_custom_call.1} parent=1 // pred_check
      _
    $region191: #{tpu_custom_call.1} parent=1 // pred_check_branch
      %3592 = sbr.rel (0) target = $region193
    $region192: #{tpu_custom_call.1} parent=1 // pred_region
      %3593 = dma.done [#allocation4], 256
    $region193: #{tpu_custom_call.1} parent=1 // pred_fallthru
      _
    %3594 = vsyncpa [#allocation3], 1
    %3595 = vsyncpa [#allocation6], 1
    %3596 = vsyncpa [#allocation9], 1
    %3597 = vsyncpa [#allocation12], 1
    %3598 = vsyncpa [#allocation15], 1
    %3599 = vsyncpa [#allocation18], 1
    %3600 = vsyncpa [#allocation21], 1
    %3601 = vsyncpa [#allocation24], 1
    %3602 = vsyncpa [#allocation27], 1
    %3603 = vsyncpa [#allocation30], 1
    %3604 = vsyncpa [#allocation33], 1
    %3605 = vsyncpa [#allocation36], 1
    %3606 = vsyncpa [#allocation4], 1

</llo_original>
